<compile_context>
chip_gen: v5e
topology: v5e:2x2
jax: 0.10.0
libtpu: 0.0.40
codegen_flags: <defaults>
</compile_context>

<pallas_src>
import jax
import jax.numpy as jnp
from jax.experimental import pallas as pl
from jax.experimental.pallas import tpu as pltpu


# ---------------------------------------------------------------------------
# Kernel
# ---------------------------------------------------------------------------
def _vae_rbf_kernel(
    # batch-tiled inputs
    x_ref, eps_ref,
    # encoder params (hoisted/precomputed)
    cT_e1_ref, c2_e1_ref, iw_e1_ref,     # RBF(input -> hidden): c.T*2iw, ||c||^2*iw, iw
    Wh_ref, bh_ref,                      # Linear(hidden, hidden)
    cT_e2_ref, c2_e2_ref, iw_e2_ref,     # RBF(hidden -> hidden)
    Wm_ref, bm_ref, Wlv_ref, blv_ref,    # Linear(hidden, latent) heads (narrow latent)
    # decoder params
    cT_d1_ref, c2_d1_ref, iw_d1_ref,     # RBF(latent -> hidden)
    Wdh_ref, bdh_ref,                    # Linear(hidden, hidden)
    cT_d2_ref, c2_d2_ref, iw_d2_ref,     # RBF(hidden -> output)
    Wdo_ref, bdo_ref,                    # Linear(output, output) -> placed at slab cols [0:od]
    # 0/1 selector matrices that place the narrow latent outputs into the slab
    Pz_ref, Pm_ref, Pv_ref, Plv_ref,
    # packed lane-dense output slab [tile, round_up(od + 4*ld, 128)]
    slab_ref,
):
    def rbf(x, cT_ref, c2_ref, iw_ref):
        # Gaussian RBF exp(-||x - c||^2 / (2 w^2)).  The width is folded host-side:
        #   cT' = c.T * 2*iw,  c2' = ||c||^2 * iw,  iw = 1/(2 w^2)   (iw >= 0, so the
        # zero-clamp commutes with the scaling).  Cross term runs on the MXU.
        x2 = jnp.sum(x * x, axis=-1, keepdims=True)                        # [B, 1]
        xc = jnp.dot(x, cT_ref[...], preferred_element_type=jnp.float32)   # [B, O]
        d2 = jnp.maximum(x2 * iw_ref[...] - xc + c2_ref[...], 0.0)
        return jnp.exp(-d2)

    def linear(x, W_ref, b_ref):
        return jnp.dot(x, W_ref[...], preferred_element_type=jnp.float32) + b_ref[...]

    x = x_ref[...]

    # ----- EncoderRBF -----
    h = rbf(x, cT_e1_ref, c2_e1_ref, iw_e1_ref)        # rbf_input
    h = jnp.tanh(linear(h, Wh_ref, bh_ref))            # tanh(hidden(.))
    h = rbf(h, cT_e2_ref, c2_e2_ref, iw_e2_ref)        # rbf_hidden
    th = jnp.tanh(h)
    mean = linear(th, Wm_ref, bm_ref)                  # [B, Lg]  (narrow latent width)
    log_var = linear(th, Wlv_ref, blv_ref)             # [B, Lg]
    var = jnp.exp(0.5 * log_var)
    z = mean + eps_ref[...] * var                      # reparameterization

    # ----- DecoderRBF -----
    d = rbf(z, cT_d1_ref, c2_d1_ref, iw_d1_ref)        # rbf_hidden
    d = jnp.tanh(linear(d, Wdh_ref, bdh_ref))          # tanh(fc_hidden(.))
    d = rbf(d, cT_d2_ref, c2_d2_ref, iw_d2_ref)        # rbf_output
    out = linear(jnp.tanh(d), Wdo_ref, bdo_ref)        # fc_output, already at slab cols [0:od]

    # Pack z / mean / var / log_var into the same lane-dense slab via exact 0/1
    # selector matmuls (MXU has slack; the kernel is HBM-writeback bound).  The
    # selectors also mask var's padded-lane 1.0s (rows >= latent_dim are zero).
    packed = (out
              + jnp.dot(z,       Pz_ref[...],  preferred_element_type=jnp.float32)
              + jnp.dot(mean,    Pm_ref[...],  preferred_element_type=jnp.float32)
              + jnp.dot(var,     Pv_ref[...],  preferred_element_type=jnp.float32)
              + jnp.dot(log_var, Plv_ref[...], preferred_element_type=jnp.float32))
    slab_ref[...] = packed


# ---------------------------------------------------------------------------
# Host-side helpers (all batch-invariant preprocessing lives here)
# ---------------------------------------------------------------------------
def _cdiv(a, b):
    return -(-a // b)


def _round_up(a, m):
    return _cdiv(a, m) * m


def _pad2(a, rows, cols):
    r, c = a.shape
    return jnp.pad(a, ((0, rows - r), (0, cols - c)))


def _prep_rbf(c, w, in_p, out_p):
    """c: [O, D] centers, w: [1, O] widths -> (c.T * 2*iw, ||c||^2 * iw, iw) zero-padded."""
    c = c.astype(jnp.float32)
    w = w.astype(jnp.float32)
    iw = 1.0 / (2.0 * w * w)                                            # [1, O], >= 0
    cT = _pad2(c.T * (2.0 * iw), in_p, out_p)                           # [in_p, out_p]
    c2 = _pad2(jnp.sum(c * c, axis=1, keepdims=True).T * iw, 1, out_p)  # [1, out_p]
    iwp = _pad2(iw, 1, out_p)                                           # padded cols -> 0
    return cT, c2, iwp


def _prep_linear(W, b, in_p, out_p):
    """W: [in, out], b: [1, out] -> zero-padded to [in_p, out_p] / [1, out_p]."""
    return _pad2(W.astype(jnp.float32), in_p, out_p), _pad2(b.astype(jnp.float32), 1, out_p)


def _selector(src_rows, n_real, dst_cols, dst_off):
    """[src_rows, dst_cols] 0/1 matrix: row i (i < n_real) -> column dst_off + i."""
    P = jnp.zeros((src_rows, dst_cols), jnp.float32)
    idx = jnp.arange(n_real)
    return P.at[idx, dst_off + idx].set(1.0)


def _tensorcores_per_chip():
    """Best-effort TensorCores-per-chip (2 on v7x, 1 on v5e/v6e).

    Only used to decide whether splitting a small batch across grid steps buys
    parallelism; falls back to 1 (no forced split) if detection fails.
    """
    try:
        info = pltpu.get_tpu_info()
        for name in ("num_tensorcores", "tensorcores_per_chip", "num_cores",
                     "cores_per_chip", "core_count"):
            v = getattr(info, name, None)
            if isinstance(v, int) and v >= 1:
                return max(1, min(int(v), 2))
    except Exception:
        pass
    try:
        kind = jax.devices()[0].device_kind.lower()
        if "v7" in kind or "tpu7" in kind or "7x" in kind:
            return 2
    except Exception:
        pass
    return 1


# ---------------------------------------------------------------------------
# Wrapper
# ---------------------------------------------------------------------------
def vae_rbf_forward(x, eps, params, *, batch_tile=512):
    """x: [B, input_dim], eps: [B, latent_dim] standard-normal noise.

    batch_tile=512 keeps per-step VMEM a few MB (well under the 32 MiB scoped
    limit on v5e/v6e/v7x); v5e/v6e can also use 1024.
    """
    B, input_dim = x.shape
    latent_dim = eps.shape[1]
    hidden_dim = params["c_e1"].shape[0]
    output_dim = params["c_d2"].shape[0]

    LANE, SUB = 128, 8
    Dp = _round_up(input_dim, SUB)     # x lanes / cT_e1 sublanes (no 128-lane padding)
    Hp = _round_up(hidden_dim, LANE)   # hidden space, lane-dense
    Lg = _round_up(latent_dim, SUB)    # narrow latent space (eps/mean/var/z width)
    Op = _round_up(output_dim, LANE)   # decoder-RBF output space
    # Packed output slab: [out | z | mean | var | log_var] at exact element offsets.
    slab_w = _round_up(output_dim + 4 * latent_dim, LANE)

    # ---- generation-aware batch tiling ----
    cores = _tensorcores_per_chip()
    bt = int(batch_tile)
    if B <= bt:
        # Fits one tile: single grid step on 1-TC chips (v5e/v6e); split across
        # both TensorCores on v7x.
        bt = max(SUB, _round_up(_cdiv(B, cores), SUB))
    B_pad = _round_up(B, bt)
    steps = B_pad // bt
    if cores >= 2 and steps > 1 and steps % cores != 0:
        # Keep the "parallel" axis a multiple of the TC count so no core idles
        # on the last wave (one extra all-zero tile is cheap).
        steps = _round_up(steps, cores)
        B_pad = steps * bt
    grid = (steps,)

    f32 = jnp.float32
    x_p = jnp.zeros((B_pad, Dp), f32).at[:B, :input_dim].set(x.astype(f32))
    eps_p = jnp.zeros((B_pad, Lg), f32).at[:B, :latent_dim].set(eps.astype(f32))

    # ---- hoisted, batch-invariant parameter preprocessing ----
    cT_e1, c2_e1, iw_e1 = _prep_rbf(params["c_e1"], params["w_e1"], Dp, Hp)
    Wh, bh = _prep_linear(params["Wh"], params["bh"], Hp, Hp)
    cT_e2, c2_e2, iw_e2 = _prep_rbf(params["c_e2"], params["w_e2"], Hp, Hp)
    Wm, bm = _prep_linear(params["Wm"], params["bm"], Hp, Lg)
    Wlv, blv = _prep_linear(params["Wlv"], params["blv"], Hp, Lg)
    cT_d1, c2_d1, iw_d1 = _prep_rbf(params["c_d1"], params["w_d1"], Lg, Hp)
    Wdh, bdh = _prep_linear(params["Wdh"], params["bdh"], Hp, Hp)
    cT_d2, c2_d2, iw_d2 = _prep_rbf(params["c_d2"], params["w_d2"], Hp, Op)
    # Final linear padded to slab width -> `out` already lands at slab cols [0:output_dim].
    Wdo, bdo = _prep_linear(params["Wdo"], params["bdo"], Op, slab_w)
    # Selector matrices placing the narrow latent outputs at their slab offsets.
    Pz = _selector(Lg, latent_dim, slab_w, output_dim + 0 * latent_dim)
    Pm = _selector(Lg, latent_dim, slab_w, output_dim + 1 * latent_dim)
    Pv = _selector(Lg, latent_dim, slab_w, output_dim + 2 * latent_dim)
    Plv = _selector(Lg, latent_dim, slab_w, output_dim + 3 * latent_dim)

    param_arrays = [
        cT_e1, c2_e1, iw_e1, Wh, bh,
        cT_e2, c2_e2, iw_e2, Wm, bm, Wlv, blv,
        cT_d1, c2_d1, iw_d1, Wdh, bdh,
        cT_d2, c2_d2, iw_d2, Wdo, bdo,
        Pz, Pm, Pv, Plv,
    ]

    def batch_spec(d):
        return pl.BlockSpec((bt, d), lambda i: (i, 0))

    def full_spec(a):
        return pl.BlockSpec(a.shape, lambda i: (0, 0))

    in_specs = [batch_spec(Dp), batch_spec(Lg)] + [full_spec(a) for a in param_arrays]
    out_specs = pl.BlockSpec((bt, slab_w), lambda i: (i, 0))
    out_shape = jax.ShapeDtypeStruct((B_pad, slab_w), f32)

    slab = pl.pallas_call(
        _vae_rbf_kernel,
        out_shape=out_shape,
        grid_spec=pltpu.PrefetchScalarGridSpec(
            num_scalar_prefetch=0,
            grid=grid,
            in_specs=in_specs,
            out_specs=out_specs,
        ),
        compiler_params=pltpu.CompilerParams(
            dimension_semantics=("parallel",),
            vmem_limit_bytes=32 * 1024 * 1024,
        ),
    )(x_p, eps_p, *param_arrays)

    od, ld = output_dim, latent_dim
    out = slab[:B, 0:od]
    z = slab[:B, od:od + ld]
    mean = slab[:B, od + ld:od + 2 * ld]
    var = slab[:B, od + 2 * ld:od + 3 * ld]
    log_var = slab[:B, od + 3 * ld:od + 4 * ld]
    return out, z, mean, var, log_var


# ---------------------------------------------------------------------------
# Deterministic parameter init (synthetic; mirrors shapes from __init__)
# ---------------------------------------------------------------------------
def init_params(key, input_dim, hidden_dim, latent_dim, output_dim):
    keys = jax.random.split(key, 32)
    ki = iter(keys)

    def randn(shape):
        return jax.random.normal(next(ki), shape, dtype=jnp.float32)

    def linear_wb(in_dim, out_dim):
        # PyTorch-style uniform(-1/sqrt(in), 1/sqrt(in)); weight stored [in, out]
        bound = 1.0 / jnp.sqrt(jnp.float32(in_dim))
        W = jax.random.uniform(next(ki), (in_dim, out_dim), jnp.float32, -bound, bound)
        b = jax.random.uniform(next(ki), (1, out_dim), jnp.float32, -bound, bound)
        return W, b

    p = {}
    # Encoder
    p["c_e1"] = randn((hidden_dim, input_dim))
    p["w_e1"] = randn((1, hidden_dim))
    p["Wh"], p["bh"] = linear_wb(hidden_dim, hidden_dim)
    p["c_e2"] = randn((hidden_dim, hidden_dim))
    p["w_e2"] = randn((1, hidden_dim))
    p["Wm"], p["bm"] = linear_wb(hidden_dim, latent_dim)
    p["Wlv"], p["blv"] = linear_wb(hidden_dim, latent_dim)
    # Decoder
    p["c_d1"] = randn((hidden_dim, latent_dim))
    p["w_d1"] = randn((1, hidden_dim))
    p["Wdh"], p["bdh"] = linear_wb(hidden_dim, hidden_dim)
    p["c_d2"] = randn((output_dim, hidden_dim))
    p["w_d2"] = randn((1, output_dim))
    p["Wdo"], p["bdo"] = linear_wb(output_dim, output_dim)
    return p


# ---------------------------------------------------------------------------
# Pure-JAX reference (direct broadcast form, matching torch semantics)
# ---------------------------------------------------------------------------
def vae_rbf_reference(x, eps, p):
    def rbf(x, c, w):
        diff = x[:, None, :] - c[None, :, :]
        dist = jnp.sqrt(jnp.sum(diff * diff, axis=2))
        alpha = dist / jnp.sqrt(2.0 * w * w)
        return jnp.exp(-(alpha ** 2))

    def linear(x, W, b):
        return x @ W + b

    h = rbf(x, p["c_e1"], p["w_e1"])
    h = jnp.tanh(linear(h, p["Wh"], p["bh"]))
    h = rbf(h, p["c_e2"], p["w_e2"])
    th = jnp.tanh(h)
    mean = linear(th, p["Wm"], p["bm"])
    log_var = linear(th, p["Wlv"], p["blv"])
    var = jnp.exp(0.5 * log_var)
    z = mean + eps * var
    d = rbf(z, p["c_d1"], p["w_d1"])
    d = jnp.tanh(linear(d, p["Wdh"], p["bdh"]))
    d = rbf(d, p["c_d2"], p["w_d2"])
    out = linear(jnp.tanh(d), p["Wdo"], p["bdo"])
    return out, z, mean, var, log_var


# ---------------------------------------------------------------------------
if __name__ == "__main__":
    input_dim, hidden_dim, latent_dim, output_dim = 16, 32, 8, 16
    B = 256  # fits one 512-row tile (v5e/v6e: 1 grid step; v7x: split across 2 TCs)

    key = jax.random.PRNGKey(0)
    k_x, k_eps, k_p = jax.random.split(key, 3)

    x = jax.random.normal(k_x, (B, input_dim), dtype=jnp.float32)
    eps = jax.random.normal(k_eps, (B, latent_dim), dtype=jnp.float32)
    params = init_params(k_p, input_dim, hidden_dim, latent_dim, output_dim)

    outs = vae_rbf_forward(x, eps, params)
    outs = jax.block_until_ready(outs)

    refs = vae_rbf_reference(x, eps, params)
    for got, ref in zip(outs, refs):
        assert got.shape == ref.shape and got.dtype == ref.dtype
        assert jnp.allclose(got, ref, rtol=1e-3, atol=1e-3), "mismatch vs reference"

    print("KERNEL_OK")
</pallas_src>

<mosaic_0001>
module attributes {stable_mosaic.version = 11 : i64} {
  func.func @_vae_rbf_kernel(%arg0: i32, %arg1: memref<256x16xf32, #tpu.memory_space<vmem>>, %arg2: memref<256x8xf32, #tpu.memory_space<vmem>>, %arg3: memref<16x128xf32, #tpu.memory_space<vmem>>, %arg4: memref<1x128xf32, #tpu.memory_space<vmem>>, %arg5: memref<1x128xf32, #tpu.memory_space<vmem>>, %arg6: memref<128x128xf32, #tpu.memory_space<vmem>>, %arg7: memref<1x128xf32, #tpu.memory_space<vmem>>, %arg8: memref<128x128xf32, #tpu.memory_space<vmem>>, %arg9: memref<1x128xf32, #tpu.memory_space<vmem>>, %arg10: memref<1x128xf32, #tpu.memory_space<vmem>>, %arg11: memref<128x8xf32, #tpu.memory_space<vmem>>, %arg12: memref<1x8xf32, #tpu.memory_space<vmem>>, %arg13: memref<128x8xf32, #tpu.memory_space<vmem>>, %arg14: memref<1x8xf32, #tpu.memory_space<vmem>>, %arg15: memref<8x128xf32, #tpu.memory_space<vmem>>, %arg16: memref<1x128xf32, #tpu.memory_space<vmem>>, %arg17: memref<1x128xf32, #tpu.memory_space<vmem>>, %arg18: memref<128x128xf32, #tpu.memory_space<vmem>>, %arg19: memref<1x128xf32, #tpu.memory_space<vmem>>, %arg20: memref<128x128xf32, #tpu.memory_space<vmem>>, %arg21: memref<1x128xf32, #tpu.memory_space<vmem>>, %arg22: memref<1x128xf32, #tpu.memory_space<vmem>>, %arg23: memref<128x128xf32, #tpu.memory_space<vmem>>, %arg24: memref<1x128xf32, #tpu.memory_space<vmem>>, %arg25: memref<8x128xf32, #tpu.memory_space<vmem>>, %arg26: memref<8x128xf32, #tpu.memory_space<vmem>>, %arg27: memref<8x128xf32, #tpu.memory_space<vmem>>, %arg28: memref<8x128xf32, #tpu.memory_space<vmem>>, %arg29: memref<256x128xf32, #tpu.memory_space<vmem>>) attributes {dimension_semantics = [#tpu.dimension_semantics<parallel>], iteration_bounds = array<i64: 1>, scalar_prefetch = 0 : i64, scratch_operands = 0 : i64, tpu.core_type = #tpu.core_type<tc>, window_params = [{transform_indices = @transform_0, window_bounds = array<i64: 256, 16>}, {transform_indices = @transform_1, window_bounds = array<i64: 256, 8>}, {pipeline_mode = #tpu.pipeline_mode<synchronous>, transform_indices = @transform_2, window_bounds = array<i64: 16, 128>}, {pipeline_mode = #tpu.pipeline_mode<synchronous>, transform_indices = @transform_3, window_bounds = array<i64: 1, 128>}, {pipeline_mode = #tpu.pipeline_mode<synchronous>, transform_indices = @transform_4, window_bounds = array<i64: 1, 128>}, {pipeline_mode = #tpu.pipeline_mode<synchronous>, transform_indices = @transform_5, window_bounds = array<i64: 128, 128>}, {pipeline_mode = #tpu.pipeline_mode<synchronous>, transform_indices = @transform_6, window_bounds = array<i64: 1, 128>}, {pipeline_mode = #tpu.pipeline_mode<synchronous>, transform_indices = @transform_7, window_bounds = array<i64: 128, 128>}, {pipeline_mode = #tpu.pipeline_mode<synchronous>, transform_indices = @transform_8, window_bounds = array<i64: 1, 128>}, {pipeline_mode = #tpu.pipeline_mode<synchronous>, transform_indices = @transform_9, window_bounds = array<i64: 1, 128>}, {pipeline_mode = #tpu.pipeline_mode<synchronous>, transform_indices = @transform_10, window_bounds = array<i64: 128, 8>}, {pipeline_mode = #tpu.pipeline_mode<synchronous>, transform_indices = @transform_11, window_bounds = array<i64: 1, 8>}, {pipeline_mode = #tpu.pipeline_mode<synchronous>, transform_indices = @transform_12, window_bounds = array<i64: 128, 8>}, {pipeline_mode = #tpu.pipeline_mode<synchronous>, transform_indices = @transform_13, window_bounds = array<i64: 1, 8>}, {pipeline_mode = #tpu.pipeline_mode<synchronous>, transform_indices = @transform_14, window_bounds = array<i64: 8, 128>}, {pipeline_mode = #tpu.pipeline_mode<synchronous>, transform_indices = @transform_15, window_bounds = array<i64: 1, 128>}, {pipeline_mode = #tpu.pipeline_mode<synchronous>, transform_indices = @transform_16, window_bounds = array<i64: 1, 128>}, {pipeline_mode = #tpu.pipeline_mode<synchronous>, transform_indices = @transform_17, window_bounds = array<i64: 128, 128>}, {pipeline_mode = #tpu.pipeline_mode<synchronous>, transform_indices = @transform_18, window_bounds = array<i64: 1, 128>}, {pipeline_mode = #tpu.pipeline_mode<synchronous>, transform_indices = @transform_19, window_bounds = array<i64: 128, 128>}, {pipeline_mode = #tpu.pipeline_mode<synchronous>, transform_indices = @transform_20, window_bounds = array<i64: 1, 128>}, {pipeline_mode = #tpu.pipeline_mode<synchronous>, transform_indices = @transform_21, window_bounds = array<i64: 1, 128>}, {pipeline_mode = #tpu.pipeline_mode<synchronous>, transform_indices = @transform_22, window_bounds = array<i64: 128, 128>}, {pipeline_mode = #tpu.pipeline_mode<synchronous>, transform_indices = @transform_23, window_bounds = array<i64: 1, 128>}, {pipeline_mode = #tpu.pipeline_mode<synchronous>, transform_indices = @transform_24, window_bounds = array<i64: 8, 128>}, {pipeline_mode = #tpu.pipeline_mode<synchronous>, transform_indices = @transform_25, window_bounds = array<i64: 8, 128>}, {pipeline_mode = #tpu.pipeline_mode<synchronous>, transform_indices = @transform_26, window_bounds = array<i64: 8, 128>}, {pipeline_mode = #tpu.pipeline_mode<synchronous>, transform_indices = @transform_27, window_bounds = array<i64: 8, 128>}, {transform_indices = @transform_28, window_bounds = array<i64: 256, 128>}]} {
    %c0 = arith.constant 0 : index
    %c0_0 = arith.constant 0 : index
    %0 = vector.load %arg1[%c0, %c0_0] : memref<256x16xf32, #tpu.memory_space<vmem>>, vector<256x16xf32>
    %1 = arith.mulf %0, %0 : vector<256x16xf32>
    %cst = arith.constant dense<0.000000e+00> : vector<256xf32>
    %2 = vector.multi_reduction <add>, %1, %cst [1] : vector<256x16xf32> to vector<256xf32>
    %3 = vector.shape_cast %2 : vector<256xf32> to vector<256x1xf32>
    %c0_1 = arith.constant 0 : index
    %c0_2 = arith.constant 0 : index
    %4 = vector.load %arg3[%c0_1, %c0_2] : memref<16x128xf32, #tpu.memory_space<vmem>>, vector<16x128xf32>
    %cst_3 = arith.constant dense<0.000000e+00> : vector<256x128xf32>
    %5 = tpu.matmul %0, %4, %cst_3 {dimension_numbers = #tpu.dot_dimension_numbers<[1], [0], [0], [1], [0, 0, 1, 1], [], []>} : vector<256x16xf32>, vector<16x128xf32>, vector<256x128xf32> -> vector<256x128xf32>
    %c0_4 = arith.constant 0 : index
    %c0_5 = arith.constant 0 : index
    %6 = vector.load %arg5[%c0_4, %c0_5] : memref<1x128xf32, #tpu.memory_space<vmem>>, vector<1x128xf32>
    %7 = vector.broadcast %3 : vector<256x1xf32> to vector<256x128xf32>
    %8 = vector.broadcast %6 : vector<1x128xf32> to vector<256x128xf32>
    %9 = arith.mulf %7, %8 : vector<256x128xf32>
    %10 = arith.subf %9, %5 : vector<256x128xf32>
    %c0_6 = arith.constant 0 : index
    %c0_7 = arith.constant 0 : index
    %11 = vector.load %arg4[%c0_6, %c0_7] : memref<1x128xf32, #tpu.memory_space<vmem>>, vector<1x128xf32>
    %12 = vector.broadcast %11 : vector<1x128xf32> to vector<256x128xf32>
    %13 = arith.addf %10, %12 : vector<256x128xf32>
    %cst_8 = arith.constant 0.000000e+00 : f32
    %14 = vector.broadcast %cst_8 : f32 to vector<256x128xf32>
    %15 = arith.maximumf %13, %14 : vector<256x128xf32>
    %cst_9 = arith.constant 0.000000e+00 : f32
    %16 = vector.broadcast %cst_9 : f32 to vector<256x128xf32>
    %17 = arith.subf %16, %15 : vector<256x128xf32>
    %18 = math.exp %17 : vector<256x128xf32>
    %c0_10 = arith.constant 0 : index
    %c0_11 = arith.constant 0 : index
    %19 = vector.load %arg6[%c0_10, %c0_11] : memref<128x128xf32, #tpu.memory_space<vmem>>, vector<128x128xf32>
    %cst_12 = arith.constant dense<0.000000e+00> : vector<256x128xf32>
    %20 = tpu.matmul %18, %19, %cst_12 {dimension_numbers = #tpu.dot_dimension_numbers<[1], [0], [0], [1], [0, 0, 1, 1], [], []>} : vector<256x128xf32>, vector<128x128xf32>, vector<256x128xf32> -> vector<256x128xf32>
    %c0_13 = arith.constant 0 : index
    %c0_14 = arith.constant 0 : index
    %21 = vector.load %arg7[%c0_13, %c0_14] : memref<1x128xf32, #tpu.memory_space<vmem>>, vector<1x128xf32>
    %22 = vector.broadcast %21 : vector<1x128xf32> to vector<256x128xf32>
    %23 = arith.addf %20, %22 : vector<256x128xf32>
    %24 = math.tanh %23 : vector<256x128xf32>
    %25 = arith.mulf %24, %24 : vector<256x128xf32>
    %cst_15 = arith.constant dense<0.000000e+00> : vector<256xf32>
    %26 = vector.multi_reduction <add>, %25, %cst_15 [1] : vector<256x128xf32> to vector<256xf32>
    %27 = vector.shape_cast %26 : vector<256xf32> to vector<256x1xf32>
    %c0_16 = arith.constant 0 : index
    %c0_17 = arith.constant 0 : index
    %28 = vector.load %arg8[%c0_16, %c0_17] : memref<128x128xf32, #tpu.memory_space<vmem>>, vector<128x128xf32>
    %cst_18 = arith.constant dense<0.000000e+00> : vector<256x128xf32>
    %29 = tpu.matmul %24, %28, %cst_18 {dimension_numbers = #tpu.dot_dimension_numbers<[1], [0], [0], [1], [0, 0, 1, 1], [], []>} : vector<256x128xf32>, vector<128x128xf32>, vector<256x128xf32> -> vector<256x128xf32>
    %c0_19 = arith.constant 0 : index
    %c0_20 = arith.constant 0 : index
    %30 = vector.load %arg10[%c0_19, %c0_20] : memref<1x128xf32, #tpu.memory_space<vmem>>, vector<1x128xf32>
    %31 = vector.broadcast %27 : vector<256x1xf32> to vector<256x128xf32>
    %32 = vector.broadcast %30 : vector<1x128xf32> to vector<256x128xf32>
    %33 = arith.mulf %31, %32 : vector<256x128xf32>
    %34 = arith.subf %33, %29 : vector<256x128xf32>
    %c0_21 = arith.constant 0 : index
    %c0_22 = arith.constant 0 : index
    %35 = vector.load %arg9[%c0_21, %c0_22] : memref<1x128xf32, #tpu.memory_space<vmem>>, vector<1x128xf32>
    %36 = vector.broadcast %35 : vector<1x128xf32> to vector<256x128xf32>
    %37 = arith.addf %34, %36 : vector<256x128xf32>
    %cst_23 = arith.constant 0.000000e+00 : f32
    %38 = vector.broadcast %cst_23 : f32 to vector<256x128xf32>
    %39 = arith.maximumf %37, %38 : vector<256x128xf32>
    %cst_24 = arith.constant 0.000000e+00 : f32
    %40 = vector.broadcast %cst_24 : f32 to vector<256x128xf32>
    %41 = arith.subf %40, %39 : vector<256x128xf32>
    %42 = math.exp %41 : vector<256x128xf32>
    %43 = math.tanh %42 : vector<256x128xf32>
    %c0_25 = arith.constant 0 : index
    %c0_26 = arith.constant 0 : index
    %44 = vector.load %arg11[%c0_25, %c0_26] : memref<128x8xf32, #tpu.memory_space<vmem>>, vector<128x8xf32>
    %cst_27 = arith.constant dense<0.000000e+00> : vector<256x8xf32>
    %45 = tpu.matmul %43, %44, %cst_27 {dimension_numbers = #tpu.dot_dimension_numbers<[1], [0], [0], [1], [0, 0, 1, 1], [], []>} : vector<256x128xf32>, vector<128x8xf32>, vector<256x8xf32> -> vector<256x8xf32>
    %c0_28 = arith.constant 0 : index
    %c0_29 = arith.constant 0 : index
    %46 = vector.load %arg12[%c0_28, %c0_29] : memref<1x8xf32, #tpu.memory_space<vmem>>, vector<1x8xf32>
    %47 = vector.broadcast %46 : vector<1x8xf32> to vector<256x8xf32>
    %48 = arith.addf %45, %47 : vector<256x8xf32>
    %c0_30 = arith.constant 0 : index
    %c0_31 = arith.constant 0 : index
    %49 = vector.load %arg13[%c0_30, %c0_31] : memref<128x8xf32, #tpu.memory_space<vmem>>, vector<128x8xf32>
    %cst_32 = arith.constant dense<0.000000e+00> : vector<256x8xf32>
    %50 = tpu.matmul %43, %49, %cst_32 {dimension_numbers = #tpu.dot_dimension_numbers<[1], [0], [0], [1], [0, 0, 1, 1], [], []>} : vector<256x128xf32>, vector<128x8xf32>, vector<256x8xf32> -> vector<256x8xf32>
    %c0_33 = arith.constant 0 : index
    %c0_34 = arith.constant 0 : index
    %51 = vector.load %arg14[%c0_33, %c0_34] : memref<1x8xf32, #tpu.memory_space<vmem>>, vector<1x8xf32>
    %52 = vector.broadcast %51 : vector<1x8xf32> to vector<256x8xf32>
    %53 = arith.addf %50, %52 : vector<256x8xf32>
    %cst_35 = arith.constant 5.000000e-01 : f32
    %54 = vector.broadcast %cst_35 : f32 to vector<256x8xf32>
    %55 = arith.mulf %54, %53 : vector<256x8xf32>
    %56 = math.exp %55 : vector<256x8xf32>
    %c0_36 = arith.constant 0 : index
    %c0_37 = arith.constant 0 : index
    %57 = vector.load %arg2[%c0_36, %c0_37] : memref<256x8xf32, #tpu.memory_space<vmem>>, vector<256x8xf32>
    %58 = arith.mulf %57, %56 : vector<256x8xf32>
    %59 = arith.addf %48, %58 : vector<256x8xf32>
    %60 = arith.mulf %59, %59 : vector<256x8xf32>
    %cst_38 = arith.constant dense<0.000000e+00> : vector<256xf32>
    %61 = vector.multi_reduction <add>, %60, %cst_38 [1] : vector<256x8xf32> to vector<256xf32>
    %62 = vector.shape_cast %61 : vector<256xf32> to vector<256x1xf32>
    %c0_39 = arith.constant 0 : index
    %c0_40 = arith.constant 0 : index
    %63 = vector.load %arg15[%c0_39, %c0_40] : memref<8x128xf32, #tpu.memory_space<vmem>>, vector<8x128xf32>
    %cst_41 = arith.constant dense<0.000000e+00> : vector<256x128xf32>
    %64 = tpu.matmul %59, %63, %cst_41 {dimension_numbers = #tpu.dot_dimension_numbers<[1], [0], [0], [1], [0, 0, 1, 1], [], []>} : vector<256x8xf32>, vector<8x128xf32>, vector<256x128xf32> -> vector<256x128xf32>
    %c0_42 = arith.constant 0 : index
    %c0_43 = arith.constant 0 : index
    %65 = vector.load %arg17[%c0_42, %c0_43] : memref<1x128xf32, #tpu.memory_space<vmem>>, vector<1x128xf32>
    %66 = vector.broadcast %62 : vector<256x1xf32> to vector<256x128xf32>
    %67 = vector.broadcast %65 : vector<1x128xf32> to vector<256x128xf32>
    %68 = arith.mulf %66, %67 : vector<256x128xf32>
    %69 = arith.subf %68, %64 : vector<256x128xf32>
    %c0_44 = arith.constant 0 : index
    %c0_45 = arith.constant 0 : index
    %70 = vector.load %arg16[%c0_44, %c0_45] : memref<1x128xf32, #tpu.memory_space<vmem>>, vector<1x128xf32>
    %71 = vector.broadcast %70 : vector<1x128xf32> to vector<256x128xf32>
    %72 = arith.addf %69, %71 : vector<256x128xf32>
    %cst_46 = arith.constant 0.000000e+00 : f32
    %73 = vector.broadcast %cst_46 : f32 to vector<256x128xf32>
    %74 = arith.maximumf %72, %73 : vector<256x128xf32>
    %cst_47 = arith.constant 0.000000e+00 : f32
    %75 = vector.broadcast %cst_47 : f32 to vector<256x128xf32>
    %76 = arith.subf %75, %74 : vector<256x128xf32>
    %77 = math.exp %76 : vector<256x128xf32>
    %c0_48 = arith.constant 0 : index
    %c0_49 = arith.constant 0 : index
    %78 = vector.load %arg18[%c0_48, %c0_49] : memref<128x128xf32, #tpu.memory_space<vmem>>, vector<128x128xf32>
    %cst_50 = arith.constant dense<0.000000e+00> : vector<256x128xf32>
    %79 = tpu.matmul %77, %78, %cst_50 {dimension_numbers = #tpu.dot_dimension_numbers<[1], [0], [0], [1], [0, 0, 1, 1], [], []>} : vector<256x128xf32>, vector<128x128xf32>, vector<256x128xf32> -> vector<256x128xf32>
    %c0_51 = arith.constant 0 : index
    %c0_52 = arith.constant 0 : index
    %80 = vector.load %arg19[%c0_51, %c0_52] : memref<1x128xf32, #tpu.memory_space<vmem>>, vector<1x128xf32>
    %81 = vector.broadcast %80 : vector<1x128xf32> to vector<256x128xf32>
    %82 = arith.addf %79, %81 : vector<256x128xf32>
    %83 = math.tanh %82 : vector<256x128xf32>
    %84 = arith.mulf %83, %83 : vector<256x128xf32>
    %cst_53 = arith.constant dense<0.000000e+00> : vector<256xf32>
    %85 = vector.multi_reduction <add>, %84, %cst_53 [1] : vector<256x128xf32> to vector<256xf32>
    %86 = vector.shape_cast %85 : vector<256xf32> to vector<256x1xf32>
    %c0_54 = arith.constant 0 : index
    %c0_55 = arith.constant 0 : index
    %87 = vector.load %arg20[%c0_54, %c0_55] : memref<128x128xf32, #tpu.memory_space<vmem>>, vector<128x128xf32>
    %cst_56 = arith.constant dense<0.000000e+00> : vector<256x128xf32>
    %88 = tpu.matmul %83, %87, %cst_56 {dimension_numbers = #tpu.dot_dimension_numbers<[1], [0], [0], [1], [0, 0, 1, 1], [], []>} : vector<256x128xf32>, vector<128x128xf32>, vector<256x128xf32> -> vector<256x128xf32>
    %c0_57 = arith.constant 0 : index
    %c0_58 = arith.constant 0 : index
    %89 = vector.load %arg22[%c0_57, %c0_58] : memref<1x128xf32, #tpu.memory_space<vmem>>, vector<1x128xf32>
    %90 = vector.broadcast %86 : vector<256x1xf32> to vector<256x128xf32>
    %91 = vector.broadcast %89 : vector<1x128xf32> to vector<256x128xf32>
    %92 = arith.mulf %90, %91 : vector<256x128xf32>
    %93 = arith.subf %92, %88 : vector<256x128xf32>
    %c0_59 = arith.constant 0 : index
    %c0_60 = arith.constant 0 : index
    %94 = vector.load %arg21[%c0_59, %c0_60] : memref<1x128xf32, #tpu.memory_space<vmem>>, vector<1x128xf32>
    %95 = vector.broadcast %94 : vector<1x128xf32> to vector<256x128xf32>
    %96 = arith.addf %93, %95 : vector<256x128xf32>
    %cst_61 = arith.constant 0.000000e+00 : f32
    %97 = vector.broadcast %cst_61 : f32 to vector<256x128xf32>
    %98 = arith.maximumf %96, %97 : vector<256x128xf32>
    %cst_62 = arith.constant 0.000000e+00 : f32
    %99 = vector.broadcast %cst_62 : f32 to vector<256x128xf32>
    %100 = arith.subf %99, %98 : vector<256x128xf32>
    %101 = math.exp %100 : vector<256x128xf32>
    %102 = math.tanh %101 : vector<256x128xf32>
    %c0_63 = arith.constant 0 : index
    %c0_64 = arith.constant 0 : index
    %103 = vector.load %arg23[%c0_63, %c0_64] : memref<128x128xf32, #tpu.memory_space<vmem>>, vector<128x128xf32>
    %cst_65 = arith.constant dense<0.000000e+00> : vector<256x128xf32>
    %104 = tpu.matmul %102, %103, %cst_65 {dimension_numbers = #tpu.dot_dimension_numbers<[1], [0], [0], [1], [0, 0, 1, 1], [], []>} : vector<256x128xf32>, vector<128x128xf32>, vector<256x128xf32> -> vector<256x128xf32>
    %c0_66 = arith.constant 0 : index
    %c0_67 = arith.constant 0 : index
    %105 = vector.load %arg24[%c0_66, %c0_67] : memref<1x128xf32, #tpu.memory_space<vmem>>, vector<1x128xf32>
    %106 = vector.broadcast %105 : vector<1x128xf32> to vector<256x128xf32>
    %107 = arith.addf %104, %106 : vector<256x128xf32>
    %c0_68 = arith.constant 0 : index
    %c0_69 = arith.constant 0 : index
    %108 = vector.load %arg25[%c0_68, %c0_69] : memref<8x128xf32, #tpu.memory_space<vmem>>, vector<8x128xf32>
    %cst_70 = arith.constant dense<0.000000e+00> : vector<256x128xf32>
    %109 = tpu.matmul %59, %108, %cst_70 {dimension_numbers = #tpu.dot_dimension_numbers<[1], [0], [0], [1], [0, 0, 1, 1], [], []>} : vector<256x8xf32>, vector<8x128xf32>, vector<256x128xf32> -> vector<256x128xf32>
    %110 = arith.addf %107, %109 : vector<256x128xf32>
    %c0_71 = arith.constant 0 : index
    %c0_72 = arith.constant 0 : index
    %111 = vector.load %arg26[%c0_71, %c0_72] : memref<8x128xf32, #tpu.memory_space<vmem>>, vector<8x128xf32>
    %cst_73 = arith.constant dense<0.000000e+00> : vector<256x128xf32>
    %112 = tpu.matmul %48, %111, %cst_73 {dimension_numbers = #tpu.dot_dimension_numbers<[1], [0], [0], [1], [0, 0, 1, 1], [], []>} : vector<256x8xf32>, vector<8x128xf32>, vector<256x128xf32> -> vector<256x128xf32>
    %113 = arith.addf %110, %112 : vector<256x128xf32>
    %c0_74 = arith.constant 0 : index
    %c0_75 = arith.constant 0 : index
    %114 = vector.load %arg27[%c0_74, %c0_75] : memref<8x128xf32, #tpu.memory_space<vmem>>, vector<8x128xf32>
    %cst_76 = arith.constant dense<0.000000e+00> : vector<256x128xf32>
    %115 = tpu.matmul %56, %114, %cst_76 {dimension_numbers = #tpu.dot_dimension_numbers<[1], [0], [0], [1], [0, 0, 1, 1], [], []>} : vector<256x8xf32>, vector<8x128xf32>, vector<256x128xf32> -> vector<256x128xf32>
    %116 = arith.addf %113, %115 : vector<256x128xf32>
    %c0_77 = arith.constant 0 : index
    %c0_78 = arith.constant 0 : index
    %117 = vector.load %arg28[%c0_77, %c0_78] : memref<8x128xf32, #tpu.memory_space<vmem>>, vector<8x128xf32>
    %cst_79 = arith.constant dense<0.000000e+00> : vector<256x128xf32>
    %118 = tpu.matmul %53, %117, %cst_79 {dimension_numbers = #tpu.dot_dimension_numbers<[1], [0], [0], [1], [0, 0, 1, 1], [], []>} : vector<256x8xf32>, vector<8x128xf32>, vector<256x128xf32> -> vector<256x128xf32>
    %119 = arith.addf %116, %118 : vector<256x128xf32>
    %c0_80 = arith.constant 0 : index
    %c0_81 = arith.constant 0 : index
    %120 = vector.load %arg29[%c0_80, %c0_81] : memref<256x128xf32, #tpu.memory_space<vmem>>, vector<256x128xf32>
    tpu.vector_store %arg29[%c0_80, %c0_81], %119 {strides = array<i32>} : memref<256x128xf32, #tpu.memory_space<vmem>>, vector<256x128xf32>,
    return
  }
  func.func @transform_0(%arg0: i32) -> (i32, i32) {
    %c0_i32 = arith.constant 0 : i32
    %c0_i32_0 = arith.constant 0 : i32
    return %arg0, %c0_i32 : i32, i32
  }
  func.func @transform_1(%arg0: i32) -> (i32, i32) {
    %c0_i32 = arith.constant 0 : i32
    %c0_i32_0 = arith.constant 0 : i32
    return %arg0, %c0_i32 : i32, i32
  }
  func.func @transform_2(%arg0: i32) -> (i32, i32) {
    %c0_i32 = arith.constant 0 : i32
    %c0_i32_0 = arith.constant 0 : i32
    %c0_i32_1 = arith.constant 0 : i32
    return %c0_i32, %c0_i32_0 : i32, i32
  }
  func.func @transform_3(%arg0: i32) -> (i32, i32) {
    %c0_i32 = arith.constant 0 : i32
    %c0_i32_0 = arith.constant 0 : i32
    %c0_i32_1 = arith.constant 0 : i32
    return %c0_i32, %c0_i32_0 : i32, i32
  }
  func.func @transform_4(%arg0: i32) -> (i32, i32) {
    %c0_i32 = arith.constant 0 : i32
    %c0_i32_0 = arith.constant 0 : i32
    %c0_i32_1 = arith.constant 0 : i32
    return %c0_i32, %c0_i32_0 : i32, i32
  }
  func.func @transform_5(%arg0: i32) -> (i32, i32) {
    %c0_i32 = arith.constant 0 : i32
    %c0_i32_0 = arith.constant 0 : i32
    %c0_i32_1 = arith.constant 0 : i32
    return %c0_i32, %c0_i32_0 : i32, i32
  }
  func.func @transform_6(%arg0: i32) -> (i32, i32) {
    %c0_i32 = arith.constant 0 : i32
    %c0_i32_0 = arith.constant 0 : i32
    %c0_i32_1 = arith.constant 0 : i32
    return %c0_i32, %c0_i32_0 : i32, i32
  }
  func.func @transform_7(%arg0: i32) -> (i32, i32) {
    %c0_i32 = arith.constant 0 : i32
    %c0_i32_0 = arith.constant 0 : i32
    %c0_i32_1 = arith.constant 0 : i32
    return %c0_i32, %c0_i32_0 : i32, i32
  }
  func.func @transform_8(%arg0: i32) -> (i32, i32) {
    %c0_i32 = arith.constant 0 : i32
    %c0_i32_0 = arith.constant 0 : i32
    %c0_i32_1 = arith.constant 0 : i32
    return %c0_i32, %c0_i32_0 : i32, i32
  }
  func.func @transform_9(%arg0: i32) -> (i32, i32) {
    %c0_i32 = arith.constant 0 : i32
    %c0_i32_0 = arith.constant 0 : i32
    %c0_i32_1 = arith.constant 0 : i32
    return %c0_i32, %c0_i32_0 : i32, i32
  }
  func.func @transform_10(%arg0: i32) -> (i32, i32) {
    %c0_i32 = arith.constant 0 : i32
    %c0_i32_0 = arith.constant 0 : i32
    %c0_i32_1 = arith.constant 0 : i32
    return %c0_i32, %c0_i32_0 : i32, i32
  }
  func.func @transform_11(%arg0: i32) -> (i32, i32) {
    %c0_i32 = arith.constant 0 : i32
    %c0_i32_0 = arith.constant 0 : i32
    %c0_i32_1 = arith.constant 0 : i32
    return %c0_i32, %c0_i32_0 : i32, i32
  }
  func.func @transform_12(%arg0: i32) -> (i32, i32) {
    %c0_i32 = arith.constant 0 : i32
    %c0_i32_0 = arith.constant 0 : i32
    %c0_i32_1 = arith.constant 0 : i32
    return %c0_i32, %c0_i32_0 : i32, i32
  }
  func.func @transform_13(%arg0: i32) -> (i32, i32) {
    %c0_i32 = arith.constant 0 : i32
    %c0_i32_0 = arith.constant 0 : i32
    %c0_i32_1 = arith.constant 0 : i32
    return %c0_i32, %c0_i32_0 : i32, i32
  }
  func.func @transform_14(%arg0: i32) -> (i32, i32) {
    %c0_i32 = arith.constant 0 : i32
    %c0_i32_0 = arith.constant 0 : i32
    %c0_i32_1 = arith.constant 0 : i32
    return %c0_i32, %c0_i32_0 : i32, i32
  }
  func.func @transform_15(%arg0: i32) -> (i32, i32) {
    %c0_i32 = arith.constant 0 : i32
    %c0_i32_0 = arith.constant 0 : i32
    %c0_i32_1 = arith.constant 0 : i32
    return %c0_i32, %c0_i32_0 : i32, i32
  }
  func.func @transform_16(%arg0: i32) -> (i32, i32) {
    %c0_i32 = arith.constant 0 : i32
    %c0_i32_0 = arith.constant 0 : i32
    %c0_i32_1 = arith.constant 0 : i32
    return %c0_i32, %c0_i32_0 : i32, i32
  }
  func.func @transform_17(%arg0: i32) -> (i32, i32) {
    %c0_i32 = arith.constant 0 : i32
    %c0_i32_0 = arith.constant 0 : i32
    %c0_i32_1 = arith.constant 0 : i32
    return %c0_i32, %c0_i32_0 : i32, i32
  }
  func.func @transform_18(%arg0: i32) -> (i32, i32) {
    %c0_i32 = arith.constant 0 : i32
    %c0_i32_0 = arith.constant 0 : i32
    %c0_i32_1 = arith.constant 0 : i32
    return %c0_i32, %c0_i32_0 : i32, i32
  }
  func.func @transform_19(%arg0: i32) -> (i32, i32) {
    %c0_i32 = arith.constant 0 : i32
    %c0_i32_0 = arith.constant 0 : i32
    %c0_i32_1 = arith.constant 0 : i32
    return %c0_i32, %c0_i32_0 : i32, i32
  }
  func.func @transform_20(%arg0: i32) -> (i32, i32) {
    %c0_i32 = arith.constant 0 : i32
    %c0_i32_0 = arith.constant 0 : i32
    %c0_i32_1 = arith.constant 0 : i32
    return %c0_i32, %c0_i32_0 : i32, i32
  }
  func.func @transform_21(%arg0: i32) -> (i32, i32) {
    %c0_i32 = arith.constant 0 : i32
    %c0_i32_0 = arith.constant 0 : i32
    %c0_i32_1 = arith.constant 0 : i32
    return %c0_i32, %c0_i32_0 : i32, i32
  }
  func.func @transform_22(%arg0: i32) -> (i32, i32) {
    %c0_i32 = arith.constant 0 : i32
    %c0_i32_0 = arith.constant 0 : i32
    %c0_i32_1 = arith.constant 0 : i32
    return %c0_i32, %c0_i32_0 : i32, i32
  }
  func.func @transform_23(%arg0: i32) -> (i32, i32) {
    %c0_i32 = arith.constant 0 : i32
    %c0_i32_0 = arith.constant 0 : i32
    %c0_i32_1 = arith.constant 0 : i32
    return %c0_i32, %c0_i32_0 : i32, i32
  }
  func.func @transform_24(%arg0: i32) -> (i32, i32) {
    %c0_i32 = arith.constant 0 : i32
    %c0_i32_0 = arith.constant 0 : i32
    %c0_i32_1 = arith.constant 0 : i32
    return %c0_i32, %c0_i32_0 : i32, i32
  }
  func.func @transform_25(%arg0: i32) -> (i32, i32) {
    %c0_i32 = arith.constant 0 : i32
    %c0_i32_0 = arith.constant 0 : i32
    %c0_i32_1 = arith.constant 0 : i32
    return %c0_i32, %c0_i32_0 : i32, i32
  }
  func.func @transform_26(%arg0: i32) -> (i32, i32) {
    %c0_i32 = arith.constant 0 : i32
    %c0_i32_0 = arith.constant 0 : i32
    %c0_i32_1 = arith.constant 0 : i32
    return %c0_i32, %c0_i32_0 : i32, i32
  }
  func.func @transform_27(%arg0: i32) -> (i32, i32) {
    %c0_i32 = arith.constant 0 : i32
    %c0_i32_0 = arith.constant 0 : i32
    %c0_i32_1 = arith.constant 0 : i32
    return %c0_i32, %c0_i32_0 : i32, i32
  }
  func.func @transform_28(%arg0: i32) -> (i32, i32) {
    %c0_i32 = arith.constant 0 : i32
    %c0_i32_0 = arith.constant 0 : i32
    return %arg0, %c0_i32 : i32, i32
  }
}

</mosaic_0001>

<llo_original>
// kernel: tpu_custom_call.1
$region0: #{tpu_custom_call.1}
  #allocation0 [shape = 'u32[]', space=smem, size = 0x4, offset = 0x4, fixed_abs, tag = 'smem constant byte address 0x4 - core index']
  #allocation1 [shape = 'u32[72,128]{1,0:T(1,128)}', space=vmem, size = 0x9000, scoped, tag = 'internal scratch']
  %s0 = inlined_call_operand.vmem [shape: f32[256,16], index: 0, kind: input, shape index: {}]
  %s1 = inlined_call_operand.vmem [shape: f32[256,8], index: 1, kind: input, shape index: {}]
  %s2 = inlined_call_operand.vmem [shape: f32[16,128], index: 2, kind: input, shape index: {}]
  %s3 = inlined_call_operand.vmem [shape: f32[1,128], index: 3, kind: input, shape index: {}]
  %s4 = inlined_call_operand.vmem [shape: f32[1,128], index: 4, kind: input, shape index: {}]
  %s5 = inlined_call_operand.vmem [shape: f32[128,128], index: 5, kind: input, shape index: {}]
  %s6 = inlined_call_operand.vmem [shape: f32[1,128], index: 6, kind: input, shape index: {}]
  %s7 = inlined_call_operand.vmem [shape: f32[128,128], index: 7, kind: input, shape index: {}]
  %s8 = inlined_call_operand.vmem [shape: f32[1,128], index: 8, kind: input, shape index: {}]
  %s9 = inlined_call_operand.vmem [shape: f32[1,128], index: 9, kind: input, shape index: {}]
  %s10 = inlined_call_operand.vmem [shape: f32[128,8], index: 10, kind: input, shape index: {}]
  %s11 = inlined_call_operand.vmem [shape: f32[1,8], index: 11, kind: input, shape index: {}]
  %s12 = inlined_call_operand.vmem [shape: f32[128,8], index: 12, kind: input, shape index: {}]
  %s13 = inlined_call_operand.vmem [shape: f32[1,8], index: 13, kind: input, shape index: {}]
  %s14 = inlined_call_operand.vmem [shape: f32[8,128], index: 14, kind: input, shape index: {}]
  %s15 = inlined_call_operand.vmem [shape: f32[1,128], index: 15, kind: input, shape index: {}]
  %s16 = inlined_call_operand.vmem [shape: f32[1,128], index: 16, kind: input, shape index: {}]
  %s17 = inlined_call_operand.vmem [shape: f32[128,128], index: 17, kind: input, shape index: {}]
  %s18 = inlined_call_operand.vmem [shape: f32[1,128], index: 18, kind: input, shape index: {}]
  %s19 = inlined_call_operand.vmem [shape: f32[128,128], index: 19, kind: input, shape index: {}]
  %s20 = inlined_call_operand.vmem [shape: f32[1,128], index: 20, kind: input, shape index: {}]
  %s21 = inlined_call_operand.vmem [shape: f32[1,128], index: 21, kind: input, shape index: {}]
  %s22 = inlined_call_operand.vmem [shape: f32[128,128], index: 22, kind: input, shape index: {}]
  %s23 = inlined_call_operand.vmem [shape: f32[1,128], index: 23, kind: input, shape index: {}]
  %s24 = inlined_call_operand.vmem [shape: f32[8,128], index: 24, kind: input, shape index: {}]
  %s25 = inlined_call_operand.vmem [shape: f32[8,128], index: 25, kind: input, shape index: {}]
  %s26 = inlined_call_operand.vmem [shape: f32[8,128], index: 26, kind: input, shape index: {}]
  %s27 = inlined_call_operand.vmem [shape: f32[8,128], index: 27, kind: input, shape index: {}]
  %s28 = inlined_call_operand.hbm [shape: f32[256,128], index: 28, kind: output, shape index: {}]
  %s29 = sld [smem:[#allocation0]]
  $region122: #{tpu_custom_call.1} parent=0
    _
  %s31 = ssub.s32 1, %s29
  %s32 = scalar_select 0, %s31, %s29
  $region1: #{tpu_custom_call.1} parent=0
    #allocation2 [shape = 'u8[131072]{0}', space=vmem, size = 0x20000, scoped, tag = 'output window, operand 0, single buffered']
    #allocation3 [shape = 's32[1]{0}', space=sflag, size = 0x4, scoped, tag = 'scoped memory for tpu_custom_call.1']
    %33 = vsyncpa [#allocation3], 0
    // Predicated region
    $region2: #{tpu_custom_call.1} parent=1 // pred_check
      _
    $region3: #{tpu_custom_call.1} parent=1 // pred_check_branch
      %35 = sbr.rel (0) target = $region5
    $region4: #{tpu_custom_call.1} parent=1 // pred_region
      _
    $region5: #{tpu_custom_call.1} parent=1 // pred_fallthru
      _
    // Predicated region
    $region6: #{tpu_custom_call.1} parent=1 // pred_check
      _
    $region7: #{tpu_custom_call.1} parent=1 // pred_check_branch
      %37 = sbr.rel (0) target = $region9
    $region8: #{tpu_custom_call.1} parent=1 // pred_region
      _
    $region9: #{tpu_custom_call.1} parent=1 // pred_fallthru
      _
    // Predicated region
    $region10: #{tpu_custom_call.1} parent=1 // pred_check
      _
    $region11: #{tpu_custom_call.1} parent=1 // pred_check_branch
      %39 = sbr.rel (0) target = $region13
    $region12: #{tpu_custom_call.1} parent=1 // pred_region
      _
    $region13: #{tpu_custom_call.1} parent=1 // pred_fallthru
      _
    // Predicated region
    $region14: #{tpu_custom_call.1} parent=1 // pred_check
      _
    $region15: #{tpu_custom_call.1} parent=1 // pred_check_branch
      %41 = sbr.rel (0) target = $region17
    $region16: #{tpu_custom_call.1} parent=1 // pred_region
      _
    $region17: #{tpu_custom_call.1} parent=1 // pred_fallthru
      _
    // Predicated region
    $region18: #{tpu_custom_call.1} parent=1 // pred_check
      _
    $region19: #{tpu_custom_call.1} parent=1 // pred_check_branch
      %43 = sbr.rel (0) target = $region21
    $region20: #{tpu_custom_call.1} parent=1 // pred_region
      _
    $region21: #{tpu_custom_call.1} parent=1 // pred_fallthru
      _
    // Predicated region
    $region22: #{tpu_custom_call.1} parent=1 // pred_check
      _
    $region23: #{tpu_custom_call.1} parent=1 // pred_check_branch
      %45 = sbr.rel (0) target = $region25
    $region24: #{tpu_custom_call.1} parent=1 // pred_region
      _
    $region25: #{tpu_custom_call.1} parent=1 // pred_fallthru
      _
    // Predicated region
    $region26: #{tpu_custom_call.1} parent=1 // pred_check
      _
    $region27: #{tpu_custom_call.1} parent=1 // pred_check_branch
      %47 = sbr.rel (0) target = $region29
    $region28: #{tpu_custom_call.1} parent=1 // pred_region
      _
    $region29: #{tpu_custom_call.1} parent=1 // pred_fallthru
      _
    // Predicated region
    $region30: #{tpu_custom_call.1} parent=1 // pred_check
      _
    $region31: #{tpu_custom_call.1} parent=1 // pred_check_branch
      %49 = sbr.rel (0) target = $region33
    $region32: #{tpu_custom_call.1} parent=1 // pred_region
      _
    $region33: #{tpu_custom_call.1} parent=1 // pred_fallthru
      _
    // Predicated region
    $region34: #{tpu_custom_call.1} parent=1 // pred_check
      _
    $region35: #{tpu_custom_call.1} parent=1 // pred_check_branch
      %51 = sbr.rel (0) target = $region37
    $region36: #{tpu_custom_call.1} parent=1 // pred_region
      _
    $region37: #{tpu_custom_call.1} parent=1 // pred_fallthru
      _
    // Predicated region
    $region38: #{tpu_custom_call.1} parent=1 // pred_check
      _
    $region39: #{tpu_custom_call.1} parent=1 // pred_check_branch
      %53 = sbr.rel (0) target = $region41
    $region40: #{tpu_custom_call.1} parent=1 // pred_region
      _
    $region41: #{tpu_custom_call.1} parent=1 // pred_fallthru
      _
    // Predicated region
    $region42: #{tpu_custom_call.1} parent=1 // pred_check
      _
    $region43: #{tpu_custom_call.1} parent=1 // pred_check_branch
      %55 = sbr.rel (0) target = $region45
    $region44: #{tpu_custom_call.1} parent=1 // pred_region
      _
    $region45: #{tpu_custom_call.1} parent=1 // pred_fallthru
      _
    // Predicated region
    $region46: #{tpu_custom_call.1} parent=1 // pred_check
      _
    $region47: #{tpu_custom_call.1} parent=1 // pred_check_branch
      %57 = sbr.rel (0) target = $region49
    $region48: #{tpu_custom_call.1} parent=1 // pred_region
      _
    $region49: #{tpu_custom_call.1} parent=1 // pred_fallthru
      _
    // Predicated region
    $region50: #{tpu_custom_call.1} parent=1 // pred_check
      _
    $region51: #{tpu_custom_call.1} parent=1 // pred_check_branch
      %59 = sbr.rel (0) target = $region53
    $region52: #{tpu_custom_call.1} parent=1 // pred_region
      _
    $region53: #{tpu_custom_call.1} parent=1 // pred_fallthru
      _
    // Predicated region
    $region54: #{tpu_custom_call.1} parent=1 // pred_check
      _
    $region55: #{tpu_custom_call.1} parent=1 // pred_check_branch
      %61 = sbr.rel (0) target = $region57
    $region56: #{tpu_custom_call.1} parent=1 // pred_region
      _
    $region57: #{tpu_custom_call.1} parent=1 // pred_fallthru
      _
    // Predicated region
    $region58: #{tpu_custom_call.1} parent=1 // pred_check
      _
    $region59: #{tpu_custom_call.1} parent=1 // pred_check_branch
      %63 = sbr.rel (0) target = $region61
    $region60: #{tpu_custom_call.1} parent=1 // pred_region
      _
    $region61: #{tpu_custom_call.1} parent=1 // pred_fallthru
      _
    // Predicated region
    $region62: #{tpu_custom_call.1} parent=1 // pred_check
      _
    $region63: #{tpu_custom_call.1} parent=1 // pred_check_branch
      %65 = sbr.rel (0) target = $region65
    $region64: #{tpu_custom_call.1} parent=1 // pred_region
      _
    $region65: #{tpu_custom_call.1} parent=1 // pred_fallthru
      _
    // Predicated region
    $region66: #{tpu_custom_call.1} parent=1 // pred_check
      _
    $region67: #{tpu_custom_call.1} parent=1 // pred_check_branch
      %67 = sbr.rel (0) target = $region69
    $region68: #{tpu_custom_call.1} parent=1 // pred_region
      _
    $region69: #{tpu_custom_call.1} parent=1 // pred_fallthru
      _
    // Predicated region
    $region70: #{tpu_custom_call.1} parent=1 // pred_check
      _
    $region71: #{tpu_custom_call.1} parent=1 // pred_check_branch
      %69 = sbr.rel (0) target = $region73
    $region72: #{tpu_custom_call.1} parent=1 // pred_region
      _
    $region73: #{tpu_custom_call.1} parent=1 // pred_fallthru
      _
    // Predicated region
    $region74: #{tpu_custom_call.1} parent=1 // pred_check
      _
    $region75: #{tpu_custom_call.1} parent=1 // pred_check_branch
      %71 = sbr.rel (0) target = $region77
    $region76: #{tpu_custom_call.1} parent=1 // pred_region
      _
    $region77: #{tpu_custom_call.1} parent=1 // pred_fallthru
      _
    // Predicated region
    $region78: #{tpu_custom_call.1} parent=1 // pred_check
      _
    $region79: #{tpu_custom_call.1} parent=1 // pred_check_branch
      %73 = sbr.rel (0) target = $region81
    $region80: #{tpu_custom_call.1} parent=1 // pred_region
      _
    $region81: #{tpu_custom_call.1} parent=1 // pred_fallthru
      _
    // Predicated region
    $region82: #{tpu_custom_call.1} parent=1 // pred_check
      _
    $region83: #{tpu_custom_call.1} parent=1 // pred_check_branch
      %75 = sbr.rel (0) target = $region85
    $region84: #{tpu_custom_call.1} parent=1 // pred_region
      _
    $region85: #{tpu_custom_call.1} parent=1 // pred_fallthru
      _
    // Predicated region
    $region86: #{tpu_custom_call.1} parent=1 // pred_check
      _
    $region87: #{tpu_custom_call.1} parent=1 // pred_check_branch
      %77 = sbr.rel (0) target = $region89
    $region88: #{tpu_custom_call.1} parent=1 // pred_region
      _
    $region89: #{tpu_custom_call.1} parent=1 // pred_fallthru
      _
    // Predicated region
    $region90: #{tpu_custom_call.1} parent=1 // pred_check
      _
    $region91: #{tpu_custom_call.1} parent=1 // pred_check_branch
      %79 = sbr.rel (0) target = $region93
    $region92: #{tpu_custom_call.1} parent=1 // pred_region
      _
    $region93: #{tpu_custom_call.1} parent=1 // pred_fallthru
      _
    // Predicated region
    $region94: #{tpu_custom_call.1} parent=1 // pred_check
      _
    $region95: #{tpu_custom_call.1} parent=1 // pred_check_branch
      %81 = sbr.rel (0) target = $region97
    $region96: #{tpu_custom_call.1} parent=1 // pred_region
      _
    $region97: #{tpu_custom_call.1} parent=1 // pred_fallthru
      _
    // Predicated region
    $region98: #{tpu_custom_call.1} parent=1 // pred_check
      _
    $region99: #{tpu_custom_call.1} parent=1 // pred_check_branch
      %83 = sbr.rel (0) target = $region101
    $region100: #{tpu_custom_call.1} parent=1 // pred_region
      _
    $region101: #{tpu_custom_call.1} parent=1 // pred_fallthru
      _
    // Predicated region
    $region102: #{tpu_custom_call.1} parent=1 // pred_check
      _
    $region103: #{tpu_custom_call.1} parent=1 // pred_check_branch
      %85 = sbr.rel (0) target = $region105
    $region104: #{tpu_custom_call.1} parent=1 // pred_region
      _
    $region105: #{tpu_custom_call.1} parent=1 // pred_fallthru
      _
    // Predicated region
    $region106: #{tpu_custom_call.1} parent=1 // pred_check
      _
    $region107: #{tpu_custom_call.1} parent=1 // pred_check_branch
      %87 = sbr.rel (0) target = $region109
    $region108: #{tpu_custom_call.1} parent=1 // pred_region
      _
    $region109: #{tpu_custom_call.1} parent=1 // pred_fallthru
      _
    // Predicated region
    $region110: #{tpu_custom_call.1} parent=1 // pred_check
      _
    $region111: #{tpu_custom_call.1} parent=1 // pred_check_branch
      %89 = sbr.rel (0) target = $region113
    $region112: #{tpu_custom_call.1} parent=1 // pred_region
      _
    $region113: #{tpu_custom_call.1} parent=1 // pred_fallthru
      _
    %v90 = vld [vmem:[%s0] sm:$0xff]
    %v91 = vld [vmem:[%s0 + $0x8] sm:$0xff]
    %v92 = vld [vmem:[%s0 + $0x10] sm:$0xff]
    %v93 = vld [vmem:[%s0 + $0x18] sm:$0xff]
    %v94 = vld [vmem:[%s0 + $0x20] sm:$0xff]
    %v95 = vld [vmem:[%s0 + $0x28] sm:$0xff]
    %v96 = vld [vmem:[%s0 + $0x30] sm:$0xff]
    %v97 = vld [vmem:[%s0 + $0x38] sm:$0xff]
    %v98 = vld [vmem:[%s0 + $0x40] sm:$0xff]
    %v99 = vld [vmem:[%s0 + $0x48] sm:$0xff]
    %v100 = vld [vmem:[%s0 + $0x50] sm:$0xff]
    %v101 = vld [vmem:[%s0 + $0x58] sm:$0xff]
    %v102 = vld [vmem:[%s0 + $0x60] sm:$0xff]
    %v103 = vld [vmem:[%s0 + $0x68] sm:$0xff]
    %v104 = vld [vmem:[%s0 + $0x70] sm:$0xff]
    %v105 = vld [vmem:[%s0 + $0x78] sm:$0xff]
    %v106 = vld [vmem:[%s0 + $0x80] sm:$0xff]
    %v107 = vld [vmem:[%s0 + $0x88] sm:$0xff]
    %v108 = vld [vmem:[%s0 + $0x90] sm:$0xff]
    %v109 = vld [vmem:[%s0 + $0x98] sm:$0xff]
    %v110 = vld [vmem:[%s0 + $0xa0] sm:$0xff]
    %v111 = vld [vmem:[%s0 + $0xa8] sm:$0xff]
    %v112 = vld [vmem:[%s0 + $0xb0] sm:$0xff]
    %v113 = vld [vmem:[%s0 + $0xb8] sm:$0xff]
    %v114 = vld [vmem:[%s0 + $0xc0] sm:$0xff]
    %v115 = vld [vmem:[%s0 + $0xc8] sm:$0xff]
    %v116 = vld [vmem:[%s0 + $0xd0] sm:$0xff]
    %v117 = vld [vmem:[%s0 + $0xd8] sm:$0xff]
    %v118 = vld [vmem:[%s0 + $0xe0] sm:$0xff]
    %v119 = vld [vmem:[%s0 + $0xe8] sm:$0xff]
    %v120 = vld [vmem:[%s0 + $0xf0] sm:$0xff]
    %v121 = vld [vmem:[%s0 + $0xf8] sm:$0xff]
    %v122 = vmul.f32 %v90, %v90
    %v123 = vmul.f32 %v91, %v91
    %v124 = vmul.f32 %v92, %v92
    %v125 = vmul.f32 %v93, %v93
    %v126 = vmul.f32 %v94, %v94
    %v127 = vmul.f32 %v95, %v95
    %v128 = vmul.f32 %v96, %v96
    %v129 = vmul.f32 %v97, %v97
    %v130 = vmul.f32 %v98, %v98
    %v131 = vmul.f32 %v99, %v99
    %v132 = vmul.f32 %v100, %v100
    %v133 = vmul.f32 %v101, %v101
    %v134 = vmul.f32 %v102, %v102
    %v135 = vmul.f32 %v103, %v103
    %v136 = vmul.f32 %v104, %v104
    %v137 = vmul.f32 %v105, %v105
    %v138 = vmul.f32 %v106, %v106
    %v139 = vmul.f32 %v107, %v107
    %v140 = vmul.f32 %v108, %v108
    %v141 = vmul.f32 %v109, %v109
    %v142 = vmul.f32 %v110, %v110
    %v143 = vmul.f32 %v111, %v111
    %v144 = vmul.f32 %v112, %v112
    %v145 = vmul.f32 %v113, %v113
    %v146 = vmul.f32 %v114, %v114
    %v147 = vmul.f32 %v115, %v115
    %v148 = vmul.f32 %v116, %v116
    %v149 = vmul.f32 %v117, %v117
    %v150 = vmul.f32 %v118, %v118
    %v151 = vmul.f32 %v119, %v119
    %v152 = vmul.f32 %v120, %v120
    %v153 = vmul.f32 %v121, %v121
    %vm154 = vcmask 130048
    %v155 = vsel %vm154, %v122, 0.0
    %156 = vadd.xlane.f32.xlu0 %v155
    %v157 = vpop.xlane.xlu0 %156
    %v158 = vsel %vm154, %v123, 0.0
    %159 = vadd.xlane.f32.xlu0 %v158
    %v160 = vpop.xlane.xlu0 %159
    %v161 = vsel %vm154, %v124, 0.0
    %162 = vadd.xlane.f32.xlu0 %v161
    %v163 = vpop.xlane.xlu0 %162
    %v164 = vsel %vm154, %v125, 0.0
    %165 = vadd.xlane.f32.xlu0 %v164
    %v166 = vpop.xlane.xlu0 %165
    %v167 = vsel %vm154, %v126, 0.0
    %168 = vadd.xlane.f32.xlu0 %v167
    %v169 = vpop.xlane.xlu0 %168
    %v170 = vsel %vm154, %v127, 0.0
    %171 = vadd.xlane.f32.xlu0 %v170
    %v172 = vpop.xlane.xlu0 %171
    %v173 = vsel %vm154, %v128, 0.0
    %174 = vadd.xlane.f32.xlu0 %v173
    %v175 = vpop.xlane.xlu0 %174
    %v176 = vsel %vm154, %v129, 0.0
    %177 = vadd.xlane.f32.xlu0 %v176
    %v178 = vpop.xlane.xlu0 %177
    %v179 = vsel %vm154, %v130, 0.0
    %180 = vadd.xlane.f32.xlu0 %v179
    %v181 = vpop.xlane.xlu0 %180
    %v182 = vsel %vm154, %v131, 0.0
    %183 = vadd.xlane.f32.xlu0 %v182
    %v184 = vpop.xlane.xlu0 %183
    %v185 = vsel %vm154, %v132, 0.0
    %186 = vadd.xlane.f32.xlu0 %v185
    %v187 = vpop.xlane.xlu0 %186
    %v188 = vsel %vm154, %v133, 0.0
    %189 = vadd.xlane.f32.xlu0 %v188
    %v190 = vpop.xlane.xlu0 %189
    %v191 = vsel %vm154, %v134, 0.0
    %192 = vadd.xlane.f32.xlu0 %v191
    %v193 = vpop.xlane.xlu0 %192
    %v194 = vsel %vm154, %v135, 0.0
    %195 = vadd.xlane.f32.xlu0 %v194
    %v196 = vpop.xlane.xlu0 %195
    %v197 = vsel %vm154, %v136, 0.0
    %198 = vadd.xlane.f32.xlu0 %v197
    %v199 = vpop.xlane.xlu0 %198
    %v200 = vsel %vm154, %v137, 0.0
    %201 = vadd.xlane.f32.xlu0 %v200
    %v202 = vpop.xlane.xlu0 %201
    %v203 = vsel %vm154, %v138, 0.0
    %204 = vadd.xlane.f32.xlu0 %v203
    %v205 = vpop.xlane.xlu0 %204
    %v206 = vsel %vm154, %v139, 0.0
    %207 = vadd.xlane.f32.xlu0 %v206
    %v208 = vpop.xlane.xlu0 %207
    %v209 = vsel %vm154, %v140, 0.0
    %210 = vadd.xlane.f32.xlu0 %v209
    %v211 = vpop.xlane.xlu0 %210
    %v212 = vsel %vm154, %v141, 0.0
    %213 = vadd.xlane.f32.xlu0 %v212
    %v214 = vpop.xlane.xlu0 %213
    %v215 = vsel %vm154, %v142, 0.0
    %216 = vadd.xlane.f32.xlu0 %v215
    %v217 = vpop.xlane.xlu0 %216
    %v218 = vsel %vm154, %v143, 0.0
    %219 = vadd.xlane.f32.xlu0 %v218
    %v220 = vpop.xlane.xlu0 %219
    %v221 = vsel %vm154, %v144, 0.0
    %222 = vadd.xlane.f32.xlu0 %v221
    %v223 = vpop.xlane.xlu0 %222
    %v224 = vsel %vm154, %v145, 0.0
    %225 = vadd.xlane.f32.xlu0 %v224
    %v226 = vpop.xlane.xlu0 %225
    %v227 = vsel %vm154, %v146, 0.0
    %228 = vadd.xlane.f32.xlu0 %v227
    %v229 = vpop.xlane.xlu0 %228
    %v230 = vsel %vm154, %v147, 0.0
    %231 = vadd.xlane.f32.xlu0 %v230
    %v232 = vpop.xlane.xlu0 %231
    %v233 = vsel %vm154, %v148, 0.0
    %234 = vadd.xlane.f32.xlu0 %v233
    %v235 = vpop.xlane.xlu0 %234
    %v236 = vsel %vm154, %v149, 0.0
    %237 = vadd.xlane.f32.xlu0 %v236
    %v238 = vpop.xlane.xlu0 %237
    %v239 = vsel %vm154, %v150, 0.0
    %240 = vadd.xlane.f32.xlu0 %v239
    %v241 = vpop.xlane.xlu0 %240
    %v242 = vsel %vm154, %v151, 0.0
    %243 = vadd.xlane.f32.xlu0 %v242
    %v244 = vpop.xlane.xlu0 %243
    %v245 = vsel %vm154, %v152, 0.0
    %246 = vadd.xlane.f32.xlu0 %v245
    %v247 = vpop.xlane.xlu0 %246
    %v248 = vsel %vm154, %v153, 0.0
    %249 = vadd.xlane.f32.xlu0 %v248
    %v250 = vpop.xlane.xlu0 %249
    %v251 = vld [vmem:[%s2] sm:$0xff]
    %v252 = vld [vmem:[%s2 + $0x8] sm:$0xff]
    %v254 = vsel %vm154, %v90, 0
    %v257 = vsel %vm154, %v91, 0
    %v260 = vsel %vm154, %v92, 0
    %v263 = vsel %vm154, %v93, 0
    %v266 = vsel %vm154, %v94, 0
    %v269 = vsel %vm154, %v95, 0
    %v272 = vsel %vm154, %v96, 0
    %v275 = vsel %vm154, %v97, 0
    %v278 = vsel %vm154, %v98, 0
    %v281 = vsel %vm154, %v99, 0
    %v284 = vsel %vm154, %v100, 0
    %v287 = vsel %vm154, %v101, 0
    %v290 = vsel %vm154, %v102, 0
    %v293 = vsel %vm154, %v103, 0
    %v296 = vsel %vm154, %v104, 0
    %v299 = vsel %vm154, %v105, 0
    %v302 = vsel %vm154, %v106, 0
    %v305 = vsel %vm154, %v107, 0
    %v308 = vsel %vm154, %v108, 0
    %v311 = vsel %vm154, %v109, 0
    %v314 = vsel %vm154, %v110, 0
    %v317 = vsel %vm154, %v111, 0
    %v320 = vsel %vm154, %v112, 0
    %v323 = vsel %vm154, %v113, 0
    %v326 = vsel %vm154, %v114, 0
    %v329 = vsel %vm154, %v115, 0
    %v332 = vsel %vm154, %v116, 0
    %v335 = vsel %vm154, %v117, 0
    %v338 = vsel %vm154, %v118, 0
    %v341 = vsel %vm154, %v119, 0
    %v344 = vsel %vm154, %v120, 0
    %v347 = vsel %vm154, %v121, 0
    %349 = vmatpush.msra.mxu0 0.0
    %350 = vmatpush.msra.mxu0 0.0
    %351 = vmatpush.msra.mxu0 0.0
    %352 = vmatpush.msra.mxu0 0.0
    %353 = vmatpush.msra.mxu0 0.0
    %354 = vmatpush.msra.mxu0 0.0
    %355 = vmatpush.msra.mxu0 0.0
    %356 = vmatpush.msra.mxu0 0.0
    %357 = vmatpush.msra.mxu0 0.0
    %358 = vmatpush.msra.mxu0 0.0
    %359 = vmatpush.msra.mxu0 0.0
    %360 = vmatpush.msra.mxu0 0.0
    %361 = vmatpush.msra.mxu0 0.0
    %362 = vmatpush.msra.mxu0 0.0
    %363 = vmatpush.msra.mxu0 %v252
    %364 = vmatpush.msra.mxu0 %v251
    %365 = vmatmul.f32.gmra.mxu0 %v254
    %v366 = vpop.f32.mrf.mxu0
    %v367 = vadd.f32 0.0, %v366
    %368 = vmatmul.f32.gmra.mxu0 %v257
    %v369 = vpop.f32.mrf.mxu0
    %v370 = vadd.f32 0.0, %v369
    %371 = vmatmul.f32.gmra.mxu0 %v260
    %v372 = vpop.f32.mrf.mxu0
    %v373 = vadd.f32 0.0, %v372
    %374 = vmatmul.f32.gmra.mxu0 %v263
    %v375 = vpop.f32.mrf.mxu0
    %v376 = vadd.f32 0.0, %v375
    %377 = vmatmul.f32.gmra.mxu0 %v266
    %v378 = vpop.f32.mrf.mxu0
    %v379 = vadd.f32 0.0, %v378
    %380 = vmatmul.f32.gmra.mxu0 %v269
    %v381 = vpop.f32.mrf.mxu0
    %v382 = vadd.f32 0.0, %v381
    %383 = vmatmul.f32.gmra.mxu0 %v272
    %v384 = vpop.f32.mrf.mxu0
    %v385 = vadd.f32 0.0, %v384
    %386 = vmatmul.f32.gmra.mxu0 %v275
    %v387 = vpop.f32.mrf.mxu0
    %v388 = vadd.f32 0.0, %v387
    %389 = vmatmul.f32.gmra.mxu0 %v278
    %v390 = vpop.f32.mrf.mxu0
    %v391 = vadd.f32 0.0, %v390
    %392 = vmatmul.f32.gmra.mxu0 %v281
    %v393 = vpop.f32.mrf.mxu0
    %v394 = vadd.f32 0.0, %v393
    %395 = vmatmul.f32.gmra.mxu0 %v284
    %v396 = vpop.f32.mrf.mxu0
    %v397 = vadd.f32 0.0, %v396
    %398 = vmatmul.f32.gmra.mxu0 %v287
    %v399 = vpop.f32.mrf.mxu0
    %v400 = vadd.f32 0.0, %v399
    %401 = vmatmul.f32.gmra.mxu0 %v290
    %v402 = vpop.f32.mrf.mxu0
    %v403 = vadd.f32 0.0, %v402
    %404 = vmatmul.f32.gmra.mxu0 %v293
    %v405 = vpop.f32.mrf.mxu0
    %v406 = vadd.f32 0.0, %v405
    %407 = vmatmul.f32.gmra.mxu0 %v296
    %v408 = vpop.f32.mrf.mxu0
    %v409 = vadd.f32 0.0, %v408
    %410 = vmatmul.f32.gmra.mxu0 %v299
    %v411 = vpop.f32.mrf.mxu0
    %v412 = vadd.f32 0.0, %v411
    %413 = vmatmul.f32.gmra.mxu0 %v302
    %v414 = vpop.f32.mrf.mxu0
    %v415 = vadd.f32 0.0, %v414
    %416 = vmatmul.f32.gmra.mxu0 %v305
    %v417 = vpop.f32.mrf.mxu0
    %v418 = vadd.f32 0.0, %v417
    %419 = vmatmul.f32.gmra.mxu0 %v308
    %v420 = vpop.f32.mrf.mxu0
    %v421 = vadd.f32 0.0, %v420
    %422 = vmatmul.f32.gmra.mxu0 %v311
    %v423 = vpop.f32.mrf.mxu0
    %v424 = vadd.f32 0.0, %v423
    %425 = vmatmul.f32.gmra.mxu0 %v314
    %v426 = vpop.f32.mrf.mxu0
    %v427 = vadd.f32 0.0, %v426
    %428 = vmatmul.f32.gmra.mxu0 %v317
    %v429 = vpop.f32.mrf.mxu0
    %v430 = vadd.f32 0.0, %v429
    %431 = vmatmul.f32.gmra.mxu0 %v320
    %v432 = vpop.f32.mrf.mxu0
    %v433 = vadd.f32 0.0, %v432
    %434 = vmatmul.f32.gmra.mxu0 %v323
    %v435 = vpop.f32.mrf.mxu0
    %v436 = vadd.f32 0.0, %v435
    %437 = vmatmul.f32.gmra.mxu0 %v326
    %v438 = vpop.f32.mrf.mxu0
    %v439 = vadd.f32 0.0, %v438
    %440 = vmatmul.f32.gmra.mxu0 %v329
    %v441 = vpop.f32.mrf.mxu0
    %v442 = vadd.f32 0.0, %v441
    %443 = vmatmul.f32.gmra.mxu0 %v332
    %v444 = vpop.f32.mrf.mxu0
    %v445 = vadd.f32 0.0, %v444
    %446 = vmatmul.f32.gmra.mxu0 %v335
    %v447 = vpop.f32.mrf.mxu0
    %v448 = vadd.f32 0.0, %v447
    %449 = vmatmul.f32.gmra.mxu0 %v338
    %v450 = vpop.f32.mrf.mxu0
    %v451 = vadd.f32 0.0, %v450
    %452 = vmatmul.f32.gmra.mxu0 %v341
    %v453 = vpop.f32.mrf.mxu0
    %v454 = vadd.f32 0.0, %v453
    %455 = vmatmul.f32.gmra.mxu0 %v344
    %v456 = vpop.f32.mrf.mxu0
    %v457 = vadd.f32 0.0, %v456
    %458 = vmatmul.f32.gmra.mxu0 %v347
    %v459 = vpop.f32.mrf.mxu0
    %v460 = vadd.f32 0.0, %v459
    %461 = vdwg.mxu0
    %v462 = vld [vmem:[%s4] sm:$0x1]
    %v464 = vperm.slane %v462, 0
    %v466 = vmul.f32 %v157, %v464
    %v467 = vmul.f32 %v160, %v464
    %v468 = vmul.f32 %v163, %v464
    %v469 = vmul.f32 %v166, %v464
    %v470 = vmul.f32 %v169, %v464
    %v471 = vmul.f32 %v172, %v464
    %v472 = vmul.f32 %v175, %v464
    %v473 = vmul.f32 %v178, %v464
    %v474 = vmul.f32 %v181, %v464
    %v475 = vmul.f32 %v184, %v464
    %v476 = vmul.f32 %v187, %v464
    %v477 = vmul.f32 %v190, %v464
    %v478 = vmul.f32 %v193, %v464
    %v479 = vmul.f32 %v196, %v464
    %v480 = vmul.f32 %v199, %v464
    %v481 = vmul.f32 %v202, %v464
    %v482 = vmul.f32 %v205, %v464
    %v483 = vmul.f32 %v208, %v464
    %v484 = vmul.f32 %v211, %v464
    %v485 = vmul.f32 %v214, %v464
    %v486 = vmul.f32 %v217, %v464
    %v487 = vmul.f32 %v220, %v464
    %v488 = vmul.f32 %v223, %v464
    %v489 = vmul.f32 %v226, %v464
    %v490 = vmul.f32 %v229, %v464
    %v491 = vmul.f32 %v232, %v464
    %v492 = vmul.f32 %v235, %v464
    %v493 = vmul.f32 %v238, %v464
    %v494 = vmul.f32 %v241, %v464
    %v495 = vmul.f32 %v244, %v464
    %v496 = vmul.f32 %v247, %v464
    %v497 = vmul.f32 %v250, %v464
    %v498 = vsub.f32 %v466, %v367
    %v499 = vsub.f32 %v467, %v370
    %v500 = vsub.f32 %v468, %v373
    %v501 = vsub.f32 %v469, %v376
    %v502 = vsub.f32 %v470, %v379
    %v503 = vsub.f32 %v471, %v382
    %v504 = vsub.f32 %v472, %v385
    %v505 = vsub.f32 %v473, %v388
    %v506 = vsub.f32 %v474, %v391
    %v507 = vsub.f32 %v475, %v394
    %v508 = vsub.f32 %v476, %v397
    %v509 = vsub.f32 %v477, %v400
    %v510 = vsub.f32 %v478, %v403
    %v511 = vsub.f32 %v479, %v406
    %v512 = vsub.f32 %v480, %v409
    %v513 = vsub.f32 %v481, %v412
    %v514 = vsub.f32 %v482, %v415
    %v515 = vsub.f32 %v483, %v418
    %v516 = vsub.f32 %v484, %v421
    %v517 = vsub.f32 %v485, %v424
    %v518 = vsub.f32 %v486, %v427
    %v519 = vsub.f32 %v487, %v430
    %v520 = vsub.f32 %v488, %v433
    %v521 = vsub.f32 %v489, %v436
    %v522 = vsub.f32 %v490, %v439
    %v523 = vsub.f32 %v491, %v442
    %v524 = vsub.f32 %v492, %v445
    %v525 = vsub.f32 %v493, %v448
    %v526 = vsub.f32 %v494, %v451
    %v527 = vsub.f32 %v495, %v454
    %v528 = vsub.f32 %v496, %v457
    %v529 = vsub.f32 %v497, %v460
    %v530 = vld [vmem:[%s3] sm:$0x1]
    %v532 = vperm.slane %v530, 0
    %v534 = vadd.f32 %v498, %v532
    %v535 = vadd.f32 %v499, %v532
    %v536 = vadd.f32 %v500, %v532
    %v537 = vadd.f32 %v501, %v532
    %v538 = vadd.f32 %v502, %v532
    %v539 = vadd.f32 %v503, %v532
    %v540 = vadd.f32 %v504, %v532
    %v541 = vadd.f32 %v505, %v532
    %v542 = vadd.f32 %v506, %v532
    %v543 = vadd.f32 %v507, %v532
    %v544 = vadd.f32 %v508, %v532
    %v545 = vadd.f32 %v509, %v532
    %v546 = vadd.f32 %v510, %v532
    %v547 = vadd.f32 %v511, %v532
    %v548 = vadd.f32 %v512, %v532
    %v549 = vadd.f32 %v513, %v532
    %v550 = vadd.f32 %v514, %v532
    %v551 = vadd.f32 %v515, %v532
    %v552 = vadd.f32 %v516, %v532
    %v553 = vadd.f32 %v517, %v532
    %v554 = vadd.f32 %v518, %v532
    %v555 = vadd.f32 %v519, %v532
    %v556 = vadd.f32 %v520, %v532
    %v557 = vadd.f32 %v521, %v532
    %v558 = vadd.f32 %v522, %v532
    %v559 = vadd.f32 %v523, %v532
    %v560 = vadd.f32 %v524, %v532
    %v561 = vadd.f32 %v525, %v532
    %v562 = vadd.f32 %v526, %v532
    %v563 = vadd.f32 %v527, %v532
    %v564 = vadd.f32 %v528, %v532
    %v565 = vadd.f32 %v529, %v532
    %v566 = vmax.f32 %v534, 0.0
    %v567 = vmax.f32 %v535, 0.0
    %v568 = vmax.f32 %v536, 0.0
    %v569 = vmax.f32 %v537, 0.0
    %v570 = vmax.f32 %v538, 0.0
    %v571 = vmax.f32 %v539, 0.0
    %v572 = vmax.f32 %v540, 0.0
    %v573 = vmax.f32 %v541, 0.0
    %v574 = vmax.f32 %v542, 0.0
    %v575 = vmax.f32 %v543, 0.0
    %v576 = vmax.f32 %v544, 0.0
    %v577 = vmax.f32 %v545, 0.0
    %v578 = vmax.f32 %v546, 0.0
    %v579 = vmax.f32 %v547, 0.0
    %v580 = vmax.f32 %v548, 0.0
    %v581 = vmax.f32 %v549, 0.0
    %v582 = vmax.f32 %v550, 0.0
    %v583 = vmax.f32 %v551, 0.0
    %v584 = vmax.f32 %v552, 0.0
    %v585 = vmax.f32 %v553, 0.0
    %v586 = vmax.f32 %v554, 0.0
    %v587 = vmax.f32 %v555, 0.0
    %v588 = vmax.f32 %v556, 0.0
    %v589 = vmax.f32 %v557, 0.0
    %v590 = vmax.f32 %v558, 0.0
    %v591 = vmax.f32 %v559, 0.0
    %v592 = vmax.f32 %v560, 0.0
    %v593 = vmax.f32 %v561, 0.0
    %v594 = vmax.f32 %v562, 0.0
    %v595 = vmax.f32 %v563, 0.0
    %v596 = vmax.f32 %v564, 0.0
    %v597 = vmax.f32 %v565, 0.0
    %v598 = vsub.f32 0.0, %v566
    %v599 = vsub.f32 0.0, %v567
    %v600 = vsub.f32 0.0, %v568
    %v601 = vsub.f32 0.0, %v569
    %v602 = vsub.f32 0.0, %v570
    %v603 = vsub.f32 0.0, %v571
    %v604 = vsub.f32 0.0, %v572
    %v605 = vsub.f32 0.0, %v573
    %v606 = vsub.f32 0.0, %v574
    %v607 = vsub.f32 0.0, %v575
    %v608 = vsub.f32 0.0, %v576
    %v609 = vsub.f32 0.0, %v577
    %v610 = vsub.f32 0.0, %v578
    %v611 = vsub.f32 0.0, %v579
    %v612 = vsub.f32 0.0, %v580
    %v613 = vsub.f32 0.0, %v581
    %v614 = vsub.f32 0.0, %v582
    %v615 = vsub.f32 0.0, %v583
    %v616 = vsub.f32 0.0, %v584
    %v617 = vsub.f32 0.0, %v585
    %v618 = vsub.f32 0.0, %v586
    %v619 = vsub.f32 0.0, %v587
    %v620 = vsub.f32 0.0, %v588
    %v621 = vsub.f32 0.0, %v589
    %v622 = vsub.f32 0.0, %v590
    %v623 = vsub.f32 0.0, %v591
    %v624 = vsub.f32 0.0, %v592
    %v625 = vsub.f32 0.0, %v593
    %v626 = vsub.f32 0.0, %v594
    %v627 = vsub.f32 0.0, %v595
    %v628 = vsub.f32 0.0, %v596
    %v629 = vsub.f32 0.0, %v597
    %v630 = vmul.f32 %v598, 1.442695
    %v631 = vpow.pop %v630
    %v632 = vmul.f32 %v599, 1.442695
    %v633 = vpow.pop %v632
    %v634 = vmul.f32 %v600, 1.442695
    %v635 = vpow.pop %v634
    %v636 = vmul.f32 %v601, 1.442695
    %v637 = vpow.pop %v636
    %v638 = vmul.f32 %v602, 1.442695
    %v639 = vpow.pop %v638
    %v640 = vmul.f32 %v603, 1.442695
    %v641 = vpow.pop %v640
    %v642 = vmul.f32 %v604, 1.442695
    %v643 = vpow.pop %v642
    %v644 = vmul.f32 %v605, 1.442695
    %v645 = vpow.pop %v644
    %v646 = vmul.f32 %v606, 1.442695
    %v647 = vpow.pop %v646
    %v648 = vmul.f32 %v607, 1.442695
    %v649 = vpow.pop %v648
    %v650 = vmul.f32 %v608, 1.442695
    %v651 = vpow.pop %v650
    %v652 = vmul.f32 %v609, 1.442695
    %v653 = vpow.pop %v652
    %v654 = vmul.f32 %v610, 1.442695
    %v655 = vpow.pop %v654
    %v656 = vmul.f32 %v611, 1.442695
    %v657 = vpow.pop %v656
    %v658 = vmul.f32 %v612, 1.442695
    %v659 = vpow.pop %v658
    %v660 = vmul.f32 %v613, 1.442695
    %v661 = vpow.pop %v660
    %v662 = vmul.f32 %v614, 1.442695
    %v663 = vpow.pop %v662
    %v664 = vmul.f32 %v615, 1.442695
    %v665 = vpow.pop %v664
    %v666 = vmul.f32 %v616, 1.442695
    %v667 = vpow.pop %v666
    %v668 = vmul.f32 %v617, 1.442695
    %v669 = vpow.pop %v668
    %v670 = vmul.f32 %v618, 1.442695
    %v671 = vpow.pop %v670
    %v672 = vmul.f32 %v619, 1.442695
    %v673 = vpow.pop %v672
    %v674 = vmul.f32 %v620, 1.442695
    %v675 = vpow.pop %v674
    %v676 = vmul.f32 %v621, 1.442695
    %v677 = vpow.pop %v676
    %v678 = vmul.f32 %v622, 1.442695
    %v679 = vpow.pop %v678
    %v680 = vmul.f32 %v623, 1.442695
    %v681 = vpow.pop %v680
    %v682 = vmul.f32 %v624, 1.442695
    %v683 = vpow.pop %v682
    %v684 = vmul.f32 %v625, 1.442695
    %v685 = vpow.pop %v684
    %v686 = vmul.f32 %v626, 1.442695
    %v687 = vpow.pop %v686
    %v688 = vmul.f32 %v627, 1.442695
    %v689 = vpow.pop %v688
    %v690 = vmul.f32 %v628, 1.442695
    %v691 = vpow.pop %v690
    %v692 = vmul.f32 %v629, 1.442695
    %v693 = vpow.pop %v692
    %v694 = vld [vmem:[%s5] sm:$0xff]
    %v695 = vld [vmem:[%s5 + $0x8] sm:$0xff]
    %v696 = vld [vmem:[%s5 + $0x10] sm:$0xff]
    %v697 = vld [vmem:[%s5 + $0x18] sm:$0xff]
    %v698 = vld [vmem:[%s5 + $0x20] sm:$0xff]
    %v699 = vld [vmem:[%s5 + $0x28] sm:$0xff]
    %v700 = vld [vmem:[%s5 + $0x30] sm:$0xff]
    %v701 = vld [vmem:[%s5 + $0x38] sm:$0xff]
    %v702 = vld [vmem:[%s5 + $0x40] sm:$0xff]
    %v703 = vld [vmem:[%s5 + $0x48] sm:$0xff]
    %v704 = vld [vmem:[%s5 + $0x50] sm:$0xff]
    %v705 = vld [vmem:[%s5 + $0x58] sm:$0xff]
    %v706 = vld [vmem:[%s5 + $0x60] sm:$0xff]
    %v707 = vld [vmem:[%s5 + $0x68] sm:$0xff]
    %v708 = vld [vmem:[%s5 + $0x70] sm:$0xff]
    %v709 = vld [vmem:[%s5 + $0x78] sm:$0xff]
    %v710 = vld [vmem:[%s6] sm:$0x1]
    %v712 = vperm.slane %v710, 0
    %714 = vmatpush.msra.mxu0 %v709
    %715 = vmatpush.msra.mxu0 %v708
    %716 = vmatpush.msra.mxu0 %v707
    %717 = vmatpush.msra.mxu0 %v706
    %718 = vmatpush.msra.mxu0 %v705
    %719 = vmatpush.msra.mxu0 %v704
    %720 = vmatpush.msra.mxu0 %v703
    %721 = vmatpush.msra.mxu0 %v702
    %722 = vmatpush.msra.mxu0 %v701
    %723 = vmatpush.msra.mxu0 %v700
    %724 = vmatpush.msra.mxu0 %v699
    %725 = vmatpush.msra.mxu0 %v698
    %726 = vmatpush.msra.mxu0 %v697
    %727 = vmatpush.msra.mxu0 %v696
    %728 = vmatpush.msra.mxu0 %v695
    %729 = vmatpush.msra.mxu0 %v694
    %730 = vmatmul.f32.gmra.mxu0 %v631
    %v731 = vpop.f32.mrf.mxu0
    %v732 = vadd.f32 %v712, %v731
    %733 = vmatmul.f32.gmra.mxu0 %v633
    %v734 = vpop.f32.mrf.mxu0
    %v735 = vadd.f32 %v712, %v734
    %736 = vmatmul.f32.gmra.mxu0 %v635
    %v737 = vpop.f32.mrf.mxu0
    %v738 = vadd.f32 %v712, %v737
    %739 = vmatmul.f32.gmra.mxu0 %v637
    %v740 = vpop.f32.mrf.mxu0
    %v741 = vadd.f32 %v712, %v740
    %742 = vmatmul.f32.gmra.mxu0 %v639
    %v743 = vpop.f32.mrf.mxu0
    %v744 = vadd.f32 %v712, %v743
    %745 = vmatmul.f32.gmra.mxu0 %v641
    %v746 = vpop.f32.mrf.mxu0
    %v747 = vadd.f32 %v712, %v746
    %748 = vmatmul.f32.gmra.mxu0 %v643
    %v749 = vpop.f32.mrf.mxu0
    %v750 = vadd.f32 %v712, %v749
    %751 = vmatmul.f32.gmra.mxu0 %v645
    %v752 = vpop.f32.mrf.mxu0
    %v753 = vadd.f32 %v712, %v752
    %754 = vmatmul.f32.gmra.mxu0 %v647
    %v755 = vpop.f32.mrf.mxu0
    %v756 = vadd.f32 %v712, %v755
    %757 = vmatmul.f32.gmra.mxu0 %v649
    %v758 = vpop.f32.mrf.mxu0
    %v759 = vadd.f32 %v712, %v758
    %760 = vmatmul.f32.gmra.mxu0 %v651
    %v761 = vpop.f32.mrf.mxu0
    %v762 = vadd.f32 %v712, %v761
    %763 = vmatmul.f32.gmra.mxu0 %v653
    %v764 = vpop.f32.mrf.mxu0
    %v765 = vadd.f32 %v712, %v764
    %766 = vmatmul.f32.gmra.mxu0 %v655
    %v767 = vpop.f32.mrf.mxu0
    %v768 = vadd.f32 %v712, %v767
    %769 = vmatmul.f32.gmra.mxu0 %v657
    %v770 = vpop.f32.mrf.mxu0
    %v771 = vadd.f32 %v712, %v770
    %772 = vmatmul.f32.gmra.mxu0 %v659
    %v773 = vpop.f32.mrf.mxu0
    %v774 = vadd.f32 %v712, %v773
    %775 = vmatmul.f32.gmra.mxu0 %v661
    %v776 = vpop.f32.mrf.mxu0
    %v777 = vadd.f32 %v712, %v776
    %778 = vmatmul.f32.gmra.mxu0 %v663
    %v779 = vpop.f32.mrf.mxu0
    %v780 = vadd.f32 %v712, %v779
    %781 = vmatmul.f32.gmra.mxu0 %v665
    %v782 = vpop.f32.mrf.mxu0
    %v783 = vadd.f32 %v712, %v782
    %784 = vmatmul.f32.gmra.mxu0 %v667
    %v785 = vpop.f32.mrf.mxu0
    %v786 = vadd.f32 %v712, %v785
    %787 = vmatmul.f32.gmra.mxu0 %v669
    %v788 = vpop.f32.mrf.mxu0
    %v789 = vadd.f32 %v712, %v788
    %790 = vmatmul.f32.gmra.mxu0 %v671
    %v791 = vpop.f32.mrf.mxu0
    %v792 = vadd.f32 %v712, %v791
    %793 = vmatmul.f32.gmra.mxu0 %v673
    %v794 = vpop.f32.mrf.mxu0
    %v795 = vadd.f32 %v712, %v794
    %796 = vmatmul.f32.gmra.mxu0 %v675
    %v797 = vpop.f32.mrf.mxu0
    %v798 = vadd.f32 %v712, %v797
    %799 = vmatmul.f32.gmra.mxu0 %v677
    %v800 = vpop.f32.mrf.mxu0
    %v801 = vadd.f32 %v712, %v800
    %802 = vmatmul.f32.gmra.mxu0 %v679
    %v803 = vpop.f32.mrf.mxu0
    %v804 = vadd.f32 %v712, %v803
    %805 = vmatmul.f32.gmra.mxu0 %v681
    %v806 = vpop.f32.mrf.mxu0
    %v807 = vadd.f32 %v712, %v806
    %808 = vmatmul.f32.gmra.mxu0 %v683
    %v809 = vpop.f32.mrf.mxu0
    %v810 = vadd.f32 %v712, %v809
    %811 = vmatmul.f32.gmra.mxu0 %v685
    %v812 = vpop.f32.mrf.mxu0
    %v813 = vadd.f32 %v712, %v812
    %814 = vmatmul.f32.gmra.mxu0 %v687
    %v815 = vpop.f32.mrf.mxu0
    %v816 = vadd.f32 %v712, %v815
    %817 = vmatmul.f32.gmra.mxu0 %v689
    %v818 = vpop.f32.mrf.mxu0
    %v819 = vadd.f32 %v712, %v818
    %820 = vmatmul.f32.gmra.mxu0 %v691
    %v821 = vpop.f32.mrf.mxu0
    %v822 = vadd.f32 %v712, %v821
    %823 = vmatmul.f32.gmra.mxu0 %v693
    %v824 = vpop.f32.mrf.mxu0
    %v825 = vadd.f32 %v712, %v824
    %826 = vdwg.mxu0
    %v827 = vtanh.pop %v732
    %v828 = vtanh.pop %v735
    %v829 = vtanh.pop %v738
    %v830 = vtanh.pop %v741
    %v831 = vtanh.pop %v744
    %v832 = vtanh.pop %v747
    %v833 = vtanh.pop %v750
    %v834 = vtanh.pop %v753
    %v835 = vtanh.pop %v756
    %v836 = vtanh.pop %v759
    %v837 = vtanh.pop %v762
    %v838 = vtanh.pop %v765
    %v839 = vtanh.pop %v768
    %v840 = vtanh.pop %v771
    %v841 = vtanh.pop %v774
    %v842 = vtanh.pop %v777
    %v843 = vtanh.pop %v780
    %v844 = vtanh.pop %v783
    %v845 = vtanh.pop %v786
    %v846 = vtanh.pop %v789
    %v847 = vtanh.pop %v792
    %v848 = vtanh.pop %v795
    %v849 = vtanh.pop %v798
    %v850 = vtanh.pop %v801
    %v851 = vtanh.pop %v804
    %v852 = vtanh.pop %v807
    %v853 = vtanh.pop %v810
    %v854 = vtanh.pop %v813
    %v855 = vtanh.pop %v816
    %v856 = vtanh.pop %v819
    %v857 = vtanh.pop %v822
    %v858 = vtanh.pop %v825
    %v859 = vmul.f32 %v827, %v827
    %v860 = vmul.f32 %v828, %v828
    %v861 = vmul.f32 %v829, %v829
    %v862 = vmul.f32 %v830, %v830
    %v863 = vmul.f32 %v831, %v831
    %v864 = vmul.f32 %v832, %v832
    %v865 = vmul.f32 %v833, %v833
    %v866 = vmul.f32 %v834, %v834
    %v867 = vmul.f32 %v835, %v835
    %v868 = vmul.f32 %v836, %v836
    %v869 = vmul.f32 %v837, %v837
    %v870 = vmul.f32 %v838, %v838
    %v871 = vmul.f32 %v839, %v839
    %v872 = vmul.f32 %v840, %v840
    %v873 = vmul.f32 %v841, %v841
    %v874 = vmul.f32 %v842, %v842
    %v875 = vmul.f32 %v843, %v843
    %v876 = vmul.f32 %v844, %v844
    %v877 = vmul.f32 %v845, %v845
    %v878 = vmul.f32 %v846, %v846
    %v879 = vmul.f32 %v847, %v847
    %v880 = vmul.f32 %v848, %v848
    %v881 = vmul.f32 %v849, %v849
    %v882 = vmul.f32 %v850, %v850
    %v883 = vmul.f32 %v851, %v851
    %v884 = vmul.f32 %v852, %v852
    %v885 = vmul.f32 %v853, %v853
    %v886 = vmul.f32 %v854, %v854
    %v887 = vmul.f32 %v855, %v855
    %v888 = vmul.f32 %v856, %v856
    %v889 = vmul.f32 %v857, %v857
    %v890 = vmul.f32 %v858, %v858
    %891 = vadd.xlane.f32.xlu0 %v859
    %v892 = vpop.xlane.xlu0 %891
    %893 = vadd.xlane.f32.xlu0 %v860
    %v894 = vpop.xlane.xlu0 %893
    %895 = vadd.xlane.f32.xlu0 %v861
    %v896 = vpop.xlane.xlu0 %895
    %897 = vadd.xlane.f32.xlu0 %v862
    %v898 = vpop.xlane.xlu0 %897
    %899 = vadd.xlane.f32.xlu0 %v863
    %v900 = vpop.xlane.xlu0 %899
    %901 = vadd.xlane.f32.xlu0 %v864
    %v902 = vpop.xlane.xlu0 %901
    %903 = vadd.xlane.f32.xlu0 %v865
    %v904 = vpop.xlane.xlu0 %903
    %905 = vadd.xlane.f32.xlu0 %v866
    %v906 = vpop.xlane.xlu0 %905
    %907 = vadd.xlane.f32.xlu0 %v867
    %v908 = vpop.xlane.xlu0 %907
    %909 = vadd.xlane.f32.xlu0 %v868
    %v910 = vpop.xlane.xlu0 %909
    %911 = vadd.xlane.f32.xlu0 %v869
    %v912 = vpop.xlane.xlu0 %911
    %913 = vadd.xlane.f32.xlu0 %v870
    %v914 = vpop.xlane.xlu0 %913
    %915 = vadd.xlane.f32.xlu0 %v871
    %v916 = vpop.xlane.xlu0 %915
    %917 = vadd.xlane.f32.xlu0 %v872
    %v918 = vpop.xlane.xlu0 %917
    %919 = vadd.xlane.f32.xlu0 %v873
    %v920 = vpop.xlane.xlu0 %919
    %921 = vadd.xlane.f32.xlu0 %v874
    %v922 = vpop.xlane.xlu0 %921
    %923 = vadd.xlane.f32.xlu0 %v875
    %v924 = vpop.xlane.xlu0 %923
    %925 = vadd.xlane.f32.xlu0 %v876
    %v926 = vpop.xlane.xlu0 %925
    %927 = vadd.xlane.f32.xlu0 %v877
    %v928 = vpop.xlane.xlu0 %927
    %929 = vadd.xlane.f32.xlu0 %v878
    %v930 = vpop.xlane.xlu0 %929
    %931 = vadd.xlane.f32.xlu0 %v879
    %v932 = vpop.xlane.xlu0 %931
    %933 = vadd.xlane.f32.xlu0 %v880
    %v934 = vpop.xlane.xlu0 %933
    %935 = vadd.xlane.f32.xlu0 %v881
    %v936 = vpop.xlane.xlu0 %935
    %937 = vadd.xlane.f32.xlu0 %v882
    %v938 = vpop.xlane.xlu0 %937
    %939 = vadd.xlane.f32.xlu0 %v883
    %v940 = vpop.xlane.xlu0 %939
    %941 = vadd.xlane.f32.xlu0 %v884
    %v942 = vpop.xlane.xlu0 %941
    %943 = vadd.xlane.f32.xlu0 %v885
    %v944 = vpop.xlane.xlu0 %943
    %945 = vadd.xlane.f32.xlu0 %v886
    %v946 = vpop.xlane.xlu0 %945
    %947 = vadd.xlane.f32.xlu0 %v887
    %v948 = vpop.xlane.xlu0 %947
    %949 = vadd.xlane.f32.xlu0 %v888
    %v950 = vpop.xlane.xlu0 %949
    %951 = vadd.xlane.f32.xlu0 %v889
    %v952 = vpop.xlane.xlu0 %951
    %953 = vadd.xlane.f32.xlu0 %v890
    %v954 = vpop.xlane.xlu0 %953
    %v955 = vld [vmem:[%s7] sm:$0xff]
    %v956 = vld [vmem:[%s7 + $0x8] sm:$0xff]
    %v957 = vld [vmem:[%s7 + $0x10] sm:$0xff]
    %v958 = vld [vmem:[%s7 + $0x18] sm:$0xff]
    %v959 = vld [vmem:[%s7 + $0x20] sm:$0xff]
    %v960 = vld [vmem:[%s7 + $0x28] sm:$0xff]
    %v961 = vld [vmem:[%s7 + $0x30] sm:$0xff]
    %v962 = vld [vmem:[%s7 + $0x38] sm:$0xff]
    %v963 = vld [vmem:[%s7 + $0x40] sm:$0xff]
    %v964 = vld [vmem:[%s7 + $0x48] sm:$0xff]
    %v965 = vld [vmem:[%s7 + $0x50] sm:$0xff]
    %v966 = vld [vmem:[%s7 + $0x58] sm:$0xff]
    %v967 = vld [vmem:[%s7 + $0x60] sm:$0xff]
    %v968 = vld [vmem:[%s7 + $0x68] sm:$0xff]
    %v969 = vld [vmem:[%s7 + $0x70] sm:$0xff]
    %v970 = vld [vmem:[%s7 + $0x78] sm:$0xff]
    %971 = vmatpush.msra.mxu0 %v970
    %972 = vmatpush.msra.mxu0 %v969
    %973 = vmatpush.msra.mxu0 %v968
    %974 = vmatpush.msra.mxu0 %v967
    %975 = vmatpush.msra.mxu0 %v966
    %976 = vmatpush.msra.mxu0 %v965
    %977 = vmatpush.msra.mxu0 %v964
    %978 = vmatpush.msra.mxu0 %v963
    %979 = vmatpush.msra.mxu0 %v962
    %980 = vmatpush.msra.mxu0 %v961
    %981 = vmatpush.msra.mxu0 %v960
    %982 = vmatpush.msra.mxu0 %v959
    %983 = vmatpush.msra.mxu0 %v958
    %984 = vmatpush.msra.mxu0 %v957
    %985 = vmatpush.msra.mxu0 %v956
    %986 = vmatpush.msra.mxu0 %v955
    %987 = vmatmul.f32.gmra.mxu0 %v827
    %v988 = vpop.f32.mrf.mxu0
    %v989 = vadd.f32 0.0, %v988
    %990 = vmatmul.f32.gmra.mxu0 %v828
    %v991 = vpop.f32.mrf.mxu0
    %v992 = vadd.f32 0.0, %v991
    %993 = vmatmul.f32.gmra.mxu0 %v829
    %v994 = vpop.f32.mrf.mxu0
    %v995 = vadd.f32 0.0, %v994
    %996 = vmatmul.f32.gmra.mxu0 %v830
    %v997 = vpop.f32.mrf.mxu0
    %v998 = vadd.f32 0.0, %v997
    %999 = vmatmul.f32.gmra.mxu0 %v831
    %v1000 = vpop.f32.mrf.mxu0
    %v1001 = vadd.f32 0.0, %v1000
    %1002 = vmatmul.f32.gmra.mxu0 %v832
    %v1003 = vpop.f32.mrf.mxu0
    %v1004 = vadd.f32 0.0, %v1003
    %1005 = vmatmul.f32.gmra.mxu0 %v833
    %v1006 = vpop.f32.mrf.mxu0
    %v1007 = vadd.f32 0.0, %v1006
    %1008 = vmatmul.f32.gmra.mxu0 %v834
    %v1009 = vpop.f32.mrf.mxu0
    %v1010 = vadd.f32 0.0, %v1009
    %1011 = vmatmul.f32.gmra.mxu0 %v835
    %v1012 = vpop.f32.mrf.mxu0
    %v1013 = vadd.f32 0.0, %v1012
    %1014 = vmatmul.f32.gmra.mxu0 %v836
    %v1015 = vpop.f32.mrf.mxu0
    %v1016 = vadd.f32 0.0, %v1015
    %1017 = vmatmul.f32.gmra.mxu0 %v837
    %v1018 = vpop.f32.mrf.mxu0
    %v1019 = vadd.f32 0.0, %v1018
    %1020 = vmatmul.f32.gmra.mxu0 %v838
    %v1021 = vpop.f32.mrf.mxu0
    %v1022 = vadd.f32 0.0, %v1021
    %1023 = vmatmul.f32.gmra.mxu0 %v839
    %v1024 = vpop.f32.mrf.mxu0
    %v1025 = vadd.f32 0.0, %v1024
    %1026 = vmatmul.f32.gmra.mxu0 %v840
    %v1027 = vpop.f32.mrf.mxu0
    %v1028 = vadd.f32 0.0, %v1027
    %1029 = vmatmul.f32.gmra.mxu0 %v841
    %v1030 = vpop.f32.mrf.mxu0
    %v1031 = vadd.f32 0.0, %v1030
    %1032 = vmatmul.f32.gmra.mxu0 %v842
    %v1033 = vpop.f32.mrf.mxu0
    %v1034 = vadd.f32 0.0, %v1033
    %1035 = vmatmul.f32.gmra.mxu0 %v843
    %v1036 = vpop.f32.mrf.mxu0
    %v1037 = vadd.f32 0.0, %v1036
    %1038 = vmatmul.f32.gmra.mxu0 %v844
    %v1039 = vpop.f32.mrf.mxu0
    %v1040 = vadd.f32 0.0, %v1039
    %1041 = vmatmul.f32.gmra.mxu0 %v845
    %v1042 = vpop.f32.mrf.mxu0
    %v1043 = vadd.f32 0.0, %v1042
    %1044 = vmatmul.f32.gmra.mxu0 %v846
    %v1045 = vpop.f32.mrf.mxu0
    %v1046 = vadd.f32 0.0, %v1045
    %1047 = vmatmul.f32.gmra.mxu0 %v847
    %v1048 = vpop.f32.mrf.mxu0
    %v1049 = vadd.f32 0.0, %v1048
    %1050 = vmatmul.f32.gmra.mxu0 %v848
    %v1051 = vpop.f32.mrf.mxu0
    %v1052 = vadd.f32 0.0, %v1051
    %1053 = vmatmul.f32.gmra.mxu0 %v849
    %v1054 = vpop.f32.mrf.mxu0
    %v1055 = vadd.f32 0.0, %v1054
    %1056 = vmatmul.f32.gmra.mxu0 %v850
    %v1057 = vpop.f32.mrf.mxu0
    %v1058 = vadd.f32 0.0, %v1057
    %1059 = vmatmul.f32.gmra.mxu0 %v851
    %v1060 = vpop.f32.mrf.mxu0
    %v1061 = vadd.f32 0.0, %v1060
    %1062 = vmatmul.f32.gmra.mxu0 %v852
    %v1063 = vpop.f32.mrf.mxu0
    %v1064 = vadd.f32 0.0, %v1063
    %1065 = vmatmul.f32.gmra.mxu0 %v853
    %v1066 = vpop.f32.mrf.mxu0
    %v1067 = vadd.f32 0.0, %v1066
    %1068 = vmatmul.f32.gmra.mxu0 %v854
    %v1069 = vpop.f32.mrf.mxu0
    %v1070 = vadd.f32 0.0, %v1069
    %1071 = vmatmul.f32.gmra.mxu0 %v855
    %v1072 = vpop.f32.mrf.mxu0
    %v1073 = vadd.f32 0.0, %v1072
    %1074 = vmatmul.f32.gmra.mxu0 %v856
    %v1075 = vpop.f32.mrf.mxu0
    %v1076 = vadd.f32 0.0, %v1075
    %1077 = vmatmul.f32.gmra.mxu0 %v857
    %v1078 = vpop.f32.mrf.mxu0
    %v1079 = vadd.f32 0.0, %v1078
    %1080 = vmatmul.f32.gmra.mxu0 %v858
    %v1081 = vpop.f32.mrf.mxu0
    %v1082 = vadd.f32 0.0, %v1081
    %1083 = vdwg.mxu0
    %v1084 = vld [vmem:[%s9] sm:$0x1]
    %v1086 = vperm.slane %v1084, 0
    %v1088 = vmul.f32 %v892, %v1086
    %v1089 = vmul.f32 %v894, %v1086
    %v1090 = vmul.f32 %v896, %v1086
    %v1091 = vmul.f32 %v898, %v1086
    %v1092 = vmul.f32 %v900, %v1086
    %v1093 = vmul.f32 %v902, %v1086
    %v1094 = vmul.f32 %v904, %v1086
    %v1095 = vmul.f32 %v906, %v1086
    %v1096 = vmul.f32 %v908, %v1086
    %v1097 = vmul.f32 %v910, %v1086
    %v1098 = vmul.f32 %v912, %v1086
    %v1099 = vmul.f32 %v914, %v1086
    %v1100 = vmul.f32 %v916, %v1086
    %v1101 = vmul.f32 %v918, %v1086
    %v1102 = vmul.f32 %v920, %v1086
    %v1103 = vmul.f32 %v922, %v1086
    %v1104 = vmul.f32 %v924, %v1086
    %v1105 = vmul.f32 %v926, %v1086
    %v1106 = vmul.f32 %v928, %v1086
    %v1107 = vmul.f32 %v930, %v1086
    %v1108 = vmul.f32 %v932, %v1086
    %v1109 = vmul.f32 %v934, %v1086
    %v1110 = vmul.f32 %v936, %v1086
    %v1111 = vmul.f32 %v938, %v1086
    %v1112 = vmul.f32 %v940, %v1086
    %v1113 = vmul.f32 %v942, %v1086
    %v1114 = vmul.f32 %v944, %v1086
    %v1115 = vmul.f32 %v946, %v1086
    %v1116 = vmul.f32 %v948, %v1086
    %v1117 = vmul.f32 %v950, %v1086
    %v1118 = vmul.f32 %v952, %v1086
    %v1119 = vmul.f32 %v954, %v1086
    %v1120 = vsub.f32 %v1088, %v989
    %v1121 = vsub.f32 %v1089, %v992
    %v1122 = vsub.f32 %v1090, %v995
    %v1123 = vsub.f32 %v1091, %v998
    %v1124 = vsub.f32 %v1092, %v1001
    %v1125 = vsub.f32 %v1093, %v1004
    %v1126 = vsub.f32 %v1094, %v1007
    %v1127 = vsub.f32 %v1095, %v1010
    %v1128 = vsub.f32 %v1096, %v1013
    %v1129 = vsub.f32 %v1097, %v1016
    %v1130 = vsub.f32 %v1098, %v1019
    %v1131 = vsub.f32 %v1099, %v1022
    %v1132 = vsub.f32 %v1100, %v1025
    %v1133 = vsub.f32 %v1101, %v1028
    %v1134 = vsub.f32 %v1102, %v1031
    %v1135 = vsub.f32 %v1103, %v1034
    %v1136 = vsub.f32 %v1104, %v1037
    %v1137 = vsub.f32 %v1105, %v1040
    %v1138 = vsub.f32 %v1106, %v1043
    %v1139 = vsub.f32 %v1107, %v1046
    %v1140 = vsub.f32 %v1108, %v1049
    %v1141 = vsub.f32 %v1109, %v1052
    %v1142 = vsub.f32 %v1110, %v1055
    %v1143 = vsub.f32 %v1111, %v1058
    %v1144 = vsub.f32 %v1112, %v1061
    %v1145 = vsub.f32 %v1113, %v1064
    %v1146 = vsub.f32 %v1114, %v1067
    %v1147 = vsub.f32 %v1115, %v1070
    %v1148 = vsub.f32 %v1116, %v1073
    %v1149 = vsub.f32 %v1117, %v1076
    %v1150 = vsub.f32 %v1118, %v1079
    %v1151 = vsub.f32 %v1119, %v1082
    %v1152 = vld [vmem:[%s8] sm:$0x1]
    %v1154 = vperm.slane %v1152, 0
    %v1156 = vadd.f32 %v1120, %v1154
    %v1157 = vadd.f32 %v1121, %v1154
    %v1158 = vadd.f32 %v1122, %v1154
    %v1159 = vadd.f32 %v1123, %v1154
    %v1160 = vadd.f32 %v1124, %v1154
    %v1161 = vadd.f32 %v1125, %v1154
    %v1162 = vadd.f32 %v1126, %v1154
    %v1163 = vadd.f32 %v1127, %v1154
    %v1164 = vadd.f32 %v1128, %v1154
    %v1165 = vadd.f32 %v1129, %v1154
    %v1166 = vadd.f32 %v1130, %v1154
    %v1167 = vadd.f32 %v1131, %v1154
    %v1168 = vadd.f32 %v1132, %v1154
    %v1169 = vadd.f32 %v1133, %v1154
    %v1170 = vadd.f32 %v1134, %v1154
    %v1171 = vadd.f32 %v1135, %v1154
    %v1172 = vadd.f32 %v1136, %v1154
    %v1173 = vadd.f32 %v1137, %v1154
    %v1174 = vadd.f32 %v1138, %v1154
    %v1175 = vadd.f32 %v1139, %v1154
    %v1176 = vadd.f32 %v1140, %v1154
    %v1177 = vadd.f32 %v1141, %v1154
    %v1178 = vadd.f32 %v1142, %v1154
    %v1179 = vadd.f32 %v1143, %v1154
    %v1180 = vadd.f32 %v1144, %v1154
    %v1181 = vadd.f32 %v1145, %v1154
    %v1182 = vadd.f32 %v1146, %v1154
    %v1183 = vadd.f32 %v1147, %v1154
    %v1184 = vadd.f32 %v1148, %v1154
    %v1185 = vadd.f32 %v1149, %v1154
    %v1186 = vadd.f32 %v1150, %v1154
    %v1187 = vadd.f32 %v1151, %v1154
    %v1188 = vmax.f32 %v1156, 0.0
    %v1189 = vmax.f32 %v1157, 0.0
    %v1190 = vmax.f32 %v1158, 0.0
    %v1191 = vmax.f32 %v1159, 0.0
    %v1192 = vmax.f32 %v1160, 0.0
    %v1193 = vmax.f32 %v1161, 0.0
    %v1194 = vmax.f32 %v1162, 0.0
    %v1195 = vmax.f32 %v1163, 0.0
    %v1196 = vmax.f32 %v1164, 0.0
    %v1197 = vmax.f32 %v1165, 0.0
    %v1198 = vmax.f32 %v1166, 0.0
    %v1199 = vmax.f32 %v1167, 0.0
    %v1200 = vmax.f32 %v1168, 0.0
    %v1201 = vmax.f32 %v1169, 0.0
    %v1202 = vmax.f32 %v1170, 0.0
    %v1203 = vmax.f32 %v1171, 0.0
    %v1204 = vmax.f32 %v1172, 0.0
    %v1205 = vmax.f32 %v1173, 0.0
    %v1206 = vmax.f32 %v1174, 0.0
    %v1207 = vmax.f32 %v1175, 0.0
    %v1208 = vmax.f32 %v1176, 0.0
    %v1209 = vmax.f32 %v1177, 0.0
    %v1210 = vmax.f32 %v1178, 0.0
    %v1211 = vmax.f32 %v1179, 0.0
    %v1212 = vmax.f32 %v1180, 0.0
    %v1213 = vmax.f32 %v1181, 0.0
    %v1214 = vmax.f32 %v1182, 0.0
    %v1215 = vmax.f32 %v1183, 0.0
    %v1216 = vmax.f32 %v1184, 0.0
    %v1217 = vmax.f32 %v1185, 0.0
    %v1218 = vmax.f32 %v1186, 0.0
    %v1219 = vmax.f32 %v1187, 0.0
    %v1220 = vsub.f32 0.0, %v1188
    %v1221 = vsub.f32 0.0, %v1189
    %v1222 = vsub.f32 0.0, %v1190
    %v1223 = vsub.f32 0.0, %v1191
    %v1224 = vsub.f32 0.0, %v1192
    %v1225 = vsub.f32 0.0, %v1193
    %v1226 = vsub.f32 0.0, %v1194
    %v1227 = vsub.f32 0.0, %v1195
    %v1228 = vsub.f32 0.0, %v1196
    %v1229 = vsub.f32 0.0, %v1197
    %v1230 = vsub.f32 0.0, %v1198
    %v1231 = vsub.f32 0.0, %v1199
    %v1232 = vsub.f32 0.0, %v1200
    %v1233 = vsub.f32 0.0, %v1201
    %v1234 = vsub.f32 0.0, %v1202
    %v1235 = vsub.f32 0.0, %v1203
    %v1236 = vsub.f32 0.0, %v1204
    %v1237 = vsub.f32 0.0, %v1205
    %v1238 = vsub.f32 0.0, %v1206
    %v1239 = vsub.f32 0.0, %v1207
    %v1240 = vsub.f32 0.0, %v1208
    %v1241 = vsub.f32 0.0, %v1209
    %v1242 = vsub.f32 0.0, %v1210
    %v1243 = vsub.f32 0.0, %v1211
    %v1244 = vsub.f32 0.0, %v1212
    %v1245 = vsub.f32 0.0, %v1213
    %v1246 = vsub.f32 0.0, %v1214
    %v1247 = vsub.f32 0.0, %v1215
    %v1248 = vsub.f32 0.0, %v1216
    %v1249 = vsub.f32 0.0, %v1217
    %v1250 = vsub.f32 0.0, %v1218
    %v1251 = vsub.f32 0.0, %v1219
    %v1252 = vmul.f32 %v1220, 1.442695
    %v1253 = vpow.pop %v1252
    %v1254 = vmul.f32 %v1221, 1.442695
    %v1255 = vpow.pop %v1254
    %v1256 = vmul.f32 %v1222, 1.442695
    %v1257 = vpow.pop %v1256
    %v1258 = vmul.f32 %v1223, 1.442695
    %v1259 = vpow.pop %v1258
    %v1260 = vmul.f32 %v1224, 1.442695
    %v1261 = vpow.pop %v1260
    %v1262 = vmul.f32 %v1225, 1.442695
    %v1263 = vpow.pop %v1262
    %v1264 = vmul.f32 %v1226, 1.442695
    %v1265 = vpow.pop %v1264
    %v1266 = vmul.f32 %v1227, 1.442695
    %v1267 = vpow.pop %v1266
    %v1268 = vmul.f32 %v1228, 1.442695
    %v1269 = vpow.pop %v1268
    %v1270 = vmul.f32 %v1229, 1.442695
    %v1271 = vpow.pop %v1270
    %v1272 = vmul.f32 %v1230, 1.442695
    %v1273 = vpow.pop %v1272
    %v1274 = vmul.f32 %v1231, 1.442695
    %v1275 = vpow.pop %v1274
    %v1276 = vmul.f32 %v1232, 1.442695
    %v1277 = vpow.pop %v1276
    %v1278 = vmul.f32 %v1233, 1.442695
    %v1279 = vpow.pop %v1278
    %v1280 = vmul.f32 %v1234, 1.442695
    %v1281 = vpow.pop %v1280
    %v1282 = vmul.f32 %v1235, 1.442695
    %v1283 = vpow.pop %v1282
    %v1284 = vmul.f32 %v1236, 1.442695
    %v1285 = vpow.pop %v1284
    %v1286 = vmul.f32 %v1237, 1.442695
    %v1287 = vpow.pop %v1286
    %v1288 = vmul.f32 %v1238, 1.442695
    %v1289 = vpow.pop %v1288
    %v1290 = vmul.f32 %v1239, 1.442695
    %v1291 = vpow.pop %v1290
    %v1292 = vmul.f32 %v1240, 1.442695
    %v1293 = vpow.pop %v1292
    %v1294 = vmul.f32 %v1241, 1.442695
    %v1295 = vpow.pop %v1294
    %v1296 = vmul.f32 %v1242, 1.442695
    %v1297 = vpow.pop %v1296
    %v1298 = vmul.f32 %v1243, 1.442695
    %v1299 = vpow.pop %v1298
    %v1300 = vmul.f32 %v1244, 1.442695
    %v1301 = vpow.pop %v1300
    %v1302 = vmul.f32 %v1245, 1.442695
    %v1303 = vpow.pop %v1302
    %v1304 = vmul.f32 %v1246, 1.442695
    %v1305 = vpow.pop %v1304
    %v1306 = vmul.f32 %v1247, 1.442695
    %v1307 = vpow.pop %v1306
    %v1308 = vmul.f32 %v1248, 1.442695
    %v1309 = vpow.pop %v1308
    %v1310 = vmul.f32 %v1249, 1.442695
    %v1311 = vpow.pop %v1310
    %v1312 = vmul.f32 %v1250, 1.442695
    %v1313 = vpow.pop %v1312
    %v1314 = vmul.f32 %v1251, 1.442695
    %v1315 = vpow.pop %v1314
    %v1316 = vtanh.pop %v1253
    %v1317 = vtanh.pop %v1255
    %v1318 = vtanh.pop %v1257
    %v1319 = vtanh.pop %v1259
    %v1320 = vtanh.pop %v1261
    %v1321 = vtanh.pop %v1263
    %v1322 = vtanh.pop %v1265
    %v1323 = vtanh.pop %v1267
    %v1324 = vtanh.pop %v1269
    %v1325 = vtanh.pop %v1271
    %v1326 = vtanh.pop %v1273
    %v1327 = vtanh.pop %v1275
    %v1328 = vtanh.pop %v1277
    %v1329 = vtanh.pop %v1279
    %v1330 = vtanh.pop %v1281
    %v1331 = vtanh.pop %v1283
    %v1332 = vtanh.pop %v1285
    %v1333 = vtanh.pop %v1287
    %v1334 = vtanh.pop %v1289
    %v1335 = vtanh.pop %v1291
    %v1336 = vtanh.pop %v1293
    %v1337 = vtanh.pop %v1295
    %v1338 = vtanh.pop %v1297
    %v1339 = vtanh.pop %v1299
    %v1340 = vtanh.pop %v1301
    %v1341 = vtanh.pop %v1303
    %v1342 = vtanh.pop %v1305
    %v1343 = vtanh.pop %v1307
    %v1344 = vtanh.pop %v1309
    %v1345 = vtanh.pop %v1311
    %v1346 = vtanh.pop %v1313
    %v1347 = vtanh.pop %v1315
    %v1348 = vld [vmem:[%s10] sm:$0xff]
    %v1349 = vld [vmem:[%s10 + $0x8] sm:$0xff]
    %v1350 = vld [vmem:[%s10 + $0x10] sm:$0xff]
    %v1351 = vld [vmem:[%s10 + $0x18] sm:$0xff]
    %v1352 = vld [vmem:[%s10 + $0x20] sm:$0xff]
    %v1353 = vld [vmem:[%s10 + $0x28] sm:$0xff]
    %v1354 = vld [vmem:[%s10 + $0x30] sm:$0xff]
    %v1355 = vld [vmem:[%s10 + $0x38] sm:$0xff]
    %v1356 = vld [vmem:[%s10 + $0x40] sm:$0xff]
    %v1357 = vld [vmem:[%s10 + $0x48] sm:$0xff]
    %v1358 = vld [vmem:[%s10 + $0x50] sm:$0xff]
    %v1359 = vld [vmem:[%s10 + $0x58] sm:$0xff]
    %v1360 = vld [vmem:[%s10 + $0x60] sm:$0xff]
    %v1361 = vld [vmem:[%s10 + $0x68] sm:$0xff]
    %v1362 = vld [vmem:[%s10 + $0x70] sm:$0xff]
    %v1363 = vld [vmem:[%s10 + $0x78] sm:$0xff]
    %v1364 = vld [vmem:[%s11] sm:$0x1]
    %v1366 = vperm.slane %v1364, 0
    %1368 = vmatpush.msra.mxu0 %v1363
    %1369 = vmatpush.msra.mxu0 %v1362
    %1370 = vmatpush.msra.mxu0 %v1361
    %1371 = vmatpush.msra.mxu0 %v1360
    %1372 = vmatpush.msra.mxu0 %v1359
    %1373 = vmatpush.msra.mxu0 %v1358
    %1374 = vmatpush.msra.mxu0 %v1357
    %1375 = vmatpush.msra.mxu0 %v1356
    %1376 = vmatpush.msra.mxu0 %v1355
    %1377 = vmatpush.msra.mxu0 %v1354
    %1378 = vmatpush.msra.mxu0 %v1353
    %1379 = vmatpush.msra.mxu0 %v1352
    %1380 = vmatpush.msra.mxu0 %v1351
    %1381 = vmatpush.msra.mxu0 %v1350
    %1382 = vmatpush.msra.mxu0 %v1349
    %1383 = vmatpush.msra.mxu0 %v1348
    %1384 = vmatmul.f32.gmra.mxu0 %v1316
    %v1385 = vpop.f32.mrf.mxu0
    %v1386 = vadd.f32 %v1366, %v1385
    %1387 = vmatmul.f32.gmra.mxu0 %v1317
    %v1388 = vpop.f32.mrf.mxu0
    %v1389 = vadd.f32 %v1366, %v1388
    %1390 = vmatmul.f32.gmra.mxu0 %v1318
    %v1391 = vpop.f32.mrf.mxu0
    %v1392 = vadd.f32 %v1366, %v1391
    %1393 = vmatmul.f32.gmra.mxu0 %v1319
    %v1394 = vpop.f32.mrf.mxu0
    %v1395 = vadd.f32 %v1366, %v1394
    %1396 = vmatmul.f32.gmra.mxu0 %v1320
    %v1397 = vpop.f32.mrf.mxu0
    %v1398 = vadd.f32 %v1366, %v1397
    %1399 = vmatmul.f32.gmra.mxu0 %v1321
    %v1400 = vpop.f32.mrf.mxu0
    %v1401 = vadd.f32 %v1366, %v1400
    %1402 = vmatmul.f32.gmra.mxu0 %v1322
    %v1403 = vpop.f32.mrf.mxu0
    %v1404 = vadd.f32 %v1366, %v1403
    %1405 = vmatmul.f32.gmra.mxu0 %v1323
    %v1406 = vpop.f32.mrf.mxu0
    %v1407 = vadd.f32 %v1366, %v1406
    %1408 = vmatmul.f32.gmra.mxu0 %v1324
    %v1409 = vpop.f32.mrf.mxu0
    %v1410 = vadd.f32 %v1366, %v1409
    %1411 = vmatmul.f32.gmra.mxu0 %v1325
    %v1412 = vpop.f32.mrf.mxu0
    %v1413 = vadd.f32 %v1366, %v1412
    %1414 = vmatmul.f32.gmra.mxu0 %v1326
    %v1415 = vpop.f32.mrf.mxu0
    %v1416 = vadd.f32 %v1366, %v1415
    %1417 = vmatmul.f32.gmra.mxu0 %v1327
    %v1418 = vpop.f32.mrf.mxu0
    %v1419 = vadd.f32 %v1366, %v1418
    %1420 = vmatmul.f32.gmra.mxu0 %v1328
    %v1421 = vpop.f32.mrf.mxu0
    %v1422 = vadd.f32 %v1366, %v1421
    %1423 = vmatmul.f32.gmra.mxu0 %v1329
    %v1424 = vpop.f32.mrf.mxu0
    %v1425 = vadd.f32 %v1366, %v1424
    %1426 = vmatmul.f32.gmra.mxu0 %v1330
    %v1427 = vpop.f32.mrf.mxu0
    %v1428 = vadd.f32 %v1366, %v1427
    %1429 = vmatmul.f32.gmra.mxu0 %v1331
    %v1430 = vpop.f32.mrf.mxu0
    %v1431 = vadd.f32 %v1366, %v1430
    %1432 = vmatmul.f32.gmra.mxu0 %v1332
    %v1433 = vpop.f32.mrf.mxu0
    %v1434 = vadd.f32 %v1366, %v1433
    %1435 = vmatmul.f32.gmra.mxu0 %v1333
    %v1436 = vpop.f32.mrf.mxu0
    %v1437 = vadd.f32 %v1366, %v1436
    %1438 = vmatmul.f32.gmra.mxu0 %v1334
    %v1439 = vpop.f32.mrf.mxu0
    %v1440 = vadd.f32 %v1366, %v1439
    %1441 = vmatmul.f32.gmra.mxu0 %v1335
    %v1442 = vpop.f32.mrf.mxu0
    %v1443 = vadd.f32 %v1366, %v1442
    %1444 = vmatmul.f32.gmra.mxu0 %v1336
    %v1445 = vpop.f32.mrf.mxu0
    %v1446 = vadd.f32 %v1366, %v1445
    %1447 = vmatmul.f32.gmra.mxu0 %v1337
    %v1448 = vpop.f32.mrf.mxu0
    %v1449 = vadd.f32 %v1366, %v1448
    %1450 = vmatmul.f32.gmra.mxu0 %v1338
    %v1451 = vpop.f32.mrf.mxu0
    %v1452 = vadd.f32 %v1366, %v1451
    %1453 = vmatmul.f32.gmra.mxu0 %v1339
    %v1454 = vpop.f32.mrf.mxu0
    %v1455 = vadd.f32 %v1366, %v1454
    %1456 = vmatmul.f32.gmra.mxu0 %v1340
    %v1457 = vpop.f32.mrf.mxu0
    %v1458 = vadd.f32 %v1366, %v1457
    %1459 = vmatmul.f32.gmra.mxu0 %v1341
    %v1460 = vpop.f32.mrf.mxu0
    %v1461 = vadd.f32 %v1366, %v1460
    %1462 = vmatmul.f32.gmra.mxu0 %v1342
    %v1463 = vpop.f32.mrf.mxu0
    %v1464 = vadd.f32 %v1366, %v1463
    %1465 = vmatmul.f32.gmra.mxu0 %v1343
    %v1466 = vpop.f32.mrf.mxu0
    %v1467 = vadd.f32 %v1366, %v1466
    %1468 = vmatmul.f32.gmra.mxu0 %v1344
    %v1469 = vpop.f32.mrf.mxu0
    %v1470 = vadd.f32 %v1366, %v1469
    %1471 = vmatmul.f32.gmra.mxu0 %v1345
    %v1472 = vpop.f32.mrf.mxu0
    %v1473 = vadd.f32 %v1366, %v1472
    %1474 = vmatmul.f32.gmra.mxu0 %v1346
    %v1475 = vpop.f32.mrf.mxu0
    %v1476 = vadd.f32 %v1366, %v1475
    %1477 = vmatmul.f32.gmra.mxu0 %v1347
    %v1478 = vpop.f32.mrf.mxu0
    %v1479 = vadd.f32 %v1366, %v1478
    %1480 = vdwg.mxu0
    %v1481 = vld [vmem:[%s12] sm:$0xff]
    %v1482 = vld [vmem:[%s12 + $0x8] sm:$0xff]
    %v1483 = vld [vmem:[%s12 + $0x10] sm:$0xff]
    %v1484 = vld [vmem:[%s12 + $0x18] sm:$0xff]
    %v1485 = vld [vmem:[%s12 + $0x20] sm:$0xff]
    %v1486 = vld [vmem:[%s12 + $0x28] sm:$0xff]
    %v1487 = vld [vmem:[%s12 + $0x30] sm:$0xff]
    %v1488 = vld [vmem:[%s12 + $0x38] sm:$0xff]
    %v1489 = vld [vmem:[%s12 + $0x40] sm:$0xff]
    %v1490 = vld [vmem:[%s12 + $0x48] sm:$0xff]
    %v1491 = vld [vmem:[%s12 + $0x50] sm:$0xff]
    %v1492 = vld [vmem:[%s12 + $0x58] sm:$0xff]
    %v1493 = vld [vmem:[%s12 + $0x60] sm:$0xff]
    %v1494 = vld [vmem:[%s12 + $0x68] sm:$0xff]
    %v1495 = vld [vmem:[%s12 + $0x70] sm:$0xff]
    %v1496 = vld [vmem:[%s12 + $0x78] sm:$0xff]
    %v1497 = vld [vmem:[%s13] sm:$0x1]
    %v1499 = vperm.slane %v1497, 0
    %1501 = vmatpush.msra.mxu0 %v1496
    %1502 = vmatpush.msra.mxu0 %v1495
    %1503 = vmatpush.msra.mxu0 %v1494
    %1504 = vmatpush.msra.mxu0 %v1493
    %1505 = vmatpush.msra.mxu0 %v1492
    %1506 = vmatpush.msra.mxu0 %v1491
    %1507 = vmatpush.msra.mxu0 %v1490
    %1508 = vmatpush.msra.mxu0 %v1489
    %1509 = vmatpush.msra.mxu0 %v1488
    %1510 = vmatpush.msra.mxu0 %v1487
    %1511 = vmatpush.msra.mxu0 %v1486
    %1512 = vmatpush.msra.mxu0 %v1485
    %1513 = vmatpush.msra.mxu0 %v1484
    %1514 = vmatpush.msra.mxu0 %v1483
    %1515 = vmatpush.msra.mxu0 %v1482
    %1516 = vmatpush.msra.mxu0 %v1481
    %1517 = vmatmul.f32.gmra.mxu0 %v1316
    %v1518 = vpop.f32.mrf.mxu0
    %v1519 = vadd.f32 %v1499, %v1518
    %1520 = vmatmul.f32.gmra.mxu0 %v1317
    %v1521 = vpop.f32.mrf.mxu0
    %v1522 = vadd.f32 %v1499, %v1521
    %1523 = vmatmul.f32.gmra.mxu0 %v1318
    %v1524 = vpop.f32.mrf.mxu0
    %v1525 = vadd.f32 %v1499, %v1524
    %1526 = vmatmul.f32.gmra.mxu0 %v1319
    %v1527 = vpop.f32.mrf.mxu0
    %v1528 = vadd.f32 %v1499, %v1527
    %1529 = vmatmul.f32.gmra.mxu0 %v1320
    %v1530 = vpop.f32.mrf.mxu0
    %v1531 = vadd.f32 %v1499, %v1530
    %1532 = vmatmul.f32.gmra.mxu0 %v1321
    %v1533 = vpop.f32.mrf.mxu0
    %v1534 = vadd.f32 %v1499, %v1533
    %1535 = vmatmul.f32.gmra.mxu0 %v1322
    %v1536 = vpop.f32.mrf.mxu0
    %v1537 = vadd.f32 %v1499, %v1536
    %1538 = vmatmul.f32.gmra.mxu0 %v1323
    %v1539 = vpop.f32.mrf.mxu0
    %v1540 = vadd.f32 %v1499, %v1539
    %1541 = vmatmul.f32.gmra.mxu0 %v1324
    %v1542 = vpop.f32.mrf.mxu0
    %v1543 = vadd.f32 %v1499, %v1542
    %1544 = vmatmul.f32.gmra.mxu0 %v1325
    %v1545 = vpop.f32.mrf.mxu0
    %v1546 = vadd.f32 %v1499, %v1545
    %1547 = vmatmul.f32.gmra.mxu0 %v1326
    %v1548 = vpop.f32.mrf.mxu0
    %v1549 = vadd.f32 %v1499, %v1548
    %1550 = vmatmul.f32.gmra.mxu0 %v1327
    %v1551 = vpop.f32.mrf.mxu0
    %v1552 = vadd.f32 %v1499, %v1551
    %1553 = vmatmul.f32.gmra.mxu0 %v1328
    %v1554 = vpop.f32.mrf.mxu0
    %v1555 = vadd.f32 %v1499, %v1554
    %1556 = vmatmul.f32.gmra.mxu0 %v1329
    %v1557 = vpop.f32.mrf.mxu0
    %v1558 = vadd.f32 %v1499, %v1557
    %1559 = vmatmul.f32.gmra.mxu0 %v1330
    %v1560 = vpop.f32.mrf.mxu0
    %v1561 = vadd.f32 %v1499, %v1560
    %1562 = vmatmul.f32.gmra.mxu0 %v1331
    %v1563 = vpop.f32.mrf.mxu0
    %v1564 = vadd.f32 %v1499, %v1563
    %1565 = vmatmul.f32.gmra.mxu0 %v1332
    %v1566 = vpop.f32.mrf.mxu0
    %v1567 = vadd.f32 %v1499, %v1566
    %1568 = vmatmul.f32.gmra.mxu0 %v1333
    %v1569 = vpop.f32.mrf.mxu0
    %v1570 = vadd.f32 %v1499, %v1569
    %1571 = vmatmul.f32.gmra.mxu0 %v1334
    %v1572 = vpop.f32.mrf.mxu0
    %v1573 = vadd.f32 %v1499, %v1572
    %1574 = vmatmul.f32.gmra.mxu0 %v1335
    %v1575 = vpop.f32.mrf.mxu0
    %v1576 = vadd.f32 %v1499, %v1575
    %1577 = vmatmul.f32.gmra.mxu0 %v1336
    %v1578 = vpop.f32.mrf.mxu0
    %v1579 = vadd.f32 %v1499, %v1578
    %1580 = vmatmul.f32.gmra.mxu0 %v1337
    %v1581 = vpop.f32.mrf.mxu0
    %v1582 = vadd.f32 %v1499, %v1581
    %1583 = vmatmul.f32.gmra.mxu0 %v1338
    %v1584 = vpop.f32.mrf.mxu0
    %v1585 = vadd.f32 %v1499, %v1584
    %1586 = vmatmul.f32.gmra.mxu0 %v1339
    %v1587 = vpop.f32.mrf.mxu0
    %v1588 = vadd.f32 %v1499, %v1587
    %1589 = vmatmul.f32.gmra.mxu0 %v1340
    %v1590 = vpop.f32.mrf.mxu0
    %v1591 = vadd.f32 %v1499, %v1590
    %1592 = vmatmul.f32.gmra.mxu0 %v1341
    %v1593 = vpop.f32.mrf.mxu0
    %v1594 = vadd.f32 %v1499, %v1593
    %1595 = vmatmul.f32.gmra.mxu0 %v1342
    %v1596 = vpop.f32.mrf.mxu0
    %v1597 = vadd.f32 %v1499, %v1596
    %1598 = vmatmul.f32.gmra.mxu0 %v1343
    %v1599 = vpop.f32.mrf.mxu0
    %v1600 = vadd.f32 %v1499, %v1599
    %1601 = vmatmul.f32.gmra.mxu0 %v1344
    %v1602 = vpop.f32.mrf.mxu0
    %v1603 = vadd.f32 %v1499, %v1602
    %1604 = vmatmul.f32.gmra.mxu0 %v1345
    %v1605 = vpop.f32.mrf.mxu0
    %v1606 = vadd.f32 %v1499, %v1605
    %1607 = vmatmul.f32.gmra.mxu0 %v1346
    %v1608 = vpop.f32.mrf.mxu0
    %v1609 = vadd.f32 %v1499, %v1608
    %1610 = vmatmul.f32.gmra.mxu0 %v1347
    %v1611 = vpop.f32.mrf.mxu0
    %v1612 = vadd.f32 %v1499, %v1611
    %1613 = vdwg.mxu0
    %v1614 = vmul.f32 %v1519, 0.5
    %v1615 = vmul.f32 %v1522, 0.5
    %v1616 = vmul.f32 %v1525, 0.5
    %v1617 = vmul.f32 %v1528, 0.5
    %v1618 = vmul.f32 %v1531, 0.5
    %v1619 = vmul.f32 %v1534, 0.5
    %v1620 = vmul.f32 %v1537, 0.5
    %v1621 = vmul.f32 %v1540, 0.5
    %v1622 = vmul.f32 %v1543, 0.5
    %v1623 = vmul.f32 %v1546, 0.5
    %v1624 = vmul.f32 %v1549, 0.5
    %v1625 = vmul.f32 %v1552, 0.5
    %v1626 = vmul.f32 %v1555, 0.5
    %v1627 = vmul.f32 %v1558, 0.5
    %v1628 = vmul.f32 %v1561, 0.5
    %v1629 = vmul.f32 %v1564, 0.5
    %v1630 = vmul.f32 %v1567, 0.5
    %v1631 = vmul.f32 %v1570, 0.5
    %v1632 = vmul.f32 %v1573, 0.5
    %v1633 = vmul.f32 %v1576, 0.5
    %v1634 = vmul.f32 %v1579, 0.5
    %v1635 = vmul.f32 %v1582, 0.5
    %v1636 = vmul.f32 %v1585, 0.5
    %v1637 = vmul.f32 %v1588, 0.5
    %v1638 = vmul.f32 %v1591, 0.5
    %v1639 = vmul.f32 %v1594, 0.5
    %v1640 = vmul.f32 %v1597, 0.5
    %v1641 = vmul.f32 %v1600, 0.5
    %v1642 = vmul.f32 %v1603, 0.5
    %v1643 = vmul.f32 %v1606, 0.5
    %v1644 = vmul.f32 %v1609, 0.5
    %v1645 = vmul.f32 %v1612, 0.5
    %v1646 = vmul.f32 %v1614, 1.442695
    %v1647 = vpow.pop %v1646
    %v1648 = vmul.f32 %v1615, 1.442695
    %v1649 = vpow.pop %v1648
    %v1650 = vmul.f32 %v1616, 1.442695
    %v1651 = vpow.pop %v1650
    %v1652 = vmul.f32 %v1617, 1.442695
    %v1653 = vpow.pop %v1652
    %v1654 = vmul.f32 %v1618, 1.442695
    %v1655 = vpow.pop %v1654
    %v1656 = vmul.f32 %v1619, 1.442695
    %v1657 = vpow.pop %v1656
    %v1658 = vmul.f32 %v1620, 1.442695
    %v1659 = vpow.pop %v1658
    %v1660 = vmul.f32 %v1621, 1.442695
    %v1661 = vpow.pop %v1660
    %v1662 = vmul.f32 %v1622, 1.442695
    %v1663 = vpow.pop %v1662
    %v1664 = vmul.f32 %v1623, 1.442695
    %v1665 = vpow.pop %v1664
    %v1666 = vmul.f32 %v1624, 1.442695
    %v1667 = vpow.pop %v1666
    %v1668 = vmul.f32 %v1625, 1.442695
    %v1669 = vpow.pop %v1668
    %v1670 = vmul.f32 %v1626, 1.442695
    %v1671 = vpow.pop %v1670
    %v1672 = vmul.f32 %v1627, 1.442695
    %v1673 = vpow.pop %v1672
    %v1674 = vmul.f32 %v1628, 1.442695
    %v1675 = vpow.pop %v1674
    %v1676 = vmul.f32 %v1629, 1.442695
    %v1677 = vpow.pop %v1676
    %v1678 = vmul.f32 %v1630, 1.442695
    %v1679 = vpow.pop %v1678
    %v1680 = vmul.f32 %v1631, 1.442695
    %v1681 = vpow.pop %v1680
    %v1682 = vmul.f32 %v1632, 1.442695
    %v1683 = vpow.pop %v1682
    %v1684 = vmul.f32 %v1633, 1.442695
    %v1685 = vpow.pop %v1684
    %v1686 = vmul.f32 %v1634, 1.442695
    %v1687 = vpow.pop %v1686
    %v1688 = vmul.f32 %v1635, 1.442695
    %v1689 = vpow.pop %v1688
    %v1690 = vmul.f32 %v1636, 1.442695
    %v1691 = vpow.pop %v1690
    %v1692 = vmul.f32 %v1637, 1.442695
    %v1693 = vpow.pop %v1692
    %v1694 = vmul.f32 %v1638, 1.442695
    %v1695 = vpow.pop %v1694
    %v1696 = vmul.f32 %v1639, 1.442695
    %v1697 = vpow.pop %v1696
    %v1698 = vmul.f32 %v1640, 1.442695
    %v1699 = vpow.pop %v1698
    %v1700 = vmul.f32 %v1641, 1.442695
    %v1701 = vpow.pop %v1700
    %v1702 = vmul.f32 %v1642, 1.442695
    %v1703 = vpow.pop %v1702
    %v1704 = vmul.f32 %v1643, 1.442695
    %v1705 = vpow.pop %v1704
    %v1706 = vmul.f32 %v1644, 1.442695
    %v1707 = vpow.pop %v1706
    %v1708 = vmul.f32 %v1645, 1.442695
    %v1709 = vpow.pop %v1708
    %v1710 = vld [vmem:[%s1] sm:$0xff]
    %v1711 = vld [vmem:[%s1 + $0x8] sm:$0xff]
    %v1712 = vld [vmem:[%s1 + $0x10] sm:$0xff]
    %v1713 = vld [vmem:[%s1 + $0x18] sm:$0xff]
    %v1714 = vld [vmem:[%s1 + $0x20] sm:$0xff]
    %v1715 = vld [vmem:[%s1 + $0x28] sm:$0xff]
    %v1716 = vld [vmem:[%s1 + $0x30] sm:$0xff]
    %v1717 = vld [vmem:[%s1 + $0x38] sm:$0xff]
    %v1718 = vld [vmem:[%s1 + $0x40] sm:$0xff]
    %v1719 = vld [vmem:[%s1 + $0x48] sm:$0xff]
    %v1720 = vld [vmem:[%s1 + $0x50] sm:$0xff]
    %v1721 = vld [vmem:[%s1 + $0x58] sm:$0xff]
    %v1722 = vld [vmem:[%s1 + $0x60] sm:$0xff]
    %v1723 = vld [vmem:[%s1 + $0x68] sm:$0xff]
    %v1724 = vld [vmem:[%s1 + $0x70] sm:$0xff]
    %v1725 = vld [vmem:[%s1 + $0x78] sm:$0xff]
    %v1726 = vld [vmem:[%s1 + $0x80] sm:$0xff]
    %v1727 = vld [vmem:[%s1 + $0x88] sm:$0xff]
    %v1728 = vld [vmem:[%s1 + $0x90] sm:$0xff]
    %v1729 = vld [vmem:[%s1 + $0x98] sm:$0xff]
    %v1730 = vld [vmem:[%s1 + $0xa0] sm:$0xff]
    %v1731 = vld [vmem:[%s1 + $0xa8] sm:$0xff]
    %v1732 = vld [vmem:[%s1 + $0xb0] sm:$0xff]
    %v1733 = vld [vmem:[%s1 + $0xb8] sm:$0xff]
    %v1734 = vld [vmem:[%s1 + $0xc0] sm:$0xff]
    %v1735 = vld [vmem:[%s1 + $0xc8] sm:$0xff]
    %v1736 = vld [vmem:[%s1 + $0xd0] sm:$0xff]
    %v1737 = vld [vmem:[%s1 + $0xd8] sm:$0xff]
    %v1738 = vld [vmem:[%s1 + $0xe0] sm:$0xff]
    %v1739 = vld [vmem:[%s1 + $0xe8] sm:$0xff]
    %v1740 = vld [vmem:[%s1 + $0xf0] sm:$0xff]
    %v1741 = vld [vmem:[%s1 + $0xf8] sm:$0xff]
    %v1742 = vmul.f32 %v1710, %v1647
    %v1743 = vmul.f32 %v1711, %v1649
    %v1744 = vmul.f32 %v1712, %v1651
    %v1745 = vmul.f32 %v1713, %v1653
    %v1746 = vmul.f32 %v1714, %v1655
    %v1747 = vmul.f32 %v1715, %v1657
    %v1748 = vmul.f32 %v1716, %v1659
    %v1749 = vmul.f32 %v1717, %v1661
    %v1750 = vmul.f32 %v1718, %v1663
    %v1751 = vmul.f32 %v1719, %v1665
    %v1752 = vmul.f32 %v1720, %v1667
    %v1753 = vmul.f32 %v1721, %v1669
    %v1754 = vmul.f32 %v1722, %v1671
    %v1755 = vmul.f32 %v1723, %v1673
    %v1756 = vmul.f32 %v1724, %v1675
    %v1757 = vmul.f32 %v1725, %v1677
    %v1758 = vmul.f32 %v1726, %v1679
    %v1759 = vmul.f32 %v1727, %v1681
    %v1760 = vmul.f32 %v1728, %v1683
    %v1761 = vmul.f32 %v1729, %v1685
    %v1762 = vmul.f32 %v1730, %v1687
    %v1763 = vmul.f32 %v1731, %v1689
    %v1764 = vmul.f32 %v1732, %v1691
    %v1765 = vmul.f32 %v1733, %v1693
    %v1766 = vmul.f32 %v1734, %v1695
    %v1767 = vmul.f32 %v1735, %v1697
    %v1768 = vmul.f32 %v1736, %v1699
    %v1769 = vmul.f32 %v1737, %v1701
    %v1770 = vmul.f32 %v1738, %v1703
    %v1771 = vmul.f32 %v1739, %v1705
    %v1772 = vmul.f32 %v1740, %v1707
    %v1773 = vmul.f32 %v1741, %v1709
    %v1774 = vadd.f32 %v1386, %v1742
    %v1775 = vadd.f32 %v1389, %v1743
    %v1776 = vadd.f32 %v1392, %v1744
    %v1777 = vadd.f32 %v1395, %v1745
    %v1778 = vadd.f32 %v1398, %v1746
    %v1779 = vadd.f32 %v1401, %v1747
    %v1780 = vadd.f32 %v1404, %v1748
    %v1781 = vadd.f32 %v1407, %v1749
    %v1782 = vadd.f32 %v1410, %v1750
    %v1783 = vadd.f32 %v1413, %v1751
    %v1784 = vadd.f32 %v1416, %v1752
    %v1785 = vadd.f32 %v1419, %v1753
    %v1786 = vadd.f32 %v1422, %v1754
    %v1787 = vadd.f32 %v1425, %v1755
    %v1788 = vadd.f32 %v1428, %v1756
    %v1789 = vadd.f32 %v1431, %v1757
    %v1790 = vadd.f32 %v1434, %v1758
    %v1791 = vadd.f32 %v1437, %v1759
    %v1792 = vadd.f32 %v1440, %v1760
    %v1793 = vadd.f32 %v1443, %v1761
    %v1794 = vadd.f32 %v1446, %v1762
    %v1795 = vadd.f32 %v1449, %v1763
    %v1796 = vadd.f32 %v1452, %v1764
    %v1797 = vadd.f32 %v1455, %v1765
    %v1798 = vadd.f32 %v1458, %v1766
    %v1799 = vadd.f32 %v1461, %v1767
    %v1800 = vadd.f32 %v1464, %v1768
    %v1801 = vadd.f32 %v1467, %v1769
    %v1802 = vadd.f32 %v1470, %v1770
    %v1803 = vadd.f32 %v1473, %v1771
    %v1804 = vadd.f32 %v1476, %v1772
    %v1805 = vadd.f32 %v1479, %v1773
    %v1806 = vmul.f32 %v1774, %v1774
    %v1807 = vmul.f32 %v1775, %v1775
    %v1808 = vmul.f32 %v1776, %v1776
    %v1809 = vmul.f32 %v1777, %v1777
    %v1810 = vmul.f32 %v1778, %v1778
    %v1811 = vmul.f32 %v1779, %v1779
    %v1812 = vmul.f32 %v1780, %v1780
    %v1813 = vmul.f32 %v1781, %v1781
    %v1814 = vmul.f32 %v1782, %v1782
    %v1815 = vmul.f32 %v1783, %v1783
    %v1816 = vmul.f32 %v1784, %v1784
    %v1817 = vmul.f32 %v1785, %v1785
    %v1818 = vmul.f32 %v1786, %v1786
    %v1819 = vmul.f32 %v1787, %v1787
    %v1820 = vmul.f32 %v1788, %v1788
    %v1821 = vmul.f32 %v1789, %v1789
    %v1822 = vmul.f32 %v1790, %v1790
    %v1823 = vmul.f32 %v1791, %v1791
    %v1824 = vmul.f32 %v1792, %v1792
    %v1825 = vmul.f32 %v1793, %v1793
    %v1826 = vmul.f32 %v1794, %v1794
    %v1827 = vmul.f32 %v1795, %v1795
    %v1828 = vmul.f32 %v1796, %v1796
    %v1829 = vmul.f32 %v1797, %v1797
    %v1830 = vmul.f32 %v1798, %v1798
    %v1831 = vmul.f32 %v1799, %v1799
    %v1832 = vmul.f32 %v1800, %v1800
    %v1833 = vmul.f32 %v1801, %v1801
    %v1834 = vmul.f32 %v1802, %v1802
    %v1835 = vmul.f32 %v1803, %v1803
    %v1836 = vmul.f32 %v1804, %v1804
    %v1837 = vmul.f32 %v1805, %v1805
    %vm1838 = vcmask 64512
    %v1839 = vsel %vm1838, %v1806, 0.0
    %1840 = vadd.xlane.f32.xlu0 %v1839
    %v1841 = vpop.xlane.xlu0 %1840
    %v1842 = vsel %vm1838, %v1807, 0.0
    %1843 = vadd.xlane.f32.xlu0 %v1842
    %v1844 = vpop.xlane.xlu0 %1843
    %v1845 = vsel %vm1838, %v1808, 0.0
    %1846 = vadd.xlane.f32.xlu0 %v1845
    %v1847 = vpop.xlane.xlu0 %1846
    %v1848 = vsel %vm1838, %v1809, 0.0
    %1849 = vadd.xlane.f32.xlu0 %v1848
    %v1850 = vpop.xlane.xlu0 %1849
    %v1851 = vsel %vm1838, %v1810, 0.0
    %1852 = vadd.xlane.f32.xlu0 %v1851
    %v1853 = vpop.xlane.xlu0 %1852
    %v1854 = vsel %vm1838, %v1811, 0.0
    %1855 = vadd.xlane.f32.xlu0 %v1854
    %v1856 = vpop.xlane.xlu0 %1855
    %v1857 = vsel %vm1838, %v1812, 0.0
    %1858 = vadd.xlane.f32.xlu0 %v1857
    %v1859 = vpop.xlane.xlu0 %1858
    %v1860 = vsel %vm1838, %v1813, 0.0
    %1861 = vadd.xlane.f32.xlu0 %v1860
    %v1862 = vpop.xlane.xlu0 %1861
    %v1863 = vsel %vm1838, %v1814, 0.0
    %1864 = vadd.xlane.f32.xlu0 %v1863
    %v1865 = vpop.xlane.xlu0 %1864
    %v1866 = vsel %vm1838, %v1815, 0.0
    %1867 = vadd.xlane.f32.xlu0 %v1866
    %v1868 = vpop.xlane.xlu0 %1867
    %v1869 = vsel %vm1838, %v1816, 0.0
    %1870 = vadd.xlane.f32.xlu0 %v1869
    %v1871 = vpop.xlane.xlu0 %1870
    %v1872 = vsel %vm1838, %v1817, 0.0
    %1873 = vadd.xlane.f32.xlu0 %v1872
    %v1874 = vpop.xlane.xlu0 %1873
    %v1875 = vsel %vm1838, %v1818, 0.0
    %1876 = vadd.xlane.f32.xlu0 %v1875
    %v1877 = vpop.xlane.xlu0 %1876
    %v1878 = vsel %vm1838, %v1819, 0.0
    %1879 = vadd.xlane.f32.xlu0 %v1878
    %v1880 = vpop.xlane.xlu0 %1879
    %v1881 = vsel %vm1838, %v1820, 0.0
    %1882 = vadd.xlane.f32.xlu0 %v1881
    %v1883 = vpop.xlane.xlu0 %1882
    %v1884 = vsel %vm1838, %v1821, 0.0
    %1885 = vadd.xlane.f32.xlu0 %v1884
    %v1886 = vpop.xlane.xlu0 %1885
    %v1887 = vsel %vm1838, %v1822, 0.0
    %1888 = vadd.xlane.f32.xlu0 %v1887
    %v1889 = vpop.xlane.xlu0 %1888
    %v1890 = vsel %vm1838, %v1823, 0.0
    %1891 = vadd.xlane.f32.xlu0 %v1890
    %v1892 = vpop.xlane.xlu0 %1891
    %v1893 = vsel %vm1838, %v1824, 0.0
    %1894 = vadd.xlane.f32.xlu0 %v1893
    %v1895 = vpop.xlane.xlu0 %1894
    %v1896 = vsel %vm1838, %v1825, 0.0
    %1897 = vadd.xlane.f32.xlu0 %v1896
    %v1898 = vpop.xlane.xlu0 %1897
    %v1899 = vsel %vm1838, %v1826, 0.0
    %1900 = vadd.xlane.f32.xlu0 %v1899
    %v1901 = vpop.xlane.xlu0 %1900
    %v1902 = vsel %vm1838, %v1827, 0.0
    %1903 = vadd.xlane.f32.xlu0 %v1902
    %v1904 = vpop.xlane.xlu0 %1903
    %v1905 = vsel %vm1838, %v1828, 0.0
    %1906 = vadd.xlane.f32.xlu0 %v1905
    %v1907 = vpop.xlane.xlu0 %1906
    %v1908 = vsel %vm1838, %v1829, 0.0
    %1909 = vadd.xlane.f32.xlu0 %v1908
    %v1910 = vpop.xlane.xlu0 %1909
    %v1911 = vsel %vm1838, %v1830, 0.0
    %1912 = vadd.xlane.f32.xlu0 %v1911
    %v1913 = vpop.xlane.xlu0 %1912
    %v1914 = vsel %vm1838, %v1831, 0.0
    %1915 = vadd.xlane.f32.xlu0 %v1914
    %v1916 = vpop.xlane.xlu0 %1915
    %v1917 = vsel %vm1838, %v1832, 0.0
    %1918 = vadd.xlane.f32.xlu0 %v1917
    %v1919 = vpop.xlane.xlu0 %1918
    %v1920 = vsel %vm1838, %v1833, 0.0
    %1921 = vadd.xlane.f32.xlu0 %v1920
    %v1922 = vpop.xlane.xlu0 %1921
    %v1923 = vsel %vm1838, %v1834, 0.0
    %1924 = vadd.xlane.f32.xlu0 %v1923
    %v1925 = vpop.xlane.xlu0 %1924
    %v1926 = vsel %vm1838, %v1835, 0.0
    %1927 = vadd.xlane.f32.xlu0 %v1926
    %v1928 = vpop.xlane.xlu0 %1927
    %v1929 = vsel %vm1838, %v1836, 0.0
    %1930 = vadd.xlane.f32.xlu0 %v1929
    %v1931 = vpop.xlane.xlu0 %1930
    %v1932 = vsel %vm1838, %v1837, 0.0
    %1933 = vadd.xlane.f32.xlu0 %v1932
    %v1934 = vpop.xlane.xlu0 %1933
    %v1935 = vld [vmem:[%s14] sm:$0xff]
    %v1937 = vsel %vm1838, %v1774, 0
    %v1940 = vsel %vm1838, %v1775, 0
    %v1943 = vsel %vm1838, %v1776, 0
    %v1946 = vsel %vm1838, %v1777, 0
    %v1949 = vsel %vm1838, %v1778, 0
    %v1952 = vsel %vm1838, %v1779, 0
    %v1955 = vsel %vm1838, %v1780, 0
    %v1958 = vsel %vm1838, %v1781, 0
    %v1961 = vsel %vm1838, %v1782, 0
    %v1964 = vsel %vm1838, %v1783, 0
    %v1967 = vsel %vm1838, %v1784, 0
    %v1970 = vsel %vm1838, %v1785, 0
    %v1973 = vsel %vm1838, %v1786, 0
    %v1976 = vsel %vm1838, %v1787, 0
    %v1979 = vsel %vm1838, %v1788, 0
    %v1982 = vsel %vm1838, %v1789, 0
    %v1985 = vsel %vm1838, %v1790, 0
    %v1988 = vsel %vm1838, %v1791, 0
    %v1991 = vsel %vm1838, %v1792, 0
    %v1994 = vsel %vm1838, %v1793, 0
    %v1997 = vsel %vm1838, %v1794, 0
    %v2000 = vsel %vm1838, %v1795, 0
    %v2003 = vsel %vm1838, %v1796, 0
    %v2006 = vsel %vm1838, %v1797, 0
    %v2009 = vsel %vm1838, %v1798, 0
    %v2012 = vsel %vm1838, %v1799, 0
    %v2015 = vsel %vm1838, %v1800, 0
    %v2018 = vsel %vm1838, %v1801, 0
    %v2021 = vsel %vm1838, %v1802, 0
    %v2024 = vsel %vm1838, %v1803, 0
    %v2027 = vsel %vm1838, %v1804, 0
    %v2030 = vsel %vm1838, %v1805, 0
    %2032 = vmatpush.msra.mxu0 0.0
    %2033 = vmatpush.msra.mxu0 0.0
    %2034 = vmatpush.msra.mxu0 0.0
    %2035 = vmatpush.msra.mxu0 0.0
    %2036 = vmatpush.msra.mxu0 0.0
    %2037 = vmatpush.msra.mxu0 0.0
    %2038 = vmatpush.msra.mxu0 0.0
    %2039 = vmatpush.msra.mxu0 0.0
    %2040 = vmatpush.msra.mxu0 0.0
    %2041 = vmatpush.msra.mxu0 0.0
    %2042 = vmatpush.msra.mxu0 0.0
    %2043 = vmatpush.msra.mxu0 0.0
    %2044 = vmatpush.msra.mxu0 0.0
    %2045 = vmatpush.msra.mxu0 0.0
    %2046 = vmatpush.msra.mxu0 0.0
    %2047 = vmatpush.msra.mxu0 %v1935
    %2048 = vmatmul.f32.gmra.mxu0 %v1937
    %v2049 = vpop.f32.mrf.mxu0
    %v2050 = vadd.f32 0.0, %v2049
    %2051 = vmatmul.f32.gmra.mxu0 %v1940
    %v2052 = vpop.f32.mrf.mxu0
    %v2053 = vadd.f32 0.0, %v2052
    %2054 = vmatmul.f32.gmra.mxu0 %v1943
    %v2055 = vpop.f32.mrf.mxu0
    %v2056 = vadd.f32 0.0, %v2055
    %2057 = vmatmul.f32.gmra.mxu0 %v1946
    %v2058 = vpop.f32.mrf.mxu0
    %v2059 = vadd.f32 0.0, %v2058
    %2060 = vmatmul.f32.gmra.mxu0 %v1949
    %v2061 = vpop.f32.mrf.mxu0
    %v2062 = vadd.f32 0.0, %v2061
    %2063 = vmatmul.f32.gmra.mxu0 %v1952
    %v2064 = vpop.f32.mrf.mxu0
    %v2065 = vadd.f32 0.0, %v2064
    %2066 = vmatmul.f32.gmra.mxu0 %v1955
    %v2067 = vpop.f32.mrf.mxu0
    %v2068 = vadd.f32 0.0, %v2067
    %2069 = vmatmul.f32.gmra.mxu0 %v1958
    %v2070 = vpop.f32.mrf.mxu0
    %v2071 = vadd.f32 0.0, %v2070
    %2072 = vmatmul.f32.gmra.mxu0 %v1961
    %v2073 = vpop.f32.mrf.mxu0
    %v2074 = vadd.f32 0.0, %v2073
    %2075 = vmatmul.f32.gmra.mxu0 %v1964
    %v2076 = vpop.f32.mrf.mxu0
    %v2077 = vadd.f32 0.0, %v2076
    %2078 = vmatmul.f32.gmra.mxu0 %v1967
    %v2079 = vpop.f32.mrf.mxu0
    %v2080 = vadd.f32 0.0, %v2079
    %2081 = vmatmul.f32.gmra.mxu0 %v1970
    %v2082 = vpop.f32.mrf.mxu0
    %v2083 = vadd.f32 0.0, %v2082
    %2084 = vmatmul.f32.gmra.mxu0 %v1973
    %v2085 = vpop.f32.mrf.mxu0
    %v2086 = vadd.f32 0.0, %v2085
    %2087 = vmatmul.f32.gmra.mxu0 %v1976
    %v2088 = vpop.f32.mrf.mxu0
    %v2089 = vadd.f32 0.0, %v2088
    %2090 = vmatmul.f32.gmra.mxu0 %v1979
    %v2091 = vpop.f32.mrf.mxu0
    %v2092 = vadd.f32 0.0, %v2091
    %2093 = vmatmul.f32.gmra.mxu0 %v1982
    %v2094 = vpop.f32.mrf.mxu0
    %v2095 = vadd.f32 0.0, %v2094
    %2096 = vmatmul.f32.gmra.mxu0 %v1985
    %v2097 = vpop.f32.mrf.mxu0
    %v2098 = vadd.f32 0.0, %v2097
    %2099 = vmatmul.f32.gmra.mxu0 %v1988
    %v2100 = vpop.f32.mrf.mxu0
    %v2101 = vadd.f32 0.0, %v2100
    %2102 = vmatmul.f32.gmra.mxu0 %v1991
    %v2103 = vpop.f32.mrf.mxu0
    %v2104 = vadd.f32 0.0, %v2103
    %2105 = vmatmul.f32.gmra.mxu0 %v1994
    %v2106 = vpop.f32.mrf.mxu0
    %v2107 = vadd.f32 0.0, %v2106
    %2108 = vmatmul.f32.gmra.mxu0 %v1997
    %v2109 = vpop.f32.mrf.mxu0
    %v2110 = vadd.f32 0.0, %v2109
    %2111 = vmatmul.f32.gmra.mxu0 %v2000
    %v2112 = vpop.f32.mrf.mxu0
    %v2113 = vadd.f32 0.0, %v2112
    %2114 = vmatmul.f32.gmra.mxu0 %v2003
    %v2115 = vpop.f32.mrf.mxu0
    %v2116 = vadd.f32 0.0, %v2115
    %2117 = vmatmul.f32.gmra.mxu0 %v2006
    %v2118 = vpop.f32.mrf.mxu0
    %v2119 = vadd.f32 0.0, %v2118
    %2120 = vmatmul.f32.gmra.mxu0 %v2009
    %v2121 = vpop.f32.mrf.mxu0
    %v2122 = vadd.f32 0.0, %v2121
    %2123 = vmatmul.f32.gmra.mxu0 %v2012
    %v2124 = vpop.f32.mrf.mxu0
    %v2125 = vadd.f32 0.0, %v2124
    %2126 = vmatmul.f32.gmra.mxu0 %v2015
    %v2127 = vpop.f32.mrf.mxu0
    %v2128 = vadd.f32 0.0, %v2127
    %2129 = vmatmul.f32.gmra.mxu0 %v2018
    %v2130 = vpop.f32.mrf.mxu0
    %v2131 = vadd.f32 0.0, %v2130
    %2132 = vmatmul.f32.gmra.mxu0 %v2021
    %v2133 = vpop.f32.mrf.mxu0
    %v2134 = vadd.f32 0.0, %v2133
    %2135 = vmatmul.f32.gmra.mxu0 %v2024
    %v2136 = vpop.f32.mrf.mxu0
    %v2137 = vadd.f32 0.0, %v2136
    %2138 = vmatmul.f32.gmra.mxu0 %v2027
    %v2139 = vpop.f32.mrf.mxu0
    %v2140 = vadd.f32 0.0, %v2139
    %2141 = vmatmul.f32.gmra.mxu0 %v2030
    %v2142 = vpop.f32.mrf.mxu0
    %v2143 = vadd.f32 0.0, %v2142
    %2144 = vdwg.mxu0
    %v2145 = vld [vmem:[%s16] sm:$0x1]
    %v2147 = vperm.slane %v2145, 0
    %v2149 = vmul.f32 %v1841, %v2147
    %v2150 = vmul.f32 %v1844, %v2147
    %v2151 = vmul.f32 %v1847, %v2147
    %v2152 = vmul.f32 %v1850, %v2147
    %v2153 = vmul.f32 %v1853, %v2147
    %v2154 = vmul.f32 %v1856, %v2147
    %v2155 = vmul.f32 %v1859, %v2147
    %v2156 = vmul.f32 %v1862, %v2147
    %v2157 = vmul.f32 %v1865, %v2147
    %v2158 = vmul.f32 %v1868, %v2147
    %v2159 = vmul.f32 %v1871, %v2147
    %v2160 = vmul.f32 %v1874, %v2147
    %v2161 = vmul.f32 %v1877, %v2147
    %v2162 = vmul.f32 %v1880, %v2147
    %v2163 = vmul.f32 %v1883, %v2147
    %v2164 = vmul.f32 %v1886, %v2147
    %v2165 = vmul.f32 %v1889, %v2147
    %v2166 = vmul.f32 %v1892, %v2147
    %v2167 = vmul.f32 %v1895, %v2147
    %v2168 = vmul.f32 %v1898, %v2147
    %v2169 = vmul.f32 %v1901, %v2147
    %v2170 = vmul.f32 %v1904, %v2147
    %v2171 = vmul.f32 %v1907, %v2147
    %v2172 = vmul.f32 %v1910, %v2147
    %v2173 = vmul.f32 %v1913, %v2147
    %v2174 = vmul.f32 %v1916, %v2147
    %v2175 = vmul.f32 %v1919, %v2147
    %v2176 = vmul.f32 %v1922, %v2147
    %v2177 = vmul.f32 %v1925, %v2147
    %v2178 = vmul.f32 %v1928, %v2147
    %v2179 = vmul.f32 %v1931, %v2147
    %v2180 = vmul.f32 %v1934, %v2147
    %v2181 = vsub.f32 %v2149, %v2050
    %v2182 = vsub.f32 %v2150, %v2053
    %v2183 = vsub.f32 %v2151, %v2056
    %v2184 = vsub.f32 %v2152, %v2059
    %v2185 = vsub.f32 %v2153, %v2062
    %v2186 = vsub.f32 %v2154, %v2065
    %v2187 = vsub.f32 %v2155, %v2068
    %v2188 = vsub.f32 %v2156, %v2071
    %v2189 = vsub.f32 %v2157, %v2074
    %v2190 = vsub.f32 %v2158, %v2077
    %v2191 = vsub.f32 %v2159, %v2080
    %v2192 = vsub.f32 %v2160, %v2083
    %v2193 = vsub.f32 %v2161, %v2086
    %v2194 = vsub.f32 %v2162, %v2089
    %v2195 = vsub.f32 %v2163, %v2092
    %v2196 = vsub.f32 %v2164, %v2095
    %v2197 = vsub.f32 %v2165, %v2098
    %v2198 = vsub.f32 %v2166, %v2101
    %v2199 = vsub.f32 %v2167, %v2104
    %v2200 = vsub.f32 %v2168, %v2107
    %v2201 = vsub.f32 %v2169, %v2110
    %v2202 = vsub.f32 %v2170, %v2113
    %v2203 = vsub.f32 %v2171, %v2116
    %v2204 = vsub.f32 %v2172, %v2119
    %v2205 = vsub.f32 %v2173, %v2122
    %v2206 = vsub.f32 %v2174, %v2125
    %v2207 = vsub.f32 %v2175, %v2128
    %v2208 = vsub.f32 %v2176, %v2131
    %v2209 = vsub.f32 %v2177, %v2134
    %v2210 = vsub.f32 %v2178, %v2137
    %v2211 = vsub.f32 %v2179, %v2140
    %v2212 = vsub.f32 %v2180, %v2143
    %v2213 = vld [vmem:[%s15] sm:$0x1]
    %v2215 = vperm.slane %v2213, 0
    %v2217 = vadd.f32 %v2181, %v2215
    %v2218 = vadd.f32 %v2182, %v2215
    %v2219 = vadd.f32 %v2183, %v2215
    %v2220 = vadd.f32 %v2184, %v2215
    %v2221 = vadd.f32 %v2185, %v2215
    %v2222 = vadd.f32 %v2186, %v2215
    %v2223 = vadd.f32 %v2187, %v2215
    %v2224 = vadd.f32 %v2188, %v2215
    %v2225 = vadd.f32 %v2189, %v2215
    %v2226 = vadd.f32 %v2190, %v2215
    %v2227 = vadd.f32 %v2191, %v2215
    %v2228 = vadd.f32 %v2192, %v2215
    %v2229 = vadd.f32 %v2193, %v2215
    %v2230 = vadd.f32 %v2194, %v2215
    %v2231 = vadd.f32 %v2195, %v2215
    %v2232 = vadd.f32 %v2196, %v2215
    %v2233 = vadd.f32 %v2197, %v2215
    %v2234 = vadd.f32 %v2198, %v2215
    %v2235 = vadd.f32 %v2199, %v2215
    %v2236 = vadd.f32 %v2200, %v2215
    %v2237 = vadd.f32 %v2201, %v2215
    %v2238 = vadd.f32 %v2202, %v2215
    %v2239 = vadd.f32 %v2203, %v2215
    %v2240 = vadd.f32 %v2204, %v2215
    %v2241 = vadd.f32 %v2205, %v2215
    %v2242 = vadd.f32 %v2206, %v2215
    %v2243 = vadd.f32 %v2207, %v2215
    %v2244 = vadd.f32 %v2208, %v2215
    %v2245 = vadd.f32 %v2209, %v2215
    %v2246 = vadd.f32 %v2210, %v2215
    %v2247 = vadd.f32 %v2211, %v2215
    %v2248 = vadd.f32 %v2212, %v2215
    %v2249 = vmax.f32 %v2217, 0.0
    %v2250 = vmax.f32 %v2218, 0.0
    %v2251 = vmax.f32 %v2219, 0.0
    %v2252 = vmax.f32 %v2220, 0.0
    %v2253 = vmax.f32 %v2221, 0.0
    %v2254 = vmax.f32 %v2222, 0.0
    %v2255 = vmax.f32 %v2223, 0.0
    %v2256 = vmax.f32 %v2224, 0.0
    %v2257 = vmax.f32 %v2225, 0.0
    %v2258 = vmax.f32 %v2226, 0.0
    %v2259 = vmax.f32 %v2227, 0.0
    %v2260 = vmax.f32 %v2228, 0.0
    %v2261 = vmax.f32 %v2229, 0.0
    %v2262 = vmax.f32 %v2230, 0.0
    %v2263 = vmax.f32 %v2231, 0.0
    %v2264 = vmax.f32 %v2232, 0.0
    %v2265 = vmax.f32 %v2233, 0.0
    %v2266 = vmax.f32 %v2234, 0.0
    %v2267 = vmax.f32 %v2235, 0.0
    %v2268 = vmax.f32 %v2236, 0.0
    %v2269 = vmax.f32 %v2237, 0.0
    %v2270 = vmax.f32 %v2238, 0.0
    %v2271 = vmax.f32 %v2239, 0.0
    %v2272 = vmax.f32 %v2240, 0.0
    %v2273 = vmax.f32 %v2241, 0.0
    %v2274 = vmax.f32 %v2242, 0.0
    %v2275 = vmax.f32 %v2243, 0.0
    %v2276 = vmax.f32 %v2244, 0.0
    %v2277 = vmax.f32 %v2245, 0.0
    %v2278 = vmax.f32 %v2246, 0.0
    %v2279 = vmax.f32 %v2247, 0.0
    %v2280 = vmax.f32 %v2248, 0.0
    %v2281 = vsub.f32 0.0, %v2249
    %v2282 = vsub.f32 0.0, %v2250
    %v2283 = vsub.f32 0.0, %v2251
    %v2284 = vsub.f32 0.0, %v2252
    %v2285 = vsub.f32 0.0, %v2253
    %v2286 = vsub.f32 0.0, %v2254
    %v2287 = vsub.f32 0.0, %v2255
    %v2288 = vsub.f32 0.0, %v2256
    %v2289 = vsub.f32 0.0, %v2257
    %v2290 = vsub.f32 0.0, %v2258
    %v2291 = vsub.f32 0.0, %v2259
    %v2292 = vsub.f32 0.0, %v2260
    %v2293 = vsub.f32 0.0, %v2261
    %v2294 = vsub.f32 0.0, %v2262
    %v2295 = vsub.f32 0.0, %v2263
    %v2296 = vsub.f32 0.0, %v2264
    %v2297 = vsub.f32 0.0, %v2265
    %v2298 = vsub.f32 0.0, %v2266
    %v2299 = vsub.f32 0.0, %v2267
    %v2300 = vsub.f32 0.0, %v2268
    %v2301 = vsub.f32 0.0, %v2269
    %v2302 = vsub.f32 0.0, %v2270
    %v2303 = vsub.f32 0.0, %v2271
    %v2304 = vsub.f32 0.0, %v2272
    %v2305 = vsub.f32 0.0, %v2273
    %v2306 = vsub.f32 0.0, %v2274
    %v2307 = vsub.f32 0.0, %v2275
    %v2308 = vsub.f32 0.0, %v2276
    %v2309 = vsub.f32 0.0, %v2277
    %v2310 = vsub.f32 0.0, %v2278
    %v2311 = vsub.f32 0.0, %v2279
    %v2312 = vsub.f32 0.0, %v2280
    %v2313 = vmul.f32 %v2281, 1.442695
    %v2314 = vpow.pop %v2313
    %v2315 = vmul.f32 %v2282, 1.442695
    %v2316 = vpow.pop %v2315
    %v2317 = vmul.f32 %v2283, 1.442695
    %v2318 = vpow.pop %v2317
    %v2319 = vmul.f32 %v2284, 1.442695
    %v2320 = vpow.pop %v2319
    %v2321 = vmul.f32 %v2285, 1.442695
    %v2322 = vpow.pop %v2321
    %v2323 = vmul.f32 %v2286, 1.442695
    %v2324 = vpow.pop %v2323
    %v2325 = vmul.f32 %v2287, 1.442695
    %v2326 = vpow.pop %v2325
    %v2327 = vmul.f32 %v2288, 1.442695
    %v2328 = vpow.pop %v2327
    %v2329 = vmul.f32 %v2289, 1.442695
    %v2330 = vpow.pop %v2329
    %v2331 = vmul.f32 %v2290, 1.442695
    %v2332 = vpow.pop %v2331
    %v2333 = vmul.f32 %v2291, 1.442695
    %v2334 = vpow.pop %v2333
    %v2335 = vmul.f32 %v2292, 1.442695
    %v2336 = vpow.pop %v2335
    %v2337 = vmul.f32 %v2293, 1.442695
    %v2338 = vpow.pop %v2337
    %v2339 = vmul.f32 %v2294, 1.442695
    %v2340 = vpow.pop %v2339
    %v2341 = vmul.f32 %v2295, 1.442695
    %v2342 = vpow.pop %v2341
    %v2343 = vmul.f32 %v2296, 1.442695
    %v2344 = vpow.pop %v2343
    %v2345 = vmul.f32 %v2297, 1.442695
    %v2346 = vpow.pop %v2345
    %v2347 = vmul.f32 %v2298, 1.442695
    %v2348 = vpow.pop %v2347
    %v2349 = vmul.f32 %v2299, 1.442695
    %v2350 = vpow.pop %v2349
    %v2351 = vmul.f32 %v2300, 1.442695
    %v2352 = vpow.pop %v2351
    %v2353 = vmul.f32 %v2301, 1.442695
    %v2354 = vpow.pop %v2353
    %v2355 = vmul.f32 %v2302, 1.442695
    %v2356 = vpow.pop %v2355
    %v2357 = vmul.f32 %v2303, 1.442695
    %v2358 = vpow.pop %v2357
    %v2359 = vmul.f32 %v2304, 1.442695
    %v2360 = vpow.pop %v2359
    %v2361 = vmul.f32 %v2305, 1.442695
    %v2362 = vpow.pop %v2361
    %v2363 = vmul.f32 %v2306, 1.442695
    %v2364 = vpow.pop %v2363
    %v2365 = vmul.f32 %v2307, 1.442695
    %v2366 = vpow.pop %v2365
    %v2367 = vmul.f32 %v2308, 1.442695
    %v2368 = vpow.pop %v2367
    %v2369 = vmul.f32 %v2309, 1.442695
    %v2370 = vpow.pop %v2369
    %v2371 = vmul.f32 %v2310, 1.442695
    %v2372 = vpow.pop %v2371
    %v2373 = vmul.f32 %v2311, 1.442695
    %v2374 = vpow.pop %v2373
    %v2375 = vmul.f32 %v2312, 1.442695
    %v2376 = vpow.pop %v2375
    %v2377 = vld [vmem:[%s17] sm:$0xff]
    %v2378 = vld [vmem:[%s17 + $0x8] sm:$0xff]
    %v2379 = vld [vmem:[%s17 + $0x10] sm:$0xff]
    %v2380 = vld [vmem:[%s17 + $0x18] sm:$0xff]
    %v2381 = vld [vmem:[%s17 + $0x20] sm:$0xff]
    %v2382 = vld [vmem:[%s17 + $0x28] sm:$0xff]
    %v2383 = vld [vmem:[%s17 + $0x30] sm:$0xff]
    %v2384 = vld [vmem:[%s17 + $0x38] sm:$0xff]
    %v2385 = vld [vmem:[%s17 + $0x40] sm:$0xff]
    %v2386 = vld [vmem:[%s17 + $0x48] sm:$0xff]
    %v2387 = vld [vmem:[%s17 + $0x50] sm:$0xff]
    %v2388 = vld [vmem:[%s17 + $0x58] sm:$0xff]
    %v2389 = vld [vmem:[%s17 + $0x60] sm:$0xff]
    %v2390 = vld [vmem:[%s17 + $0x68] sm:$0xff]
    %v2391 = vld [vmem:[%s17 + $0x70] sm:$0xff]
    %v2392 = vld [vmem:[%s17 + $0x78] sm:$0xff]
    %v2393 = vld [vmem:[%s18] sm:$0x1]
    %v2395 = vperm.slane %v2393, 0
    %2397 = vmatpush.msra.mxu0 %v2392
    %2398 = vmatpush.msra.mxu0 %v2391
    %2399 = vmatpush.msra.mxu0 %v2390
    %2400 = vmatpush.msra.mxu0 %v2389
    %2401 = vmatpush.msra.mxu0 %v2388
    %2402 = vmatpush.msra.mxu0 %v2387
    %2403 = vmatpush.msra.mxu0 %v2386
    %2404 = vmatpush.msra.mxu0 %v2385
    %2405 = vmatpush.msra.mxu0 %v2384
    %2406 = vmatpush.msra.mxu0 %v2383
    %2407 = vmatpush.msra.mxu0 %v2382
    %2408 = vmatpush.msra.mxu0 %v2381
    %2409 = vmatpush.msra.mxu0 %v2380
    %2410 = vmatpush.msra.mxu0 %v2379
    %2411 = vmatpush.msra.mxu0 %v2378
    %2412 = vmatpush.msra.mxu0 %v2377
    %2413 = vmatmul.f32.gmra.mxu0 %v2314
    %v2414 = vpop.f32.mrf.mxu0
    %v2415 = vadd.f32 %v2395, %v2414
    %2416 = vmatmul.f32.gmra.mxu0 %v2316
    %v2417 = vpop.f32.mrf.mxu0
    %v2418 = vadd.f32 %v2395, %v2417
    %2419 = vmatmul.f32.gmra.mxu0 %v2318
    %v2420 = vpop.f32.mrf.mxu0
    %v2421 = vadd.f32 %v2395, %v2420
    %2422 = vmatmul.f32.gmra.mxu0 %v2320
    %v2423 = vpop.f32.mrf.mxu0
    %v2424 = vadd.f32 %v2395, %v2423
    %2425 = vmatmul.f32.gmra.mxu0 %v2322
    %v2426 = vpop.f32.mrf.mxu0
    %v2427 = vadd.f32 %v2395, %v2426
    %2428 = vmatmul.f32.gmra.mxu0 %v2324
    %v2429 = vpop.f32.mrf.mxu0
    %v2430 = vadd.f32 %v2395, %v2429
    %2431 = vmatmul.f32.gmra.mxu0 %v2326
    %v2432 = vpop.f32.mrf.mxu0
    %v2433 = vadd.f32 %v2395, %v2432
    %2434 = vmatmul.f32.gmra.mxu0 %v2328
    %v2435 = vpop.f32.mrf.mxu0
    %v2436 = vadd.f32 %v2395, %v2435
    %2437 = vmatmul.f32.gmra.mxu0 %v2330
    %v2438 = vpop.f32.mrf.mxu0
    %v2439 = vadd.f32 %v2395, %v2438
    %2440 = vmatmul.f32.gmra.mxu0 %v2332
    %v2441 = vpop.f32.mrf.mxu0
    %v2442 = vadd.f32 %v2395, %v2441
    %2443 = vmatmul.f32.gmra.mxu0 %v2334
    %v2444 = vpop.f32.mrf.mxu0
    %v2445 = vadd.f32 %v2395, %v2444
    %2446 = vmatmul.f32.gmra.mxu0 %v2336
    %v2447 = vpop.f32.mrf.mxu0
    %v2448 = vadd.f32 %v2395, %v2447
    %2449 = vmatmul.f32.gmra.mxu0 %v2338
    %v2450 = vpop.f32.mrf.mxu0
    %v2451 = vadd.f32 %v2395, %v2450
    %2452 = vmatmul.f32.gmra.mxu0 %v2340
    %v2453 = vpop.f32.mrf.mxu0
    %v2454 = vadd.f32 %v2395, %v2453
    %2455 = vmatmul.f32.gmra.mxu0 %v2342
    %v2456 = vpop.f32.mrf.mxu0
    %v2457 = vadd.f32 %v2395, %v2456
    %2458 = vmatmul.f32.gmra.mxu0 %v2344
    %v2459 = vpop.f32.mrf.mxu0
    %v2460 = vadd.f32 %v2395, %v2459
    %2461 = vmatmul.f32.gmra.mxu0 %v2346
    %v2462 = vpop.f32.mrf.mxu0
    %v2463 = vadd.f32 %v2395, %v2462
    %2464 = vmatmul.f32.gmra.mxu0 %v2348
    %v2465 = vpop.f32.mrf.mxu0
    %v2466 = vadd.f32 %v2395, %v2465
    %2467 = vmatmul.f32.gmra.mxu0 %v2350
    %v2468 = vpop.f32.mrf.mxu0
    %v2469 = vadd.f32 %v2395, %v2468
    %2470 = vmatmul.f32.gmra.mxu0 %v2352
    %v2471 = vpop.f32.mrf.mxu0
    %v2472 = vadd.f32 %v2395, %v2471
    %2473 = vmatmul.f32.gmra.mxu0 %v2354
    %v2474 = vpop.f32.mrf.mxu0
    %v2475 = vadd.f32 %v2395, %v2474
    %2476 = vmatmul.f32.gmra.mxu0 %v2356
    %v2477 = vpop.f32.mrf.mxu0
    %v2478 = vadd.f32 %v2395, %v2477
    %2479 = vmatmul.f32.gmra.mxu0 %v2358
    %v2480 = vpop.f32.mrf.mxu0
    %v2481 = vadd.f32 %v2395, %v2480
    %2482 = vmatmul.f32.gmra.mxu0 %v2360
    %v2483 = vpop.f32.mrf.mxu0
    %v2484 = vadd.f32 %v2395, %v2483
    %2485 = vmatmul.f32.gmra.mxu0 %v2362
    %v2486 = vpop.f32.mrf.mxu0
    %v2487 = vadd.f32 %v2395, %v2486
    %2488 = vmatmul.f32.gmra.mxu0 %v2364
    %v2489 = vpop.f32.mrf.mxu0
    %v2490 = vadd.f32 %v2395, %v2489
    %2491 = vmatmul.f32.gmra.mxu0 %v2366
    %v2492 = vpop.f32.mrf.mxu0
    %v2493 = vadd.f32 %v2395, %v2492
    %2494 = vmatmul.f32.gmra.mxu0 %v2368
    %v2495 = vpop.f32.mrf.mxu0
    %v2496 = vadd.f32 %v2395, %v2495
    %2497 = vmatmul.f32.gmra.mxu0 %v2370
    %v2498 = vpop.f32.mrf.mxu0
    %v2499 = vadd.f32 %v2395, %v2498
    %2500 = vmatmul.f32.gmra.mxu0 %v2372
    %v2501 = vpop.f32.mrf.mxu0
    %v2502 = vadd.f32 %v2395, %v2501
    %2503 = vmatmul.f32.gmra.mxu0 %v2374
    %v2504 = vpop.f32.mrf.mxu0
    %v2505 = vadd.f32 %v2395, %v2504
    %2506 = vmatmul.f32.gmra.mxu0 %v2376
    %v2507 = vpop.f32.mrf.mxu0
    %v2508 = vadd.f32 %v2395, %v2507
    %2509 = vdwg.mxu0
    %v2510 = vtanh.pop %v2415
    %v2511 = vtanh.pop %v2418
    %v2512 = vtanh.pop %v2421
    %v2513 = vtanh.pop %v2424
    %v2514 = vtanh.pop %v2427
    %v2515 = vtanh.pop %v2430
    %v2516 = vtanh.pop %v2433
    %v2517 = vtanh.pop %v2436
    %v2518 = vtanh.pop %v2439
    %v2519 = vtanh.pop %v2442
    %v2520 = vtanh.pop %v2445
    %v2521 = vtanh.pop %v2448
    %v2522 = vtanh.pop %v2451
    %v2523 = vtanh.pop %v2454
    %v2524 = vtanh.pop %v2457
    %v2525 = vtanh.pop %v2460
    %v2526 = vtanh.pop %v2463
    %v2527 = vtanh.pop %v2466
    %v2528 = vtanh.pop %v2469
    %v2529 = vtanh.pop %v2472
    %v2530 = vtanh.pop %v2475
    %v2531 = vtanh.pop %v2478
    %v2532 = vtanh.pop %v2481
    %v2533 = vtanh.pop %v2484
    %v2534 = vtanh.pop %v2487
    %v2535 = vtanh.pop %v2490
    %v2536 = vtanh.pop %v2493
    %v2537 = vtanh.pop %v2496
    %v2538 = vtanh.pop %v2499
    %v2539 = vtanh.pop %v2502
    %v2540 = vtanh.pop %v2505
    %v2541 = vtanh.pop %v2508
    %v2542 = vmul.f32 %v2510, %v2510
    %v2543 = vmul.f32 %v2511, %v2511
    %v2544 = vmul.f32 %v2512, %v2512
    %v2545 = vmul.f32 %v2513, %v2513
    %v2546 = vmul.f32 %v2514, %v2514
    %v2547 = vmul.f32 %v2515, %v2515
    %v2548 = vmul.f32 %v2516, %v2516
    %v2549 = vmul.f32 %v2517, %v2517
    %v2550 = vmul.f32 %v2518, %v2518
    %v2551 = vmul.f32 %v2519, %v2519
    %v2552 = vmul.f32 %v2520, %v2520
    %v2553 = vmul.f32 %v2521, %v2521
    %v2554 = vmul.f32 %v2522, %v2522
    %v2555 = vmul.f32 %v2523, %v2523
    %v2556 = vmul.f32 %v2524, %v2524
    %v2557 = vmul.f32 %v2525, %v2525
    %v2558 = vmul.f32 %v2526, %v2526
    %v2559 = vmul.f32 %v2527, %v2527
    %v2560 = vmul.f32 %v2528, %v2528
    %v2561 = vmul.f32 %v2529, %v2529
    %v2562 = vmul.f32 %v2530, %v2530
    %v2563 = vmul.f32 %v2531, %v2531
    %v2564 = vmul.f32 %v2532, %v2532
    %v2565 = vmul.f32 %v2533, %v2533
    %v2566 = vmul.f32 %v2534, %v2534
    %v2567 = vmul.f32 %v2535, %v2535
    %v2568 = vmul.f32 %v2536, %v2536
    %v2569 = vmul.f32 %v2537, %v2537
    %v2570 = vmul.f32 %v2538, %v2538
    %v2571 = vmul.f32 %v2539, %v2539
    %v2572 = vmul.f32 %v2540, %v2540
    %v2573 = vmul.f32 %v2541, %v2541
    %2574 = vadd.xlane.f32.xlu0 %v2542
    %v2575 = vpop.xlane.xlu0 %2574
    %2576 = vadd.xlane.f32.xlu0 %v2543
    %v2577 = vpop.xlane.xlu0 %2576
    %2578 = vadd.xlane.f32.xlu0 %v2544
    %v2579 = vpop.xlane.xlu0 %2578
    %2580 = vadd.xlane.f32.xlu0 %v2545
    %v2581 = vpop.xlane.xlu0 %2580
    %2582 = vadd.xlane.f32.xlu0 %v2546
    %v2583 = vpop.xlane.xlu0 %2582
    %2584 = vadd.xlane.f32.xlu0 %v2547
    %v2585 = vpop.xlane.xlu0 %2584
    %2586 = vadd.xlane.f32.xlu0 %v2548
    %v2587 = vpop.xlane.xlu0 %2586
    %2588 = vadd.xlane.f32.xlu0 %v2549
    %v2589 = vpop.xlane.xlu0 %2588
    %2590 = vadd.xlane.f32.xlu0 %v2550
    %v2591 = vpop.xlane.xlu0 %2590
    %2592 = vadd.xlane.f32.xlu0 %v2551
    %v2593 = vpop.xlane.xlu0 %2592
    %2594 = vadd.xlane.f32.xlu0 %v2552
    %v2595 = vpop.xlane.xlu0 %2594
    %2596 = vadd.xlane.f32.xlu0 %v2553
    %v2597 = vpop.xlane.xlu0 %2596
    %2598 = vadd.xlane.f32.xlu0 %v2554
    %v2599 = vpop.xlane.xlu0 %2598
    %2600 = vadd.xlane.f32.xlu0 %v2555
    %v2601 = vpop.xlane.xlu0 %2600
    %2602 = vadd.xlane.f32.xlu0 %v2556
    %v2603 = vpop.xlane.xlu0 %2602
    %2604 = vadd.xlane.f32.xlu0 %v2557
    %v2605 = vpop.xlane.xlu0 %2604
    %2606 = vadd.xlane.f32.xlu0 %v2558
    %v2607 = vpop.xlane.xlu0 %2606
    %2608 = vadd.xlane.f32.xlu0 %v2559
    %v2609 = vpop.xlane.xlu0 %2608
    %2610 = vadd.xlane.f32.xlu0 %v2560
    %v2611 = vpop.xlane.xlu0 %2610
    %2612 = vadd.xlane.f32.xlu0 %v2561
    %v2613 = vpop.xlane.xlu0 %2612
    %2614 = vadd.xlane.f32.xlu0 %v2562
    %v2615 = vpop.xlane.xlu0 %2614
    %2616 = vadd.xlane.f32.xlu0 %v2563
    %v2617 = vpop.xlane.xlu0 %2616
    %2618 = vadd.xlane.f32.xlu0 %v2564
    %v2619 = vpop.xlane.xlu0 %2618
    %2620 = vadd.xlane.f32.xlu0 %v2565
    %v2621 = vpop.xlane.xlu0 %2620
    %2622 = vadd.xlane.f32.xlu0 %v2566
    %v2623 = vpop.xlane.xlu0 %2622
    %2624 = vadd.xlane.f32.xlu0 %v2567
    %v2625 = vpop.xlane.xlu0 %2624
    %2626 = vadd.xlane.f32.xlu0 %v2568
    %v2627 = vpop.xlane.xlu0 %2626
    %2628 = vadd.xlane.f32.xlu0 %v2569
    %v2629 = vpop.xlane.xlu0 %2628
    %2630 = vadd.xlane.f32.xlu0 %v2570
    %v2631 = vpop.xlane.xlu0 %2630
    %2632 = vadd.xlane.f32.xlu0 %v2571
    %v2633 = vpop.xlane.xlu0 %2632
    %2634 = vadd.xlane.f32.xlu0 %v2572
    %v2635 = vpop.xlane.xlu0 %2634
    %2636 = vadd.xlane.f32.xlu0 %v2573
    %v2637 = vpop.xlane.xlu0 %2636
    %v2638 = vld [vmem:[%s19] sm:$0xff]
    %v2639 = vld [vmem:[%s19 + $0x8] sm:$0xff]
    %v2640 = vld [vmem:[%s19 + $0x10] sm:$0xff]
    %v2641 = vld [vmem:[%s19 + $0x18] sm:$0xff]
    %v2642 = vld [vmem:[%s19 + $0x20] sm:$0xff]
    %v2643 = vld [vmem:[%s19 + $0x28] sm:$0xff]
    %v2644 = vld [vmem:[%s19 + $0x30] sm:$0xff]
    %v2645 = vld [vmem:[%s19 + $0x38] sm:$0xff]
    %v2646 = vld [vmem:[%s19 + $0x40] sm:$0xff]
    %v2647 = vld [vmem:[%s19 + $0x48] sm:$0xff]
    %v2648 = vld [vmem:[%s19 + $0x50] sm:$0xff]
    %v2649 = vld [vmem:[%s19 + $0x58] sm:$0xff]
    %v2650 = vld [vmem:[%s19 + $0x60] sm:$0xff]
    %v2651 = vld [vmem:[%s19 + $0x68] sm:$0xff]
    %v2652 = vld [vmem:[%s19 + $0x70] sm:$0xff]
    %v2653 = vld [vmem:[%s19 + $0x78] sm:$0xff]
    %2654 = vmatpush.msra.mxu0 %v2653
    %2655 = vmatpush.msra.mxu0 %v2652
    %2656 = vmatpush.msra.mxu0 %v2651
    %2657 = vmatpush.msra.mxu0 %v2650
    %2658 = vmatpush.msra.mxu0 %v2649
    %2659 = vmatpush.msra.mxu0 %v2648
    %2660 = vmatpush.msra.mxu0 %v2647
    %2661 = vmatpush.msra.mxu0 %v2646
    %2662 = vmatpush.msra.mxu0 %v2645
    %2663 = vmatpush.msra.mxu0 %v2644
    %2664 = vmatpush.msra.mxu0 %v2643
    %2665 = vmatpush.msra.mxu0 %v2642
    %2666 = vmatpush.msra.mxu0 %v2641
    %2667 = vmatpush.msra.mxu0 %v2640
    %2668 = vmatpush.msra.mxu0 %v2639
    %2669 = vmatpush.msra.mxu0 %v2638
    %2670 = vmatmul.f32.gmra.mxu0 %v2510
    %v2671 = vpop.f32.mrf.mxu0
    %v2672 = vadd.f32 0.0, %v2671
    %2673 = vmatmul.f32.gmra.mxu0 %v2511
    %v2674 = vpop.f32.mrf.mxu0
    %v2675 = vadd.f32 0.0, %v2674
    %2676 = vmatmul.f32.gmra.mxu0 %v2512
    %v2677 = vpop.f32.mrf.mxu0
    %v2678 = vadd.f32 0.0, %v2677
    %2679 = vmatmul.f32.gmra.mxu0 %v2513
    %v2680 = vpop.f32.mrf.mxu0
    %v2681 = vadd.f32 0.0, %v2680
    %2682 = vmatmul.f32.gmra.mxu0 %v2514
    %v2683 = vpop.f32.mrf.mxu0
    %v2684 = vadd.f32 0.0, %v2683
    %2685 = vmatmul.f32.gmra.mxu0 %v2515
    %v2686 = vpop.f32.mrf.mxu0
    %v2687 = vadd.f32 0.0, %v2686
    %2688 = vmatmul.f32.gmra.mxu0 %v2516
    %v2689 = vpop.f32.mrf.mxu0
    %v2690 = vadd.f32 0.0, %v2689
    %2691 = vmatmul.f32.gmra.mxu0 %v2517
    %v2692 = vpop.f32.mrf.mxu0
    %v2693 = vadd.f32 0.0, %v2692
    %2694 = vmatmul.f32.gmra.mxu0 %v2518
    %v2695 = vpop.f32.mrf.mxu0
    %v2696 = vadd.f32 0.0, %v2695
    %2697 = vmatmul.f32.gmra.mxu0 %v2519
    %v2698 = vpop.f32.mrf.mxu0
    %v2699 = vadd.f32 0.0, %v2698
    %2700 = vmatmul.f32.gmra.mxu0 %v2520
    %v2701 = vpop.f32.mrf.mxu0
    %v2702 = vadd.f32 0.0, %v2701
    %2703 = vmatmul.f32.gmra.mxu0 %v2521
    %v2704 = vpop.f32.mrf.mxu0
    %v2705 = vadd.f32 0.0, %v2704
    %2706 = vmatmul.f32.gmra.mxu0 %v2522
    %v2707 = vpop.f32.mrf.mxu0
    %v2708 = vadd.f32 0.0, %v2707
    %2709 = vmatmul.f32.gmra.mxu0 %v2523
    %v2710 = vpop.f32.mrf.mxu0
    %v2711 = vadd.f32 0.0, %v2710
    %2712 = vmatmul.f32.gmra.mxu0 %v2524
    %v2713 = vpop.f32.mrf.mxu0
    %v2714 = vadd.f32 0.0, %v2713
    %2715 = vmatmul.f32.gmra.mxu0 %v2525
    %v2716 = vpop.f32.mrf.mxu0
    %v2717 = vadd.f32 0.0, %v2716
    %2718 = vmatmul.f32.gmra.mxu0 %v2526
    %v2719 = vpop.f32.mrf.mxu0
    %v2720 = vadd.f32 0.0, %v2719
    %2721 = vmatmul.f32.gmra.mxu0 %v2527
    %v2722 = vpop.f32.mrf.mxu0
    %v2723 = vadd.f32 0.0, %v2722
    %2724 = vmatmul.f32.gmra.mxu0 %v2528
    %v2725 = vpop.f32.mrf.mxu0
    %v2726 = vadd.f32 0.0, %v2725
    %2727 = vmatmul.f32.gmra.mxu0 %v2529
    %v2728 = vpop.f32.mrf.mxu0
    %v2729 = vadd.f32 0.0, %v2728
    %2730 = vmatmul.f32.gmra.mxu0 %v2530
    %v2731 = vpop.f32.mrf.mxu0
    %v2732 = vadd.f32 0.0, %v2731
    %2733 = vmatmul.f32.gmra.mxu0 %v2531
    %v2734 = vpop.f32.mrf.mxu0
    %v2735 = vadd.f32 0.0, %v2734
    %2736 = vmatmul.f32.gmra.mxu0 %v2532
    %v2737 = vpop.f32.mrf.mxu0
    %v2738 = vadd.f32 0.0, %v2737
    %2739 = vmatmul.f32.gmra.mxu0 %v2533
    %v2740 = vpop.f32.mrf.mxu0
    %v2741 = vadd.f32 0.0, %v2740
    %2742 = vmatmul.f32.gmra.mxu0 %v2534
    %v2743 = vpop.f32.mrf.mxu0
    %v2744 = vadd.f32 0.0, %v2743
    %2745 = vmatmul.f32.gmra.mxu0 %v2535
    %v2746 = vpop.f32.mrf.mxu0
    %v2747 = vadd.f32 0.0, %v2746
    %2748 = vmatmul.f32.gmra.mxu0 %v2536
    %v2749 = vpop.f32.mrf.mxu0
    %v2750 = vadd.f32 0.0, %v2749
    %2751 = vmatmul.f32.gmra.mxu0 %v2537
    %v2752 = vpop.f32.mrf.mxu0
    %v2753 = vadd.f32 0.0, %v2752
    %2754 = vmatmul.f32.gmra.mxu0 %v2538
    %v2755 = vpop.f32.mrf.mxu0
    %v2756 = vadd.f32 0.0, %v2755
    %2757 = vmatmul.f32.gmra.mxu0 %v2539
    %v2758 = vpop.f32.mrf.mxu0
    %v2759 = vadd.f32 0.0, %v2758
    %2760 = vmatmul.f32.gmra.mxu0 %v2540
    %v2761 = vpop.f32.mrf.mxu0
    %v2762 = vadd.f32 0.0, %v2761
    %2763 = vmatmul.f32.gmra.mxu0 %v2541
    %v2764 = vpop.f32.mrf.mxu0
    %v2765 = vadd.f32 0.0, %v2764
    %2766 = vdwg.mxu0
    %v2767 = vld [vmem:[%s21] sm:$0x1]
    %v2769 = vperm.slane %v2767, 0
    %v2771 = vmul.f32 %v2575, %v2769
    %v2772 = vmul.f32 %v2577, %v2769
    %v2773 = vmul.f32 %v2579, %v2769
    %v2774 = vmul.f32 %v2581, %v2769
    %v2775 = vmul.f32 %v2583, %v2769
    %v2776 = vmul.f32 %v2585, %v2769
    %v2777 = vmul.f32 %v2587, %v2769
    %v2778 = vmul.f32 %v2589, %v2769
    %v2779 = vmul.f32 %v2591, %v2769
    %v2780 = vmul.f32 %v2593, %v2769
    %v2781 = vmul.f32 %v2595, %v2769
    %v2782 = vmul.f32 %v2597, %v2769
    %v2783 = vmul.f32 %v2599, %v2769
    %v2784 = vmul.f32 %v2601, %v2769
    %v2785 = vmul.f32 %v2603, %v2769
    %v2786 = vmul.f32 %v2605, %v2769
    %v2787 = vmul.f32 %v2607, %v2769
    %v2788 = vmul.f32 %v2609, %v2769
    %v2789 = vmul.f32 %v2611, %v2769
    %v2790 = vmul.f32 %v2613, %v2769
    %v2791 = vmul.f32 %v2615, %v2769
    %v2792 = vmul.f32 %v2617, %v2769
    %v2793 = vmul.f32 %v2619, %v2769
    %v2794 = vmul.f32 %v2621, %v2769
    %v2795 = vmul.f32 %v2623, %v2769
    %v2796 = vmul.f32 %v2625, %v2769
    %v2797 = vmul.f32 %v2627, %v2769
    %v2798 = vmul.f32 %v2629, %v2769
    %v2799 = vmul.f32 %v2631, %v2769
    %v2800 = vmul.f32 %v2633, %v2769
    %v2801 = vmul.f32 %v2635, %v2769
    %v2802 = vmul.f32 %v2637, %v2769
    %v2803 = vsub.f32 %v2771, %v2672
    %v2804 = vsub.f32 %v2772, %v2675
    %v2805 = vsub.f32 %v2773, %v2678
    %v2806 = vsub.f32 %v2774, %v2681
    %v2807 = vsub.f32 %v2775, %v2684
    %v2808 = vsub.f32 %v2776, %v2687
    %v2809 = vsub.f32 %v2777, %v2690
    %v2810 = vsub.f32 %v2778, %v2693
    %v2811 = vsub.f32 %v2779, %v2696
    %v2812 = vsub.f32 %v2780, %v2699
    %v2813 = vsub.f32 %v2781, %v2702
    %v2814 = vsub.f32 %v2782, %v2705
    %v2815 = vsub.f32 %v2783, %v2708
    %v2816 = vsub.f32 %v2784, %v2711
    %v2817 = vsub.f32 %v2785, %v2714
    %v2818 = vsub.f32 %v2786, %v2717
    %v2819 = vsub.f32 %v2787, %v2720
    %v2820 = vsub.f32 %v2788, %v2723
    %v2821 = vsub.f32 %v2789, %v2726
    %v2822 = vsub.f32 %v2790, %v2729
    %v2823 = vsub.f32 %v2791, %v2732
    %v2824 = vsub.f32 %v2792, %v2735
    %v2825 = vsub.f32 %v2793, %v2738
    %v2826 = vsub.f32 %v2794, %v2741
    %v2827 = vsub.f32 %v2795, %v2744
    %v2828 = vsub.f32 %v2796, %v2747
    %v2829 = vsub.f32 %v2797, %v2750
    %v2830 = vsub.f32 %v2798, %v2753
    %v2831 = vsub.f32 %v2799, %v2756
    %v2832 = vsub.f32 %v2800, %v2759
    %v2833 = vsub.f32 %v2801, %v2762
    %v2834 = vsub.f32 %v2802, %v2765
    %v2835 = vld [vmem:[%s20] sm:$0x1]
    %v2837 = vperm.slane %v2835, 0
    %v2839 = vadd.f32 %v2803, %v2837
    %v2840 = vadd.f32 %v2804, %v2837
    %v2841 = vadd.f32 %v2805, %v2837
    %v2842 = vadd.f32 %v2806, %v2837
    %v2843 = vadd.f32 %v2807, %v2837
    %v2844 = vadd.f32 %v2808, %v2837
    %v2845 = vadd.f32 %v2809, %v2837
    %v2846 = vadd.f32 %v2810, %v2837
    %v2847 = vadd.f32 %v2811, %v2837
    %v2848 = vadd.f32 %v2812, %v2837
    %v2849 = vadd.f32 %v2813, %v2837
    %v2850 = vadd.f32 %v2814, %v2837
    %v2851 = vadd.f32 %v2815, %v2837
    %v2852 = vadd.f32 %v2816, %v2837
    %v2853 = vadd.f32 %v2817, %v2837
    %v2854 = vadd.f32 %v2818, %v2837
    %v2855 = vadd.f32 %v2819, %v2837
    %v2856 = vadd.f32 %v2820, %v2837
    %v2857 = vadd.f32 %v2821, %v2837
    %v2858 = vadd.f32 %v2822, %v2837
    %v2859 = vadd.f32 %v2823, %v2837
    %v2860 = vadd.f32 %v2824, %v2837
    %v2861 = vadd.f32 %v2825, %v2837
    %v2862 = vadd.f32 %v2826, %v2837
    %v2863 = vadd.f32 %v2827, %v2837
    %v2864 = vadd.f32 %v2828, %v2837
    %v2865 = vadd.f32 %v2829, %v2837
    %v2866 = vadd.f32 %v2830, %v2837
    %v2867 = vadd.f32 %v2831, %v2837
    %v2868 = vadd.f32 %v2832, %v2837
    %v2869 = vadd.f32 %v2833, %v2837
    %v2870 = vadd.f32 %v2834, %v2837
    %v2871 = vmax.f32 %v2839, 0.0
    %v2872 = vmax.f32 %v2840, 0.0
    %v2873 = vmax.f32 %v2841, 0.0
    %v2874 = vmax.f32 %v2842, 0.0
    %v2875 = vmax.f32 %v2843, 0.0
    %v2876 = vmax.f32 %v2844, 0.0
    %v2877 = vmax.f32 %v2845, 0.0
    %v2878 = vmax.f32 %v2846, 0.0
    %v2879 = vmax.f32 %v2847, 0.0
    %v2880 = vmax.f32 %v2848, 0.0
    %v2881 = vmax.f32 %v2849, 0.0
    %v2882 = vmax.f32 %v2850, 0.0
    %v2883 = vmax.f32 %v2851, 0.0
    %v2884 = vmax.f32 %v2852, 0.0
    %v2885 = vmax.f32 %v2853, 0.0
    %v2886 = vmax.f32 %v2854, 0.0
    %v2887 = vmax.f32 %v2855, 0.0
    %v2888 = vmax.f32 %v2856, 0.0
    %v2889 = vmax.f32 %v2857, 0.0
    %v2890 = vmax.f32 %v2858, 0.0
    %v2891 = vmax.f32 %v2859, 0.0
    %v2892 = vmax.f32 %v2860, 0.0
    %v2893 = vmax.f32 %v2861, 0.0
    %v2894 = vmax.f32 %v2862, 0.0
    %v2895 = vmax.f32 %v2863, 0.0
    %v2896 = vmax.f32 %v2864, 0.0
    %v2897 = vmax.f32 %v2865, 0.0
    %v2898 = vmax.f32 %v2866, 0.0
    %v2899 = vmax.f32 %v2867, 0.0
    %v2900 = vmax.f32 %v2868, 0.0
    %v2901 = vmax.f32 %v2869, 0.0
    %v2902 = vmax.f32 %v2870, 0.0
    %v2903 = vsub.f32 0.0, %v2871
    %v2904 = vsub.f32 0.0, %v2872
    %v2905 = vsub.f32 0.0, %v2873
    %v2906 = vsub.f32 0.0, %v2874
    %v2907 = vsub.f32 0.0, %v2875
    %v2908 = vsub.f32 0.0, %v2876
    %v2909 = vsub.f32 0.0, %v2877
    %v2910 = vsub.f32 0.0, %v2878
    %v2911 = vsub.f32 0.0, %v2879
    %v2912 = vsub.f32 0.0, %v2880
    %v2913 = vsub.f32 0.0, %v2881
    %v2914 = vsub.f32 0.0, %v2882
    %v2915 = vsub.f32 0.0, %v2883
    %v2916 = vsub.f32 0.0, %v2884
    %v2917 = vsub.f32 0.0, %v2885
    %v2918 = vsub.f32 0.0, %v2886
    %v2919 = vsub.f32 0.0, %v2887
    %v2920 = vsub.f32 0.0, %v2888
    %v2921 = vsub.f32 0.0, %v2889
    %v2922 = vsub.f32 0.0, %v2890
    %v2923 = vsub.f32 0.0, %v2891
    %v2924 = vsub.f32 0.0, %v2892
    %v2925 = vsub.f32 0.0, %v2893
    %v2926 = vsub.f32 0.0, %v2894
    %v2927 = vsub.f32 0.0, %v2895
    %v2928 = vsub.f32 0.0, %v2896
    %v2929 = vsub.f32 0.0, %v2897
    %v2930 = vsub.f32 0.0, %v2898
    %v2931 = vsub.f32 0.0, %v2899
    %v2932 = vsub.f32 0.0, %v2900
    %v2933 = vsub.f32 0.0, %v2901
    %v2934 = vsub.f32 0.0, %v2902
    %v2935 = vmul.f32 %v2903, 1.442695
    %v2936 = vpow.pop %v2935
    %v2937 = vmul.f32 %v2904, 1.442695
    %v2938 = vpow.pop %v2937
    %v2939 = vmul.f32 %v2905, 1.442695
    %v2940 = vpow.pop %v2939
    %v2941 = vmul.f32 %v2906, 1.442695
    %v2942 = vpow.pop %v2941
    %v2943 = vmul.f32 %v2907, 1.442695
    %v2944 = vpow.pop %v2943
    %v2945 = vmul.f32 %v2908, 1.442695
    %v2946 = vpow.pop %v2945
    %v2947 = vmul.f32 %v2909, 1.442695
    %v2948 = vpow.pop %v2947
    %v2949 = vmul.f32 %v2910, 1.442695
    %v2950 = vpow.pop %v2949
    %v2951 = vmul.f32 %v2911, 1.442695
    %v2952 = vpow.pop %v2951
    %v2953 = vmul.f32 %v2912, 1.442695
    %v2954 = vpow.pop %v2953
    %v2955 = vmul.f32 %v2913, 1.442695
    %v2956 = vpow.pop %v2955
    %v2957 = vmul.f32 %v2914, 1.442695
    %v2958 = vpow.pop %v2957
    %v2959 = vmul.f32 %v2915, 1.442695
    %v2960 = vpow.pop %v2959
    %v2961 = vmul.f32 %v2916, 1.442695
    %v2962 = vpow.pop %v2961
    %v2963 = vmul.f32 %v2917, 1.442695
    %v2964 = vpow.pop %v2963
    %v2965 = vmul.f32 %v2918, 1.442695
    %v2966 = vpow.pop %v2965
    %v2967 = vmul.f32 %v2919, 1.442695
    %v2968 = vpow.pop %v2967
    %v2969 = vmul.f32 %v2920, 1.442695
    %v2970 = vpow.pop %v2969
    %v2971 = vmul.f32 %v2921, 1.442695
    %v2972 = vpow.pop %v2971
    %v2973 = vmul.f32 %v2922, 1.442695
    %v2974 = vpow.pop %v2973
    %v2975 = vmul.f32 %v2923, 1.442695
    %v2976 = vpow.pop %v2975
    %v2977 = vmul.f32 %v2924, 1.442695
    %v2978 = vpow.pop %v2977
    %v2979 = vmul.f32 %v2925, 1.442695
    %v2980 = vpow.pop %v2979
    %v2981 = vmul.f32 %v2926, 1.442695
    %v2982 = vpow.pop %v2981
    %v2983 = vmul.f32 %v2927, 1.442695
    %v2984 = vpow.pop %v2983
    %v2985 = vmul.f32 %v2928, 1.442695
    %v2986 = vpow.pop %v2985
    %v2987 = vmul.f32 %v2929, 1.442695
    %v2988 = vpow.pop %v2987
    %v2989 = vmul.f32 %v2930, 1.442695
    %v2990 = vpow.pop %v2989
    %v2991 = vmul.f32 %v2931, 1.442695
    %v2992 = vpow.pop %v2991
    %v2993 = vmul.f32 %v2932, 1.442695
    %v2994 = vpow.pop %v2993
    %v2995 = vmul.f32 %v2933, 1.442695
    %v2996 = vpow.pop %v2995
    %v2997 = vmul.f32 %v2934, 1.442695
    %v2998 = vpow.pop %v2997
    %v2999 = vtanh.pop %v2936
    %v3000 = vtanh.pop %v2938
    %v3001 = vtanh.pop %v2940
    %v3002 = vtanh.pop %v2942
    %v3003 = vtanh.pop %v2944
    %v3004 = vtanh.pop %v2946
    %v3005 = vtanh.pop %v2948
    %v3006 = vtanh.pop %v2950
    %v3007 = vtanh.pop %v2952
    %v3008 = vtanh.pop %v2954
    %v3009 = vtanh.pop %v2956
    %v3010 = vtanh.pop %v2958
    %v3011 = vtanh.pop %v2960
    %v3012 = vtanh.pop %v2962
    %v3013 = vtanh.pop %v2964
    %v3014 = vtanh.pop %v2966
    %v3015 = vtanh.pop %v2968
    %v3016 = vtanh.pop %v2970
    %v3017 = vtanh.pop %v2972
    %v3018 = vtanh.pop %v2974
    %v3019 = vtanh.pop %v2976
    %v3020 = vtanh.pop %v2978
    %v3021 = vtanh.pop %v2980
    %v3022 = vtanh.pop %v2982
    %v3023 = vtanh.pop %v2984
    %v3024 = vtanh.pop %v2986
    %v3025 = vtanh.pop %v2988
    %v3026 = vtanh.pop %v2990
    %v3027 = vtanh.pop %v2992
    %v3028 = vtanh.pop %v2994
    %v3029 = vtanh.pop %v2996
    %v3030 = vtanh.pop %v2998
    %v3031 = vld [vmem:[%s22] sm:$0xff]
    %v3032 = vld [vmem:[%s22 + $0x8] sm:$0xff]
    %v3033 = vld [vmem:[%s22 + $0x10] sm:$0xff]
    %v3034 = vld [vmem:[%s22 + $0x18] sm:$0xff]
    %v3035 = vld [vmem:[%s22 + $0x20] sm:$0xff]
    %v3036 = vld [vmem:[%s22 + $0x28] sm:$0xff]
    %v3037 = vld [vmem:[%s22 + $0x30] sm:$0xff]
    %v3038 = vld [vmem:[%s22 + $0x38] sm:$0xff]
    %v3039 = vld [vmem:[%s22 + $0x40] sm:$0xff]
    %v3040 = vld [vmem:[%s22 + $0x48] sm:$0xff]
    %v3041 = vld [vmem:[%s22 + $0x50] sm:$0xff]
    %v3042 = vld [vmem:[%s22 + $0x58] sm:$0xff]
    %v3043 = vld [vmem:[%s22 + $0x60] sm:$0xff]
    %v3044 = vld [vmem:[%s22 + $0x68] sm:$0xff]
    %v3045 = vld [vmem:[%s22 + $0x70] sm:$0xff]
    %v3046 = vld [vmem:[%s22 + $0x78] sm:$0xff]
    %v3047 = vld [vmem:[%s23] sm:$0x1]
    %v3049 = vperm.slane %v3047, 0
    %3051 = vmatpush.msra.mxu0 %v3046
    %3052 = vmatpush.msra.mxu0 %v3045
    %3053 = vmatpush.msra.mxu0 %v3044
    %3054 = vmatpush.msra.mxu0 %v3043
    %3055 = vmatpush.msra.mxu0 %v3042
    %3056 = vmatpush.msra.mxu0 %v3041
    %3057 = vmatpush.msra.mxu0 %v3040
    %3058 = vmatpush.msra.mxu0 %v3039
    %3059 = vmatpush.msra.mxu0 %v3038
    %3060 = vmatpush.msra.mxu0 %v3037
    %3061 = vmatpush.msra.mxu0 %v3036
    %3062 = vmatpush.msra.mxu0 %v3035
    %3063 = vmatpush.msra.mxu0 %v3034
    %3064 = vmatpush.msra.mxu0 %v3033
    %3065 = vmatpush.msra.mxu0 %v3032
    %3066 = vmatpush.msra.mxu0 %v3031
    %3067 = vmatmul.f32.gmra.mxu0 %v2999
    %v3068 = vpop.f32.mrf.mxu0
    %v3069 = vadd.f32 %v3049, %v3068
    %3070 = vmatmul.f32.gmra.mxu0 %v3000
    %v3071 = vpop.f32.mrf.mxu0
    %v3072 = vadd.f32 %v3049, %v3071
    %3073 = vmatmul.f32.gmra.mxu0 %v3001
    %v3074 = vpop.f32.mrf.mxu0
    %v3075 = vadd.f32 %v3049, %v3074
    %3076 = vmatmul.f32.gmra.mxu0 %v3002
    %v3077 = vpop.f32.mrf.mxu0
    %v3078 = vadd.f32 %v3049, %v3077
    %3079 = vmatmul.f32.gmra.mxu0 %v3003
    %v3080 = vpop.f32.mrf.mxu0
    %v3081 = vadd.f32 %v3049, %v3080
    %3082 = vmatmul.f32.gmra.mxu0 %v3004
    %v3083 = vpop.f32.mrf.mxu0
    %v3084 = vadd.f32 %v3049, %v3083
    %3085 = vmatmul.f32.gmra.mxu0 %v3005
    %v3086 = vpop.f32.mrf.mxu0
    %v3087 = vadd.f32 %v3049, %v3086
    %3088 = vmatmul.f32.gmra.mxu0 %v3006
    %v3089 = vpop.f32.mrf.mxu0
    %v3090 = vadd.f32 %v3049, %v3089
    %3091 = vmatmul.f32.gmra.mxu0 %v3007
    %v3092 = vpop.f32.mrf.mxu0
    %v3093 = vadd.f32 %v3049, %v3092
    %3094 = vmatmul.f32.gmra.mxu0 %v3008
    %v3095 = vpop.f32.mrf.mxu0
    %v3096 = vadd.f32 %v3049, %v3095
    %3097 = vmatmul.f32.gmra.mxu0 %v3009
    %v3098 = vpop.f32.mrf.mxu0
    %v3099 = vadd.f32 %v3049, %v3098
    %3100 = vmatmul.f32.gmra.mxu0 %v3010
    %v3101 = vpop.f32.mrf.mxu0
    %v3102 = vadd.f32 %v3049, %v3101
    %3103 = vmatmul.f32.gmra.mxu0 %v3011
    %v3104 = vpop.f32.mrf.mxu0
    %v3105 = vadd.f32 %v3049, %v3104
    %3106 = vmatmul.f32.gmra.mxu0 %v3012
    %v3107 = vpop.f32.mrf.mxu0
    %v3108 = vadd.f32 %v3049, %v3107
    %3109 = vmatmul.f32.gmra.mxu0 %v3013
    %v3110 = vpop.f32.mrf.mxu0
    %v3111 = vadd.f32 %v3049, %v3110
    %3112 = vmatmul.f32.gmra.mxu0 %v3014
    %v3113 = vpop.f32.mrf.mxu0
    %v3114 = vadd.f32 %v3049, %v3113
    %3115 = vmatmul.f32.gmra.mxu0 %v3015
    %v3116 = vpop.f32.mrf.mxu0
    %v3117 = vadd.f32 %v3049, %v3116
    %3118 = vmatmul.f32.gmra.mxu0 %v3016
    %v3119 = vpop.f32.mrf.mxu0
    %v3120 = vadd.f32 %v3049, %v3119
    %3121 = vmatmul.f32.gmra.mxu0 %v3017
    %v3122 = vpop.f32.mrf.mxu0
    %v3123 = vadd.f32 %v3049, %v3122
    %3124 = vmatmul.f32.gmra.mxu0 %v3018
    %v3125 = vpop.f32.mrf.mxu0
    %v3126 = vadd.f32 %v3049, %v3125
    %3127 = vmatmul.f32.gmra.mxu0 %v3019
    %v3128 = vpop.f32.mrf.mxu0
    %v3129 = vadd.f32 %v3049, %v3128
    %3130 = vmatmul.f32.gmra.mxu0 %v3020
    %v3131 = vpop.f32.mrf.mxu0
    %v3132 = vadd.f32 %v3049, %v3131
    %3133 = vmatmul.f32.gmra.mxu0 %v3021
    %v3134 = vpop.f32.mrf.mxu0
    %v3135 = vadd.f32 %v3049, %v3134
    %3136 = vmatmul.f32.gmra.mxu0 %v3022
    %v3137 = vpop.f32.mrf.mxu0
    %v3138 = vadd.f32 %v3049, %v3137
    %3139 = vmatmul.f32.gmra.mxu0 %v3023
    %v3140 = vpop.f32.mrf.mxu0
    %v3141 = vadd.f32 %v3049, %v3140
    %3142 = vmatmul.f32.gmra.mxu0 %v3024
    %v3143 = vpop.f32.mrf.mxu0
    %v3144 = vadd.f32 %v3049, %v3143
    %3145 = vmatmul.f32.gmra.mxu0 %v3025
    %v3146 = vpop.f32.mrf.mxu0
    %v3147 = vadd.f32 %v3049, %v3146
    %3148 = vmatmul.f32.gmra.mxu0 %v3026
    %v3149 = vpop.f32.mrf.mxu0
    %v3150 = vadd.f32 %v3049, %v3149
    %3151 = vmatmul.f32.gmra.mxu0 %v3027
    %v3152 = vpop.f32.mrf.mxu0
    %v3153 = vadd.f32 %v3049, %v3152
    %3154 = vmatmul.f32.gmra.mxu0 %v3028
    %v3155 = vpop.f32.mrf.mxu0
    %v3156 = vadd.f32 %v3049, %v3155
    %3157 = vmatmul.f32.gmra.mxu0 %v3029
    %v3158 = vpop.f32.mrf.mxu0
    %v3159 = vadd.f32 %v3049, %v3158
    %3160 = vmatmul.f32.gmra.mxu0 %v3030
    %v3161 = vpop.f32.mrf.mxu0
    %v3162 = vadd.f32 %v3049, %v3161
    %3163 = vdwg.mxu0
    %v3164 = vld [vmem:[%s24] sm:$0xff]
    %3165 = vmatpush.msra.mxu0 0.0
    %3166 = vmatpush.msra.mxu0 0.0
    %3167 = vmatpush.msra.mxu0 0.0
    %3168 = vmatpush.msra.mxu0 0.0
    %3169 = vmatpush.msra.mxu0 0.0
    %3170 = vmatpush.msra.mxu0 0.0
    %3171 = vmatpush.msra.mxu0 0.0
    %3172 = vmatpush.msra.mxu0 0.0
    %3173 = vmatpush.msra.mxu0 0.0
    %3174 = vmatpush.msra.mxu0 0.0
    %3175 = vmatpush.msra.mxu0 0.0
    %3176 = vmatpush.msra.mxu0 0.0
    %3177 = vmatpush.msra.mxu0 0.0
    %3178 = vmatpush.msra.mxu0 0.0
    %3179 = vmatpush.msra.mxu0 0.0
    %3180 = vmatpush.msra.mxu0 %v3164
    %3181 = vmatmul.f32.gmra.mxu0 %v1937
    %v3182 = vpop.f32.mrf.mxu0
    %v3183 = vadd.f32 0.0, %v3182
    %3184 = vmatmul.f32.gmra.mxu0 %v1940
    %v3185 = vpop.f32.mrf.mxu0
    %v3186 = vadd.f32 0.0, %v3185
    %3187 = vmatmul.f32.gmra.mxu0 %v1943
    %v3188 = vpop.f32.mrf.mxu0
    %v3189 = vadd.f32 0.0, %v3188
    %3190 = vmatmul.f32.gmra.mxu0 %v1946
    %v3191 = vpop.f32.mrf.mxu0
    %v3192 = vadd.f32 0.0, %v3191
    %3193 = vmatmul.f32.gmra.mxu0 %v1949
    %v3194 = vpop.f32.mrf.mxu0
    %v3195 = vadd.f32 0.0, %v3194
    %3196 = vmatmul.f32.gmra.mxu0 %v1952
    %v3197 = vpop.f32.mrf.mxu0
    %v3198 = vadd.f32 0.0, %v3197
    %3199 = vmatmul.f32.gmra.mxu0 %v1955
    %v3200 = vpop.f32.mrf.mxu0
    %v3201 = vadd.f32 0.0, %v3200
    %3202 = vmatmul.f32.gmra.mxu0 %v1958
    %v3203 = vpop.f32.mrf.mxu0
    %v3204 = vadd.f32 0.0, %v3203
    %3205 = vmatmul.f32.gmra.mxu0 %v1961
    %v3206 = vpop.f32.mrf.mxu0
    %v3207 = vadd.f32 0.0, %v3206
    %3208 = vmatmul.f32.gmra.mxu0 %v1964
    %v3209 = vpop.f32.mrf.mxu0
    %v3210 = vadd.f32 0.0, %v3209
    %3211 = vmatmul.f32.gmra.mxu0 %v1967
    %v3212 = vpop.f32.mrf.mxu0
    %v3213 = vadd.f32 0.0, %v3212
    %3214 = vmatmul.f32.gmra.mxu0 %v1970
    %v3215 = vpop.f32.mrf.mxu0
    %v3216 = vadd.f32 0.0, %v3215
    %3217 = vmatmul.f32.gmra.mxu0 %v1973
    %v3218 = vpop.f32.mrf.mxu0
    %v3219 = vadd.f32 0.0, %v3218
    %3220 = vmatmul.f32.gmra.mxu0 %v1976
    %v3221 = vpop.f32.mrf.mxu0
    %v3222 = vadd.f32 0.0, %v3221
    %3223 = vmatmul.f32.gmra.mxu0 %v1979
    %v3224 = vpop.f32.mrf.mxu0
    %v3225 = vadd.f32 0.0, %v3224
    %3226 = vmatmul.f32.gmra.mxu0 %v1982
    %v3227 = vpop.f32.mrf.mxu0
    %v3228 = vadd.f32 0.0, %v3227
    %3229 = vmatmul.f32.gmra.mxu0 %v1985
    %v3230 = vpop.f32.mrf.mxu0
    %v3231 = vadd.f32 0.0, %v3230
    %3232 = vmatmul.f32.gmra.mxu0 %v1988
    %v3233 = vpop.f32.mrf.mxu0
    %v3234 = vadd.f32 0.0, %v3233
    %3235 = vmatmul.f32.gmra.mxu0 %v1991
    %v3236 = vpop.f32.mrf.mxu0
    %v3237 = vadd.f32 0.0, %v3236
    %3238 = vmatmul.f32.gmra.mxu0 %v1994
    %v3239 = vpop.f32.mrf.mxu0
    %v3240 = vadd.f32 0.0, %v3239
    %3241 = vmatmul.f32.gmra.mxu0 %v1997
    %v3242 = vpop.f32.mrf.mxu0
    %v3243 = vadd.f32 0.0, %v3242
    %3244 = vmatmul.f32.gmra.mxu0 %v2000
    %v3245 = vpop.f32.mrf.mxu0
    %v3246 = vadd.f32 0.0, %v3245
    %3247 = vmatmul.f32.gmra.mxu0 %v2003
    %v3248 = vpop.f32.mrf.mxu0
    %v3249 = vadd.f32 0.0, %v3248
    %3250 = vmatmul.f32.gmra.mxu0 %v2006
    %v3251 = vpop.f32.mrf.mxu0
    %v3252 = vadd.f32 0.0, %v3251
    %3253 = vmatmul.f32.gmra.mxu0 %v2009
    %v3254 = vpop.f32.mrf.mxu0
    %v3255 = vadd.f32 0.0, %v3254
    %3256 = vmatmul.f32.gmra.mxu0 %v2012
    %v3257 = vpop.f32.mrf.mxu0
    %v3258 = vadd.f32 0.0, %v3257
    %3259 = vmatmul.f32.gmra.mxu0 %v2015
    %v3260 = vpop.f32.mrf.mxu0
    %v3261 = vadd.f32 0.0, %v3260
    %3262 = vmatmul.f32.gmra.mxu0 %v2018
    %v3263 = vpop.f32.mrf.mxu0
    %v3264 = vadd.f32 0.0, %v3263
    %3265 = vmatmul.f32.gmra.mxu0 %v2021
    %v3266 = vpop.f32.mrf.mxu0
    %v3267 = vadd.f32 0.0, %v3266
    %3268 = vmatmul.f32.gmra.mxu0 %v2024
    %v3269 = vpop.f32.mrf.mxu0
    %v3270 = vadd.f32 0.0, %v3269
    %3271 = vmatmul.f32.gmra.mxu0 %v2027
    %v3272 = vpop.f32.mrf.mxu0
    %v3273 = vadd.f32 0.0, %v3272
    %3274 = vmatmul.f32.gmra.mxu0 %v2030
    %v3275 = vpop.f32.mrf.mxu0
    %v3276 = vadd.f32 0.0, %v3275
    %3277 = vdwg.mxu0
    %v3278 = vadd.f32 %v3069, %v3183
    %v3279 = vadd.f32 %v3072, %v3186
    %v3280 = vadd.f32 %v3075, %v3189
    %v3281 = vadd.f32 %v3078, %v3192
    %v3282 = vadd.f32 %v3081, %v3195
    %v3283 = vadd.f32 %v3084, %v3198
    %v3284 = vadd.f32 %v3087, %v3201
    %v3285 = vadd.f32 %v3090, %v3204
    %v3286 = vadd.f32 %v3093, %v3207
    %v3287 = vadd.f32 %v3096, %v3210
    %v3288 = vadd.f32 %v3099, %v3213
    %v3289 = vadd.f32 %v3102, %v3216
    %v3290 = vadd.f32 %v3105, %v3219
    %v3291 = vadd.f32 %v3108, %v3222
    %v3292 = vadd.f32 %v3111, %v3225
    %v3293 = vadd.f32 %v3114, %v3228
    %v3294 = vadd.f32 %v3117, %v3231
    %v3295 = vadd.f32 %v3120, %v3234
    %v3296 = vadd.f32 %v3123, %v3237
    %v3297 = vadd.f32 %v3126, %v3240
    %v3298 = vadd.f32 %v3129, %v3243
    %v3299 = vadd.f32 %v3132, %v3246
    %v3300 = vadd.f32 %v3135, %v3249
    %v3301 = vadd.f32 %v3138, %v3252
    %v3302 = vadd.f32 %v3141, %v3255
    %v3303 = vadd.f32 %v3144, %v3258
    %v3304 = vadd.f32 %v3147, %v3261
    %v3305 = vadd.f32 %v3150, %v3264
    %v3306 = vadd.f32 %v3153, %v3267
    %v3307 = vadd.f32 %v3156, %v3270
    %v3308 = vadd.f32 %v3159, %v3273
    %v3309 = vadd.f32 %v3162, %v3276
    %v3310 = vld [vmem:[%s25] sm:$0xff]
    %v3312 = vsel %vm1838, %v1386, 0
    %v3315 = vsel %vm1838, %v1389, 0
    %v3318 = vsel %vm1838, %v1392, 0
    %v3321 = vsel %vm1838, %v1395, 0
    %v3324 = vsel %vm1838, %v1398, 0
    %v3327 = vsel %vm1838, %v1401, 0
    %v3330 = vsel %vm1838, %v1404, 0
    %v3333 = vsel %vm1838, %v1407, 0
    %v3336 = vsel %vm1838, %v1410, 0
    %v3339 = vsel %vm1838, %v1413, 0
    %v3342 = vsel %vm1838, %v1416, 0
    %v3345 = vsel %vm1838, %v1419, 0
    %v3348 = vsel %vm1838, %v1422, 0
    %v3351 = vsel %vm1838, %v1425, 0
    %v3354 = vsel %vm1838, %v1428, 0
    %v3357 = vsel %vm1838, %v1431, 0
    %v3360 = vsel %vm1838, %v1434, 0
    %v3363 = vsel %vm1838, %v1437, 0
    %v3366 = vsel %vm1838, %v1440, 0
    %v3369 = vsel %vm1838, %v1443, 0
    %v3372 = vsel %vm1838, %v1446, 0
    %v3375 = vsel %vm1838, %v1449, 0
    %v3378 = vsel %vm1838, %v1452, 0
    %v3381 = vsel %vm1838, %v1455, 0
    %v3384 = vsel %vm1838, %v1458, 0
    %v3387 = vsel %vm1838, %v1461, 0
    %v3390 = vsel %vm1838, %v1464, 0
    %v3393 = vsel %vm1838, %v1467, 0
    %v3396 = vsel %vm1838, %v1470, 0
    %v3399 = vsel %vm1838, %v1473, 0
    %v3402 = vsel %vm1838, %v1476, 0
    %v3405 = vsel %vm1838, %v1479, 0
    %3407 = vmatpush.msra.mxu0 0.0
    %3408 = vmatpush.msra.mxu0 0.0
    %3409 = vmatpush.msra.mxu0 0.0
    %3410 = vmatpush.msra.mxu0 0.0
    %3411 = vmatpush.msra.mxu0 0.0
    %3412 = vmatpush.msra.mxu0 0.0
    %3413 = vmatpush.msra.mxu0 0.0
    %3414 = vmatpush.msra.mxu0 0.0
    %3415 = vmatpush.msra.mxu0 0.0
    %3416 = vmatpush.msra.mxu0 0.0
    %3417 = vmatpush.msra.mxu0 0.0
    %3418 = vmatpush.msra.mxu0 0.0
    %3419 = vmatpush.msra.mxu0 0.0
    %3420 = vmatpush.msra.mxu0 0.0
    %3421 = vmatpush.msra.mxu0 0.0
    %3422 = vmatpush.msra.mxu0 %v3310
    %3423 = vmatmul.f32.gmra.mxu0 %v3312
    %v3424 = vpop.f32.mrf.mxu0
    %v3425 = vadd.f32 0.0, %v3424
    %3426 = vmatmul.f32.gmra.mxu0 %v3315
    %v3427 = vpop.f32.mrf.mxu0
    %v3428 = vadd.f32 0.0, %v3427
    %3429 = vmatmul.f32.gmra.mxu0 %v3318
    %v3430 = vpop.f32.mrf.mxu0
    %v3431 = vadd.f32 0.0, %v3430
    %3432 = vmatmul.f32.gmra.mxu0 %v3321
    %v3433 = vpop.f32.mrf.mxu0
    %v3434 = vadd.f32 0.0, %v3433
    %3435 = vmatmul.f32.gmra.mxu0 %v3324
    %v3436 = vpop.f32.mrf.mxu0
    %v3437 = vadd.f32 0.0, %v3436
    %3438 = vmatmul.f32.gmra.mxu0 %v3327
    %v3439 = vpop.f32.mrf.mxu0
    %v3440 = vadd.f32 0.0, %v3439
    %3441 = vmatmul.f32.gmra.mxu0 %v3330
    %v3442 = vpop.f32.mrf.mxu0
    %v3443 = vadd.f32 0.0, %v3442
    %3444 = vmatmul.f32.gmra.mxu0 %v3333
    %v3445 = vpop.f32.mrf.mxu0
    %v3446 = vadd.f32 0.0, %v3445
    %3447 = vmatmul.f32.gmra.mxu0 %v3336
    %v3448 = vpop.f32.mrf.mxu0
    %v3449 = vadd.f32 0.0, %v3448
    %3450 = vmatmul.f32.gmra.mxu0 %v3339
    %v3451 = vpop.f32.mrf.mxu0
    %v3452 = vadd.f32 0.0, %v3451
    %3453 = vmatmul.f32.gmra.mxu0 %v3342
    %v3454 = vpop.f32.mrf.mxu0
    %v3455 = vadd.f32 0.0, %v3454
    %3456 = vmatmul.f32.gmra.mxu0 %v3345
    %v3457 = vpop.f32.mrf.mxu0
    %v3458 = vadd.f32 0.0, %v3457
    %3459 = vmatmul.f32.gmra.mxu0 %v3348
    %v3460 = vpop.f32.mrf.mxu0
    %v3461 = vadd.f32 0.0, %v3460
    %3462 = vmatmul.f32.gmra.mxu0 %v3351
    %v3463 = vpop.f32.mrf.mxu0
    %v3464 = vadd.f32 0.0, %v3463
    %3465 = vmatmul.f32.gmra.mxu0 %v3354
    %v3466 = vpop.f32.mrf.mxu0
    %v3467 = vadd.f32 0.0, %v3466
    %3468 = vmatmul.f32.gmra.mxu0 %v3357
    %v3469 = vpop.f32.mrf.mxu0
    %v3470 = vadd.f32 0.0, %v3469
    %3471 = vmatmul.f32.gmra.mxu0 %v3360
    %v3472 = vpop.f32.mrf.mxu0
    %v3473 = vadd.f32 0.0, %v3472
    %3474 = vmatmul.f32.gmra.mxu0 %v3363
    %v3475 = vpop.f32.mrf.mxu0
    %v3476 = vadd.f32 0.0, %v3475
    %3477 = vmatmul.f32.gmra.mxu0 %v3366
    %v3478 = vpop.f32.mrf.mxu0
    %v3479 = vadd.f32 0.0, %v3478
    %3480 = vmatmul.f32.gmra.mxu0 %v3369
    %v3481 = vpop.f32.mrf.mxu0
    %v3482 = vadd.f32 0.0, %v3481
    %3483 = vmatmul.f32.gmra.mxu0 %v3372
    %v3484 = vpop.f32.mrf.mxu0
    %v3485 = vadd.f32 0.0, %v3484
    %3486 = vmatmul.f32.gmra.mxu0 %v3375
    %v3487 = vpop.f32.mrf.mxu0
    %v3488 = vadd.f32 0.0, %v3487
    %3489 = vmatmul.f32.gmra.mxu0 %v3378
    %v3490 = vpop.f32.mrf.mxu0
    %v3491 = vadd.f32 0.0, %v3490
    %3492 = vmatmul.f32.gmra.mxu0 %v3381
    %v3493 = vpop.f32.mrf.mxu0
    %v3494 = vadd.f32 0.0, %v3493
    %3495 = vmatmul.f32.gmra.mxu0 %v3384
    %v3496 = vpop.f32.mrf.mxu0
    %v3497 = vadd.f32 0.0, %v3496
    %3498 = vmatmul.f32.gmra.mxu0 %v3387
    %v3499 = vpop.f32.mrf.mxu0
    %v3500 = vadd.f32 0.0, %v3499
    %3501 = vmatmul.f32.gmra.mxu0 %v3390
    %v3502 = vpop.f32.mrf.mxu0
    %v3503 = vadd.f32 0.0, %v3502
    %3504 = vmatmul.f32.gmra.mxu0 %v3393
    %v3505 = vpop.f32.mrf.mxu0
    %v3506 = vadd.f32 0.0, %v3505
    %3507 = vmatmul.f32.gmra.mxu0 %v3396
    %v3508 = vpop.f32.mrf.mxu0
    %v3509 = vadd.f32 0.0, %v3508
    %3510 = vmatmul.f32.gmra.mxu0 %v3399
    %v3511 = vpop.f32.mrf.mxu0
    %v3512 = vadd.f32 0.0, %v3511
    %3513 = vmatmul.f32.gmra.mxu0 %v3402
    %v3514 = vpop.f32.mrf.mxu0
    %v3515 = vadd.f32 0.0, %v3514
    %3516 = vmatmul.f32.gmra.mxu0 %v3405
    %v3517 = vpop.f32.mrf.mxu0
    %v3518 = vadd.f32 0.0, %v3517
    %3519 = vdwg.mxu0
    %v3520 = vadd.f32 %v3278, %v3425
    %v3521 = vadd.f32 %v3279, %v3428
    %v3522 = vadd.f32 %v3280, %v3431
    %v3523 = vadd.f32 %v3281, %v3434
    %v3524 = vadd.f32 %v3282, %v3437
    %v3525 = vadd.f32 %v3283, %v3440
    %v3526 = vadd.f32 %v3284, %v3443
    %v3527 = vadd.f32 %v3285, %v3446
    %v3528 = vadd.f32 %v3286, %v3449
    %v3529 = vadd.f32 %v3287, %v3452
    %v3530 = vadd.f32 %v3288, %v3455
    %v3531 = vadd.f32 %v3289, %v3458
    %v3532 = vadd.f32 %v3290, %v3461
    %v3533 = vadd.f32 %v3291, %v3464
    %v3534 = vadd.f32 %v3292, %v3467
    %v3535 = vadd.f32 %v3293, %v3470
    %v3536 = vadd.f32 %v3294, %v3473
    %v3537 = vadd.f32 %v3295, %v3476
    %v3538 = vadd.f32 %v3296, %v3479
    %v3539 = vadd.f32 %v3297, %v3482
    %v3540 = vadd.f32 %v3298, %v3485
    %v3541 = vadd.f32 %v3299, %v3488
    %v3542 = vadd.f32 %v3300, %v3491
    %v3543 = vadd.f32 %v3301, %v3494
    %v3544 = vadd.f32 %v3302, %v3497
    %v3545 = vadd.f32 %v3303, %v3500
    %v3546 = vadd.f32 %v3304, %v3503
    %v3547 = vadd.f32 %v3305, %v3506
    %v3548 = vadd.f32 %v3306, %v3509
    %v3549 = vadd.f32 %v3307, %v3512
    %v3550 = vadd.f32 %v3308, %v3515
    %v3551 = vadd.f32 %v3309, %v3518
    %v3552 = vld [vmem:[%s26] sm:$0xff]
    %v3554 = vsel %vm1838, %v1647, 0
    %v3557 = vsel %vm1838, %v1649, 0
    %v3560 = vsel %vm1838, %v1651, 0
    %v3563 = vsel %vm1838, %v1653, 0
    %v3566 = vsel %vm1838, %v1655, 0
    %v3569 = vsel %vm1838, %v1657, 0
    %v3572 = vsel %vm1838, %v1659, 0
    %v3575 = vsel %vm1838, %v1661, 0
    %v3578 = vsel %vm1838, %v1663, 0
    %v3581 = vsel %vm1838, %v1665, 0
    %v3584 = vsel %vm1838, %v1667, 0
    %v3587 = vsel %vm1838, %v1669, 0
    %v3590 = vsel %vm1838, %v1671, 0
    %v3593 = vsel %vm1838, %v1673, 0
    %v3596 = vsel %vm1838, %v1675, 0
    %v3599 = vsel %vm1838, %v1677, 0
    %v3602 = vsel %vm1838, %v1679, 0
    %v3605 = vsel %vm1838, %v1681, 0
    %v3608 = vsel %vm1838, %v1683, 0
    %v3611 = vsel %vm1838, %v1685, 0
    %v3614 = vsel %vm1838, %v1687, 0
    %v3617 = vsel %vm1838, %v1689, 0
    %v3620 = vsel %vm1838, %v1691, 0
    %v3623 = vsel %vm1838, %v1693, 0
    %v3626 = vsel %vm1838, %v1695, 0
    %v3629 = vsel %vm1838, %v1697, 0
    %v3632 = vsel %vm1838, %v1699, 0
    %v3635 = vsel %vm1838, %v1701, 0
    %v3638 = vsel %vm1838, %v1703, 0
    %v3641 = vsel %vm1838, %v1705, 0
    %v3644 = vsel %vm1838, %v1707, 0
    %v3647 = vsel %vm1838, %v1709, 0
    %3649 = vmatpush.msra.mxu0 0.0
    %3650 = vmatpush.msra.mxu0 0.0
    %3651 = vmatpush.msra.mxu0 0.0
    %3652 = vmatpush.msra.mxu0 0.0
    %3653 = vmatpush.msra.mxu0 0.0
    %3654 = vmatpush.msra.mxu0 0.0
    %3655 = vmatpush.msra.mxu0 0.0
    %3656 = vmatpush.msra.mxu0 0.0
    %3657 = vmatpush.msra.mxu0 0.0
    %3658 = vmatpush.msra.mxu0 0.0
    %3659 = vmatpush.msra.mxu0 0.0
    %3660 = vmatpush.msra.mxu0 0.0
    %3661 = vmatpush.msra.mxu0 0.0
    %3662 = vmatpush.msra.mxu0 0.0
    %3663 = vmatpush.msra.mxu0 0.0
    %3664 = vmatpush.msra.mxu0 %v3552
    %3665 = vmatmul.f32.gmra.mxu0 %v3554
    %v3666 = vpop.f32.mrf.mxu0
    %v3667 = vadd.f32 0.0, %v3666
    %3668 = vmatmul.f32.gmra.mxu0 %v3557
    %v3669 = vpop.f32.mrf.mxu0
    %v3670 = vadd.f32 0.0, %v3669
    %3671 = vmatmul.f32.gmra.mxu0 %v3560
    %v3672 = vpop.f32.mrf.mxu0
    %v3673 = vadd.f32 0.0, %v3672
    %3674 = vmatmul.f32.gmra.mxu0 %v3563
    %v3675 = vpop.f32.mrf.mxu0
    %v3676 = vadd.f32 0.0, %v3675
    %3677 = vmatmul.f32.gmra.mxu0 %v3566
    %v3678 = vpop.f32.mrf.mxu0
    %v3679 = vadd.f32 0.0, %v3678
    %3680 = vmatmul.f32.gmra.mxu0 %v3569
    %v3681 = vpop.f32.mrf.mxu0
    %v3682 = vadd.f32 0.0, %v3681
    %3683 = vmatmul.f32.gmra.mxu0 %v3572
    %v3684 = vpop.f32.mrf.mxu0
    %v3685 = vadd.f32 0.0, %v3684
    %3686 = vmatmul.f32.gmra.mxu0 %v3575
    %v3687 = vpop.f32.mrf.mxu0
    %v3688 = vadd.f32 0.0, %v3687
    %3689 = vmatmul.f32.gmra.mxu0 %v3578
    %v3690 = vpop.f32.mrf.mxu0
    %v3691 = vadd.f32 0.0, %v3690
    %3692 = vmatmul.f32.gmra.mxu0 %v3581
    %v3693 = vpop.f32.mrf.mxu0
    %v3694 = vadd.f32 0.0, %v3693
    %3695 = vmatmul.f32.gmra.mxu0 %v3584
    %v3696 = vpop.f32.mrf.mxu0
    %v3697 = vadd.f32 0.0, %v3696
    %3698 = vmatmul.f32.gmra.mxu0 %v3587
    %v3699 = vpop.f32.mrf.mxu0
    %v3700 = vadd.f32 0.0, %v3699
    %3701 = vmatmul.f32.gmra.mxu0 %v3590
    %v3702 = vpop.f32.mrf.mxu0
    %v3703 = vadd.f32 0.0, %v3702
    %3704 = vmatmul.f32.gmra.mxu0 %v3593
    %v3705 = vpop.f32.mrf.mxu0
    %v3706 = vadd.f32 0.0, %v3705
    %3707 = vmatmul.f32.gmra.mxu0 %v3596
    %v3708 = vpop.f32.mrf.mxu0
    %v3709 = vadd.f32 0.0, %v3708
    %3710 = vmatmul.f32.gmra.mxu0 %v3599
    %v3711 = vpop.f32.mrf.mxu0
    %v3712 = vadd.f32 0.0, %v3711
    %3713 = vmatmul.f32.gmra.mxu0 %v3602
    %v3714 = vpop.f32.mrf.mxu0
    %v3715 = vadd.f32 0.0, %v3714
    %3716 = vmatmul.f32.gmra.mxu0 %v3605
    %v3717 = vpop.f32.mrf.mxu0
    %v3718 = vadd.f32 0.0, %v3717
    %3719 = vmatmul.f32.gmra.mxu0 %v3608
    %v3720 = vpop.f32.mrf.mxu0
    %v3721 = vadd.f32 0.0, %v3720
    %3722 = vmatmul.f32.gmra.mxu0 %v3611
    %v3723 = vpop.f32.mrf.mxu0
    %v3724 = vadd.f32 0.0, %v3723
    %3725 = vmatmul.f32.gmra.mxu0 %v3614
    %v3726 = vpop.f32.mrf.mxu0
    %v3727 = vadd.f32 0.0, %v3726
    %3728 = vmatmul.f32.gmra.mxu0 %v3617
    %v3729 = vpop.f32.mrf.mxu0
    %v3730 = vadd.f32 0.0, %v3729
    %3731 = vmatmul.f32.gmra.mxu0 %v3620
    %v3732 = vpop.f32.mrf.mxu0
    %v3733 = vadd.f32 0.0, %v3732
    %3734 = vmatmul.f32.gmra.mxu0 %v3623
    %v3735 = vpop.f32.mrf.mxu0
    %v3736 = vadd.f32 0.0, %v3735
    %3737 = vmatmul.f32.gmra.mxu0 %v3626
    %v3738 = vpop.f32.mrf.mxu0
    %v3739 = vadd.f32 0.0, %v3738
    %3740 = vmatmul.f32.gmra.mxu0 %v3629
    %v3741 = vpop.f32.mrf.mxu0
    %v3742 = vadd.f32 0.0, %v3741
    %3743 = vmatmul.f32.gmra.mxu0 %v3632
    %v3744 = vpop.f32.mrf.mxu0
    %v3745 = vadd.f32 0.0, %v3744
    %3746 = vmatmul.f32.gmra.mxu0 %v3635
    %v3747 = vpop.f32.mrf.mxu0
    %v3748 = vadd.f32 0.0, %v3747
    %3749 = vmatmul.f32.gmra.mxu0 %v3638
    %v3750 = vpop.f32.mrf.mxu0
    %v3751 = vadd.f32 0.0, %v3750
    %3752 = vmatmul.f32.gmra.mxu0 %v3641
    %v3753 = vpop.f32.mrf.mxu0
    %v3754 = vadd.f32 0.0, %v3753
    %3755 = vmatmul.f32.gmra.mxu0 %v3644
    %v3756 = vpop.f32.mrf.mxu0
    %v3757 = vadd.f32 0.0, %v3756
    %3758 = vmatmul.f32.gmra.mxu0 %v3647
    %v3759 = vpop.f32.mrf.mxu0
    %v3760 = vadd.f32 0.0, %v3759
    %3761 = vdwg.mxu0
    %v3762 = vadd.f32 %v3520, %v3667
    %v3763 = vadd.f32 %v3521, %v3670
    %v3764 = vadd.f32 %v3522, %v3673
    %v3765 = vadd.f32 %v3523, %v3676
    %v3766 = vadd.f32 %v3524, %v3679
    %v3767 = vadd.f32 %v3525, %v3682
    %v3768 = vadd.f32 %v3526, %v3685
    %v3769 = vadd.f32 %v3527, %v3688
    %v3770 = vadd.f32 %v3528, %v3691
    %v3771 = vadd.f32 %v3529, %v3694
    %v3772 = vadd.f32 %v3530, %v3697
    %v3773 = vadd.f32 %v3531, %v3700
    %v3774 = vadd.f32 %v3532, %v3703
    %v3775 = vadd.f32 %v3533, %v3706
    %v3776 = vadd.f32 %v3534, %v3709
    %v3777 = vadd.f32 %v3535, %v3712
    %v3778 = vadd.f32 %v3536, %v3715
    %v3779 = vadd.f32 %v3537, %v3718
    %v3780 = vadd.f32 %v3538, %v3721
    %v3781 = vadd.f32 %v3539, %v3724
    %v3782 = vadd.f32 %v3540, %v3727
    %v3783 = vadd.f32 %v3541, %v3730
    %v3784 = vadd.f32 %v3542, %v3733
    %v3785 = vadd.f32 %v3543, %v3736
    %v3786 = vadd.f32 %v3544, %v3739
    %v3787 = vadd.f32 %v3545, %v3742
    %v3788 = vadd.f32 %v3546, %v3745
    %v3789 = vadd.f32 %v3547, %v3748
    %v3790 = vadd.f32 %v3548, %v3751
    %v3791 = vadd.f32 %v3549, %v3754
    %v3792 = vadd.f32 %v3550, %v3757
    %v3793 = vadd.f32 %v3551, %v3760
    %v3794 = vld [vmem:[%s27] sm:$0xff]
    %v3796 = vsel %vm1838, %v1519, 0
    %v3799 = vsel %vm1838, %v1522, 0
    %v3802 = vsel %vm1838, %v1525, 0
    %v3805 = vsel %vm1838, %v1528, 0
    %v3808 = vsel %vm1838, %v1531, 0
    %v3811 = vsel %vm1838, %v1534, 0
    %v3814 = vsel %vm1838, %v1537, 0
    %v3817 = vsel %vm1838, %v1540, 0
    %v3820 = vsel %vm1838, %v1543, 0
    %v3823 = vsel %vm1838, %v1546, 0
    %v3826 = vsel %vm1838, %v1549, 0
    %v3829 = vsel %vm1838, %v1552, 0
    %v3832 = vsel %vm1838, %v1555, 0
    %v3835 = vsel %vm1838, %v1558, 0
    %v3838 = vsel %vm1838, %v1561, 0
    %v3841 = vsel %vm1838, %v1564, 0
    %v3844 = vsel %vm1838, %v1567, 0
    %v3847 = vsel %vm1838, %v1570, 0
    %v3850 = vsel %vm1838, %v1573, 0
    %v3853 = vsel %vm1838, %v1576, 0
    %v3856 = vsel %vm1838, %v1579, 0
    %v3859 = vsel %vm1838, %v1582, 0
    %v3862 = vsel %vm1838, %v1585, 0
    %v3865 = vsel %vm1838, %v1588, 0
    %v3868 = vsel %vm1838, %v1591, 0
    %v3871 = vsel %vm1838, %v1594, 0
    %v3874 = vsel %vm1838, %v1597, 0
    %v3877 = vsel %vm1838, %v1600, 0
    %v3880 = vsel %vm1838, %v1603, 0
    %v3883 = vsel %vm1838, %v1606, 0
    %v3886 = vsel %vm1838, %v1609, 0
    %v3889 = vsel %vm1838, %v1612, 0
    %3891 = vmatpush.msra.mxu0 0.0
    %3892 = vmatpush.msra.mxu0 0.0
    %3893 = vmatpush.msra.mxu0 0.0
    %3894 = vmatpush.msra.mxu0 0.0
    %3895 = vmatpush.msra.mxu0 0.0
    %3896 = vmatpush.msra.mxu0 0.0
    %3897 = vmatpush.msra.mxu0 0.0
    %3898 = vmatpush.msra.mxu0 0.0
    %3899 = vmatpush.msra.mxu0 0.0
    %3900 = vmatpush.msra.mxu0 0.0
    %3901 = vmatpush.msra.mxu0 0.0
    %3902 = vmatpush.msra.mxu0 0.0
    %3903 = vmatpush.msra.mxu0 0.0
    %3904 = vmatpush.msra.mxu0 0.0
    %3905 = vmatpush.msra.mxu0 0.0
    %3906 = vmatpush.msra.mxu0 %v3794
    %3907 = vmatmul.f32.gmra.mxu0 %v3796
    %v3908 = vpop.f32.mrf.mxu0
    %v3909 = vadd.f32 0.0, %v3908
    %3910 = vmatmul.f32.gmra.mxu0 %v3799
    %v3911 = vpop.f32.mrf.mxu0
    %v3912 = vadd.f32 0.0, %v3911
    %3913 = vmatmul.f32.gmra.mxu0 %v3802
    %v3914 = vpop.f32.mrf.mxu0
    %v3915 = vadd.f32 0.0, %v3914
    %3916 = vmatmul.f32.gmra.mxu0 %v3805
    %v3917 = vpop.f32.mrf.mxu0
    %v3918 = vadd.f32 0.0, %v3917
    %3919 = vmatmul.f32.gmra.mxu0 %v3808
    %v3920 = vpop.f32.mrf.mxu0
    %v3921 = vadd.f32 0.0, %v3920
    %3922 = vmatmul.f32.gmra.mxu0 %v3811
    %v3923 = vpop.f32.mrf.mxu0
    %v3924 = vadd.f32 0.0, %v3923
    %3925 = vmatmul.f32.gmra.mxu0 %v3814
    %v3926 = vpop.f32.mrf.mxu0
    %v3927 = vadd.f32 0.0, %v3926
    %3928 = vmatmul.f32.gmra.mxu0 %v3817
    %v3929 = vpop.f32.mrf.mxu0
    %v3930 = vadd.f32 0.0, %v3929
    %3931 = vmatmul.f32.gmra.mxu0 %v3820
    %v3932 = vpop.f32.mrf.mxu0
    %v3933 = vadd.f32 0.0, %v3932
    %3934 = vmatmul.f32.gmra.mxu0 %v3823
    %v3935 = vpop.f32.mrf.mxu0
    %v3936 = vadd.f32 0.0, %v3935
    %3937 = vmatmul.f32.gmra.mxu0 %v3826
    %v3938 = vpop.f32.mrf.mxu0
    %v3939 = vadd.f32 0.0, %v3938
    %3940 = vmatmul.f32.gmra.mxu0 %v3829
    %v3941 = vpop.f32.mrf.mxu0
    %v3942 = vadd.f32 0.0, %v3941
    %3943 = vmatmul.f32.gmra.mxu0 %v3832
    %v3944 = vpop.f32.mrf.mxu0
    %v3945 = vadd.f32 0.0, %v3944
    %3946 = vmatmul.f32.gmra.mxu0 %v3835
    %v3947 = vpop.f32.mrf.mxu0
    %v3948 = vadd.f32 0.0, %v3947
    %3949 = vmatmul.f32.gmra.mxu0 %v3838
    %v3950 = vpop.f32.mrf.mxu0
    %v3951 = vadd.f32 0.0, %v3950
    %3952 = vmatmul.f32.gmra.mxu0 %v3841
    %v3953 = vpop.f32.mrf.mxu0
    %v3954 = vadd.f32 0.0, %v3953
    %3955 = vmatmul.f32.gmra.mxu0 %v3844
    %v3956 = vpop.f32.mrf.mxu0
    %v3957 = vadd.f32 0.0, %v3956
    %3958 = vmatmul.f32.gmra.mxu0 %v3847
    %v3959 = vpop.f32.mrf.mxu0
    %v3960 = vadd.f32 0.0, %v3959
    %3961 = vmatmul.f32.gmra.mxu0 %v3850
    %v3962 = vpop.f32.mrf.mxu0
    %v3963 = vadd.f32 0.0, %v3962
    %3964 = vmatmul.f32.gmra.mxu0 %v3853
    %v3965 = vpop.f32.mrf.mxu0
    %v3966 = vadd.f32 0.0, %v3965
    %3967 = vmatmul.f32.gmra.mxu0 %v3856
    %v3968 = vpop.f32.mrf.mxu0
    %v3969 = vadd.f32 0.0, %v3968
    %3970 = vmatmul.f32.gmra.mxu0 %v3859
    %v3971 = vpop.f32.mrf.mxu0
    %v3972 = vadd.f32 0.0, %v3971
    %3973 = vmatmul.f32.gmra.mxu0 %v3862
    %v3974 = vpop.f32.mrf.mxu0
    %v3975 = vadd.f32 0.0, %v3974
    %3976 = vmatmul.f32.gmra.mxu0 %v3865
    %v3977 = vpop.f32.mrf.mxu0
    %v3978 = vadd.f32 0.0, %v3977
    %3979 = vmatmul.f32.gmra.mxu0 %v3868
    %v3980 = vpop.f32.mrf.mxu0
    %v3981 = vadd.f32 0.0, %v3980
    %3982 = vmatmul.f32.gmra.mxu0 %v3871
    %v3983 = vpop.f32.mrf.mxu0
    %v3984 = vadd.f32 0.0, %v3983
    %3985 = vmatmul.f32.gmra.mxu0 %v3874
    %v3986 = vpop.f32.mrf.mxu0
    %v3987 = vadd.f32 0.0, %v3986
    %3988 = vmatmul.f32.gmra.mxu0 %v3877
    %v3989 = vpop.f32.mrf.mxu0
    %v3990 = vadd.f32 0.0, %v3989
    %3991 = vmatmul.f32.gmra.mxu0 %v3880
    %v3992 = vpop.f32.mrf.mxu0
    %v3993 = vadd.f32 0.0, %v3992
    %3994 = vmatmul.f32.gmra.mxu0 %v3883
    %v3995 = vpop.f32.mrf.mxu0
    %v3996 = vadd.f32 0.0, %v3995
    %3997 = vmatmul.f32.gmra.mxu0 %v3886
    %v3998 = vpop.f32.mrf.mxu0
    %v3999 = vadd.f32 0.0, %v3998
    %4000 = vmatmul.f32.gmra.mxu0 %v3889
    %v4001 = vpop.f32.mrf.mxu0
    %v4002 = vadd.f32 0.0, %v4001
    %4003 = vdwg.mxu0
    %v4004 = vadd.f32 %v3762, %v3909
    %v4005 = vadd.f32 %v3763, %v3912
    %v4006 = vadd.f32 %v3764, %v3915
    %v4007 = vadd.f32 %v3765, %v3918
    %v4008 = vadd.f32 %v3766, %v3921
    %v4009 = vadd.f32 %v3767, %v3924
    %v4010 = vadd.f32 %v3768, %v3927
    %v4011 = vadd.f32 %v3769, %v3930
    %v4012 = vadd.f32 %v3770, %v3933
    %v4013 = vadd.f32 %v3771, %v3936
    %v4014 = vadd.f32 %v3772, %v3939
    %v4015 = vadd.f32 %v3773, %v3942
    %v4016 = vadd.f32 %v3774, %v3945
    %v4017 = vadd.f32 %v3775, %v3948
    %v4018 = vadd.f32 %v3776, %v3951
    %v4019 = vadd.f32 %v3777, %v3954
    %v4020 = vadd.f32 %v3778, %v3957
    %v4021 = vadd.f32 %v3779, %v3960
    %v4022 = vadd.f32 %v3780, %v3963
    %v4023 = vadd.f32 %v3781, %v3966
    %v4024 = vadd.f32 %v3782, %v3969
    %v4025 = vadd.f32 %v3783, %v3972
    %v4026 = vadd.f32 %v3784, %v3975
    %v4027 = vadd.f32 %v3785, %v3978
    %v4028 = vadd.f32 %v3786, %v3981
    %v4029 = vadd.f32 %v3787, %v3984
    %v4030 = vadd.f32 %v3788, %v3987
    %v4031 = vadd.f32 %v3789, %v3990
    %v4032 = vadd.f32 %v3790, %v3993
    %v4033 = vadd.f32 %v3791, %v3996
    %v4034 = vadd.f32 %v3792, %v3999
    %v4035 = vadd.f32 %v3793, %v4002
    %4036 = vst [vmem:[#allocation2] sm:$0xff] %v4004
    %4037 = vst [vmem:[#allocation2 + $0x8] sm:$0xff] %v4005
    %4038 = vst [vmem:[#allocation2 + $0x10] sm:$0xff] %v4006
    %4039 = vst [vmem:[#allocation2 + $0x18] sm:$0xff] %v4007
    %4040 = vst [vmem:[#allocation2 + $0x20] sm:$0xff] %v4008
    %4041 = vst [vmem:[#allocation2 + $0x28] sm:$0xff] %v4009
    %4042 = vst [vmem:[#allocation2 + $0x30] sm:$0xff] %v4010
    %4043 = vst [vmem:[#allocation2 + $0x38] sm:$0xff] %v4011
    %4044 = vst [vmem:[#allocation2 + $0x40] sm:$0xff] %v4012
    %4045 = vst [vmem:[#allocation2 + $0x48] sm:$0xff] %v4013
    %4046 = vst [vmem:[#allocation2 + $0x50] sm:$0xff] %v4014
    %4047 = vst [vmem:[#allocation2 + $0x58] sm:$0xff] %v4015
    %4048 = vst [vmem:[#allocation2 + $0x60] sm:$0xff] %v4016
    %4049 = vst [vmem:[#allocation2 + $0x68] sm:$0xff] %v4017
    %4050 = vst [vmem:[#allocation2 + $0x70] sm:$0xff] %v4018
    %4051 = vst [vmem:[#allocation2 + $0x78] sm:$0xff] %v4019
    %4052 = vst [vmem:[#allocation2 + $0x80] sm:$0xff] %v4020
    %4053 = vst [vmem:[#allocation2 + $0x88] sm:$0xff] %v4021
    %4054 = vst [vmem:[#allocation2 + $0x90] sm:$0xff] %v4022
    %4055 = vst [vmem:[#allocation2 + $0x98] sm:$0xff] %v4023
    %4056 = vst [vmem:[#allocation2 + $0xa0] sm:$0xff] %v4024
    %4057 = vst [vmem:[#allocation2 + $0xa8] sm:$0xff] %v4025
    %4058 = vst [vmem:[#allocation2 + $0xb0] sm:$0xff] %v4026
    %4059 = vst [vmem:[#allocation2 + $0xb8] sm:$0xff] %v4027
    %4060 = vst [vmem:[#allocation2 + $0xc0] sm:$0xff] %v4028
    %4061 = vst [vmem:[#allocation2 + $0xc8] sm:$0xff] %v4029
    %4062 = vst [vmem:[#allocation2 + $0xd0] sm:$0xff] %v4030
    %4063 = vst [vmem:[#allocation2 + $0xd8] sm:$0xff] %v4031
    %4064 = vst [vmem:[#allocation2 + $0xe0] sm:$0xff] %v4032
    %4065 = vst [vmem:[#allocation2 + $0xe8] sm:$0xff] %v4033
    %4066 = vst [vmem:[#allocation2 + $0xf0] sm:$0xff] %v4034
    %4067 = vst [vmem:[#allocation2 + $0xf8] sm:$0xff] %v4035
    // Predicated region
    $region114: #{tpu_custom_call.1} parent=1 // pred_check
      _
    $region115: #{tpu_custom_call.1} parent=1 // pred_check_branch
      %4069 = sbr.rel (0) target = $region117
    $region116: #{tpu_custom_call.1} parent=1 // pred_region
      %4071 = vsyncadd [#allocation3], 0
      %s4072 = sshll.u32 [#allocation2], 4
      %s4073 = int_to_ptr.vmem [resolvable:$true] %s4072
      %s4074 = sshll.u32 %s28, 4
      %s4075 = int_to_ptr.hbm [resolvable:$true] %s4074
      %4080 = dma.vmem_to_hbm [thread:$0]  %s4073, 4096, %s4075, [#allocation3], 128, 128, 8
    $region117: #{tpu_custom_call.1} parent=1 // pred_fallthru
      _
    // Predicated region
    $region118: #{tpu_custom_call.1} parent=1 // pred_check
      _
    $region119: #{tpu_custom_call.1} parent=1 // pred_check_branch
      %4082 = sbr.rel (0) target = $region121
    $region120: #{tpu_custom_call.1} parent=1 // pred_region
      %4084 = dma.done [#allocation3], 4096
    $region121: #{tpu_custom_call.1} parent=1 // pred_fallthru
      _
    %4085 = vsyncpa [#allocation3], 1

</llo_original>
